<compile_context>
chip_gen: v7x
topology: tpu7x:2x2x1
jax: 0.10.0
libtpu: 0.0.40
codegen_flags: <defaults>
</compile_context>

<pallas_src>
import functools

import jax
import jax.numpy as jnp
import numpy as np
from jax.experimental import pallas as pl
from jax.experimental.pallas import tpu as pltpu


# ----------------------------------------------------------------------------
# Fused kernel: one grid step per batch image.
# ----------------------------------------------------------------------------
def _resnet_block_kernel(xee_ref, xeo_ref, xoe_ref, xoo_ref,
                         wdin_ref, bdin_ref, gamma_ref, beta_ref,
                         w1_ref, b1_ref, w2sk_ref, b2sk_ref,
                         o_ref,
                         im_a_ref, im_b_ref, cat_ref,
                         *, wo):
    hw = o_ref.shape[1]
    c = o_ref.shape[2]
    f32 = jnp.float32
    mxu_dt = wdin_ref.dtype          # bf16 on v6e/v7x, f32 otherwise
    eps = 1e-5

    def put_tap(im_ref, k, v, s, dxp):
        # Column block k of the (HW, 9C) im2col slab: dest row r holds v[r + s] when
        # the shifted index stays inside the image, else 0.  Row validity is handled
        # by the [lo, hi) window (only those halo rows are zeroed); horizontal wrap
        # (tap column offset dxp) is handled with an iota mask on the value.
        c0, c1 = k * c, (k + 1) * c
        lo = max(0, -s)
        hi = hw - max(0, s)
        if lo > 0:
            im_ref[0:lo, c0:c1] = jnp.zeros((lo, c), im_ref.dtype)
        if hi < hw:
            im_ref[hi:hw, c0:c1] = jnp.zeros((hw - hi, c), im_ref.dtype)
        src = v[lo + s:hi + s, :]
        if dxp != 0:
            r = jax.lax.broadcasted_iota(jnp.int32, (hi - lo, c), 0) + lo
            j = r % wo
            ok = jnp.logical_and(j + dxp >= 0, j + dxp < wo)
            src = jnp.where(ok, src, jnp.zeros_like(src))
        im_ref[lo:hi, c0:c1] = src.astype(im_ref.dtype)

    # ---- Downsample(3x3, stride 2, pad 1) folded with in_conv(1x1): one K=9C matmul.
    # Taps come from the 4 parity slabs (even/odd input rows x even/odd input cols),
    # shifted down/right by one slab row/col (zero halo) for the "-1" taps.
    xee, xeo, xoe, xoo = xee_ref[0], xeo_ref[0], xoe_ref[0], xoo_ref[0]
    for dy in range(3):
        even_col, odd_col = (xee, xeo) if dy == 1 else (xoe, xoo)
        dr = 1 if dy == 0 else 0          # needs slab row i-1 (input row 2i-1)
        for dx in range(3):
            v = even_col if dx == 1 else odd_col
            dc = 1 if dx == 0 else 0      # needs slab col j-1 (input col 2j-1)
            put_tap(im_a_ref, dy * 3 + dx, v, -(dr * wo + dc), -dc)
    z = jnp.dot(im_a_ref[...].astype(mxu_dt), wdin_ref[...],
                preferred_element_type=f32) + bdin_ref[...]

    # ---- GroupNorm(32, C): C == 32 -> group size 1 -> per-channel spatial stats.
    # TODO(synk): group size > 1 (out_c > 32) would need a per-group pooling step here.
    mean = jnp.mean(z, axis=0, keepdims=True)
    zc = z - mean
    var = jnp.mean(zc * zc, axis=0, keepdims=True)
    xn = zc * jax.lax.rsqrt(var + eps) * gamma_ref[...] + beta_ref[...]

    # ---- body[0]: 3x3 stride-1 pad-1 conv as one K=9C im2col matmul (taps = shifted xn).
    for ky in range(3):
        for kx in range(3):
            put_tap(im_b_ref, ky * 3 + kx, xn, (ky - 1) * wo + (kx - 1), kx - 1)
    h1 = jnp.dot(im_b_ref[...].astype(mxu_dt), w1_ref[...],
                 preferred_element_type=f32) + b1_ref[...]

    # ---- body[1]: SiLU (kept in f32 on the VPU/EUP, also correct on v5e).
    s = h1 * jax.nn.sigmoid(h1)

    # ---- body[2] 1x1 conv + skep 1x1 conv fused: [s | xn] @ [[w2]; [wsk]] + (b2 + bsk).
    cat_ref[:, 0:c] = s.astype(cat_ref.dtype)
    cat_ref[:, c:2 * c] = xn.astype(cat_ref.dtype)
    out = jnp.dot(cat_ref[...].astype(mxu_dt), w2sk_ref[...],
                  preferred_element_type=f32) + b2sk_ref[...]
    o_ref[0] = out.astype(o_ref.dtype)


# ----------------------------------------------------------------------------
# Wrapper: NCHW boundary, byte-neutral parity de-interleave, weight packing.
# ----------------------------------------------------------------------------
def resnet_block_forward(x_nchw, params, *, groups=32, compute_dtype=jnp.float32):
    n, c, h, w = x_nchw.shape
    assert h % 2 == 0 and w % 2 == 0
    ho, wo = h // 2, w // 2
    hw = ho * wo
    assert c % groups == 0 and c // groups == 1, \
        "Pallas path implements GroupNorm for group size 1 (out_c == 32)."

    dt = compute_dtype
    x = jnp.transpose(x_nchw, (0, 2, 3, 1)).astype(jnp.float32)   # NCHW -> NHWC

    # Even/odd row x even/odd col de-interleave: pure layout glue, total bytes == |x|.
    xee = x[:, 0::2, 0::2, :].reshape(n, hw, c)
    xeo = x[:, 0::2, 1::2, :].reshape(n, hw, c)
    xoe = x[:, 1::2, 0::2, :].reshape(n, hw, c)
    xoo = x[:, 1::2, 1::2, :].reshape(n, hw, c)

    # Fold in_conv(1x1) into the downsample conv:  (x*Wd + bd)*Win + bin
    #   == x*(Wd@Win) + (bd@Win + bin).
    w_in = params["w_in"]                                          # (C, C)
    wdin = jnp.einsum("hwim,mo->hwio", params["w_down"], w_in)     # (3,3,C,C)
    wdin = wdin.reshape(9 * c, c).astype(dt)
    bdin = (params["b_down"] @ w_in + params["b_in"]).reshape(1, c)

    w1 = params["w1"].reshape(9 * c, c).astype(dt)
    b1 = params["b1"].reshape(1, c)
    w2sk = jnp.concatenate([params["w2"], params["wsk"]], axis=0).astype(dt)  # (2C, C)
    b2sk = (params["b2"] + params["bsk"]).reshape(1, c)
    gamma = params["gamma"].reshape(1, c)
    beta = params["beta"].reshape(1, c)

    operands = [xee, xeo, xoe, xoo,
                wdin, bdin, gamma, beta, w1, b1, w2sk, b2sk]

    def batch_spec():
        return pl.BlockSpec((1, hw, c), lambda i: (i, 0, 0))

    def full_spec(a):
        nd = a.ndim
        return pl.BlockSpec(a.shape, lambda i, nd=nd: (0,) * nd)

    in_specs = ([batch_spec() for _ in range(4)]
                + [full_spec(a) for a in operands[4:]])

    out = pl.pallas_call(
        functools.partial(_resnet_block_kernel, wo=wo),
        out_shape=jax.ShapeDtypeStruct((n, hw, c), jnp.float32),
        grid=(n,),
        in_specs=in_specs,
        out_specs=pl.BlockSpec((1, hw, c), lambda i: (i, 0, 0)),
        scratch_shapes=[pltpu.VMEM((hw, 9 * c), jnp.float32),   # im2col (downsample)
                        pltpu.VMEM((hw, 9 * c), jnp.float32),   # im2col (body 3x3)
                        pltpu.VMEM((hw, 2 * c), jnp.float32)],  # [s | xn] for fused epilogue
        compiler_params=pltpu.CompilerParams(
            dimension_semantics=("parallel",)),
    )(*operands)

    return jnp.transpose(out.reshape(n, ho, wo, c), (0, 3, 1, 2))  # NHWC -> NCHW


# ----------------------------------------------------------------------------
# Pure-JAX reference (for verification).
# ----------------------------------------------------------------------------
def reference_forward(x_nchw, params, groups=32):
    x = jnp.transpose(x_nchw, (0, 2, 3, 1))
    c = x.shape[-1]

    def conv(x, w_hwio, b, stride, pad):
        o = jax.lax.conv_general_dilated(
            x, w_hwio, (stride, stride), [(pad, pad), (pad, pad)],
            dimension_numbers=("NHWC", "HWIO", "NHWC"))
        return o + b

    y = conv(x, params["w_down"], params["b_down"], 2, 1)
    z = conv(y, params["w_in"].reshape(1, 1, c, c), params["b_in"], 1, 0)
    n, h, w, _ = z.shape
    zg = z.reshape(n, h, w, groups, c // groups)
    mean = zg.mean(axis=(1, 2, 4), keepdims=True)
    var = ((zg - mean) ** 2).mean(axis=(1, 2, 4), keepdims=True)
    xn = ((zg - mean) / jnp.sqrt(var + 1e-5)).reshape(n, h, w, c)
    xn = xn * params["gamma"] + params["beta"]
    h1 = conv(xn, params["w1"], params["b1"], 1, 1)
    s = h1 * jax.nn.sigmoid(h1)
    h2 = conv(s, params["w2"].reshape(1, 1, c, c), params["b2"], 1, 0)
    sk = conv(xn, params["wsk"].reshape(1, 1, c, c), params["bsk"], 1, 0)
    return jnp.transpose(h2 + sk, (0, 3, 1, 2))


if __name__ == "__main__":
    N, C, H, W = 2, 32, 16, 16          # in_c = out_c = 32
    key = jax.random.PRNGKey(0)
    ks = iter(jax.random.split(key, 16))

    def nrm(shape, scale=0.1):
        return scale * jax.random.normal(next(ks), shape, jnp.float32)

    # Synthetic deterministic parameters (HWIO for 3x3 convs, (Cin,Cout) for 1x1 convs).
    params = {
        "w_down": nrm((3, 3, C, C)), "b_down": nrm((C,)),     # Downsample conv (3x3, s2, p1)
        "w_in":   nrm((C, C)),       "b_in":   nrm((C,)),     # in_conv (1x1)
        "gamma":  1.0 + nrm((C,)),   "beta":   nrm((C,)),     # GroupNorm32 affine
        "w1":     nrm((3, 3, C, C)), "b1":     nrm((C,)),     # body[0] 3x3 pad 1
        "w2":     nrm((C, C)),       "b2":     nrm((C,)),     # body[2] 1x1 pad 0
        "wsk":    nrm((C, C)),       "bsk":    nrm((C,)),     # skep (1x1)
    }

    x = jax.random.normal(next(ks), (N, C, H, W), jnp.float32)   # PyTorch NCHW input

    ref = jax.block_until_ready(reference_forward(x, params))

    # f32 path (v5e-friendly, tight tolerance).
    out = jax.block_until_ready(resnet_block_forward(x, params))
    assert out.shape == (N, C, H // 2, W // 2), out.shape
    np.testing.assert_allclose(np.asarray(out), np.asarray(ref), rtol=2e-2, atol=2e-2)

    # bf16-MXU path (v6e/v7x recommendation): matmul operands in bf16, f32 accumulate,
    # GroupNorm / SiLU / biases in f32.  Checked at a looser tolerance.
    out_bf16 = jax.block_until_ready(
        resnet_block_forward(x, params, compute_dtype=jnp.bfloat16))
    np.testing.assert_allclose(np.asarray(out_bf16), np.asarray(ref), rtol=1e-1, atol=1e-1)

    print("KERNEL_OK")
</pallas_src>

<mosaic_0001>
module attributes {stable_mosaic.version = 11 : i64} {
  func.func @_resnet_block_kernel(%arg0: i32, %arg1: memref<1x64x32xf32, #tpu.memory_space<vmem>>, %arg2: memref<1x64x32xf32, #tpu.memory_space<vmem>>, %arg3: memref<1x64x32xf32, #tpu.memory_space<vmem>>, %arg4: memref<1x64x32xf32, #tpu.memory_space<vmem>>, %arg5: memref<288x32xf32, #tpu.memory_space<vmem>>, %arg6: memref<1x32xf32, #tpu.memory_space<vmem>>, %arg7: memref<1x32xf32, #tpu.memory_space<vmem>>, %arg8: memref<1x32xf32, #tpu.memory_space<vmem>>, %arg9: memref<288x32xf32, #tpu.memory_space<vmem>>, %arg10: memref<1x32xf32, #tpu.memory_space<vmem>>, %arg11: memref<64x32xf32, #tpu.memory_space<vmem>>, %arg12: memref<1x32xf32, #tpu.memory_space<vmem>>, %arg13: memref<1x64x32xf32, #tpu.memory_space<vmem>>, %arg14: memref<64x288xf32, #tpu.memory_space<vmem>>, %arg15: memref<64x288xf32, #tpu.memory_space<vmem>>, %arg16: memref<64x64xf32, #tpu.memory_space<vmem>>) attributes {dimension_semantics = [#tpu.dimension_semantics<parallel>], iteration_bounds = array<i64: 2>, scalar_prefetch = 0 : i64, scratch_operands = 3 : i64, tpu.core_type = #tpu.core_type<tc>, window_params = [{transform_indices = @transform_0, window_bounds = array<i64: 1, 64, 32>}, {transform_indices = @transform_1, window_bounds = array<i64: 1, 64, 32>}, {transform_indices = @transform_2, window_bounds = array<i64: 1, 64, 32>}, {transform_indices = @transform_3, window_bounds = array<i64: 1, 64, 32>}, {pipeline_mode = #tpu.pipeline_mode<synchronous>, transform_indices = @transform_4, window_bounds = array<i64: 288, 32>}, {pipeline_mode = #tpu.pipeline_mode<synchronous>, transform_indices = @transform_5, window_bounds = array<i64: 1, 32>}, {pipeline_mode = #tpu.pipeline_mode<synchronous>, transform_indices = @transform_6, window_bounds = array<i64: 1, 32>}, {pipeline_mode = #tpu.pipeline_mode<synchronous>, transform_indices = @transform_7, window_bounds = array<i64: 1, 32>}, {pipeline_mode = #tpu.pipeline_mode<synchronous>, transform_indices = @transform_8, window_bounds = array<i64: 288, 32>}, {pipeline_mode = #tpu.pipeline_mode<synchronous>, transform_indices = @transform_9, window_bounds = array<i64: 1, 32>}, {pipeline_mode = #tpu.pipeline_mode<synchronous>, transform_indices = @transform_10, window_bounds = array<i64: 64, 32>}, {pipeline_mode = #tpu.pipeline_mode<synchronous>, transform_indices = @transform_11, window_bounds = array<i64: 1, 32>}, {transform_indices = @transform_12, window_bounds = array<i64: 1, 64, 32>}]} {
    %c0 = arith.constant 0 : index
    %c0_0 = arith.constant 0 : index
    %c0_1 = arith.constant 0 : index
    %0 = vector.load %arg1[%c0, %c0_0, %c0_1] : memref<1x64x32xf32, #tpu.memory_space<vmem>>, vector<1x64x32xf32>
    %1 = vector.shape_cast %0 : vector<1x64x32xf32> to vector<64x32xf32>
    %c0_2 = arith.constant 0 : index
    %c0_3 = arith.constant 0 : index
    %c0_4 = arith.constant 0 : index
    %2 = vector.load %arg2[%c0_2, %c0_3, %c0_4] : memref<1x64x32xf32, #tpu.memory_space<vmem>>, vector<1x64x32xf32>
    %3 = vector.shape_cast %2 : vector<1x64x32xf32> to vector<64x32xf32>
    %c0_5 = arith.constant 0 : index
    %c0_6 = arith.constant 0 : index
    %c0_7 = arith.constant 0 : index
    %4 = vector.load %arg3[%c0_5, %c0_6, %c0_7] : memref<1x64x32xf32, #tpu.memory_space<vmem>>, vector<1x64x32xf32>
    %5 = vector.shape_cast %4 : vector<1x64x32xf32> to vector<64x32xf32>
    %c0_8 = arith.constant 0 : index
    %c0_9 = arith.constant 0 : index
    %c0_10 = arith.constant 0 : index
    %6 = vector.load %arg4[%c0_8, %c0_9, %c0_10] : memref<1x64x32xf32, #tpu.memory_space<vmem>>, vector<1x64x32xf32>
    %7 = vector.shape_cast %6 : vector<1x64x32xf32> to vector<64x32xf32>
    %cst = arith.constant 0.000000e+00 : f32
    %8 = vector.broadcast %cst : f32 to vector<9x32xf32>
    %c0_11 = arith.constant 0 : index
    %c0_12 = arith.constant 0 : index
    %9 = vector.load %arg14[%c0_11, %c0_12] : memref<64x288xf32, #tpu.memory_space<vmem>>, vector<9x32xf32>
    tpu.vector_store %arg14[%c0_11, %c0_12], %8 {strides = array<i32>} : memref<64x288xf32, #tpu.memory_space<vmem>>, vector<9x32xf32>,
    %10 = vector.extract_strided_slice %7 {offsets = [0, 0], sizes = [55, 32], strides = [1, 1]} : vector<64x32xf32> to vector<55x32xf32>
    %11 = tpu.iota {dimensions = array<i32: 0>} : vector<55x32xi32>
    %c9_i32 = arith.constant 9 : i32
    %12 = vector.broadcast %c9_i32 : i32 to vector<55x32xi32>
    %13 = arith.addi %11, %12 : vector<55x32xi32>
    %c8_i32 = arith.constant 8 : i32
    %c0_i32 = arith.constant 0 : i32
    %14 = arith.cmpi eq, %c8_i32, %c0_i32 : i32
    %c1_i32 = arith.constant 1 : i32
    %15 = arith.select %14, %c1_i32, %c8_i32 : i32
    %16 = vector.broadcast %15 : i32 to vector<55x32xi32>
    %17 = arith.remsi %13, %16 : vector<55x32xi32>
    %c0_i32_13 = arith.constant 0 : i32
    %18 = vector.broadcast %c0_i32_13 : i32 to vector<55x32xi32>
    %19 = arith.cmpi ne, %17, %18 : vector<55x32xi32>
    %c0_i32_14 = arith.constant 0 : i32
    %20 = vector.broadcast %c0_i32_14 : i32 to vector<55x32xi32>
    %21 = arith.cmpi slt, %17, %20 : vector<55x32xi32>
    %c0_i32_15 = arith.constant 0 : i32
    %22 = arith.cmpi slt, %15, %c0_i32_15 : i32
    %23 = vector.broadcast %22 : i1 to vector<55x32xi1>
    %24 = vector.broadcast %23 : vector<55x32xi1> to vector<55x32xi1>
    %25 = arith.xori %21, %24 : vector<55x32xi1>
    %26 = arith.andi %25, %19 : vector<55x32xi1>
    %27 = vector.broadcast %15 : i32 to vector<55x32xi32>
    %28 = arith.addi %17, %27 : vector<55x32xi32>
    %29 = arith.select %26, %28, %17 : vector<55x32xi1>, vector<55x32xi32>
    %c-1_i32 = arith.constant -1 : i32
    %30 = vector.broadcast %c-1_i32 : i32 to vector<55x32xi32>
    %31 = arith.addi %29, %30 : vector<55x32xi32>
    %c0_i32_16 = arith.constant 0 : i32
    %32 = vector.broadcast %c0_i32_16 : i32 to vector<55x32xi32>
    %33 = arith.cmpi sge, %31, %32 : vector<55x32xi32>
    %c-1_i32_17 = arith.constant -1 : i32
    %34 = vector.broadcast %c-1_i32_17 : i32 to vector<55x32xi32>
    %35 = arith.addi %29, %34 : vector<55x32xi32>
    %c8_i32_18 = arith.constant 8 : i32
    %36 = vector.broadcast %c8_i32_18 : i32 to vector<55x32xi32>
    %37 = arith.cmpi slt, %35, %36 : vector<55x32xi32>
    %38 = arith.andi %33, %37 : vector<55x32xi1>
    %cst_19 = arith.constant 0.000000e+00 : f32
    %39 = vector.broadcast %cst_19 : f32 to vector<55x32xf32>
    %40 = arith.select %38, %10, %39 : vector<55x32xi1>, vector<55x32xf32>
    %c9 = arith.constant 9 : index
    %c0_20 = arith.constant 0 : index
    %41 = vector.load %arg14[%c9, %c0_20] : memref<64x288xf32, #tpu.memory_space<vmem>>, vector<55x32xf32>
    tpu.vector_store %arg14[%c9, %c0_20], %40 {strides = array<i32>} : memref<64x288xf32, #tpu.memory_space<vmem>>, vector<55x32xf32>,
    %cst_21 = arith.constant 0.000000e+00 : f32
    %42 = vector.broadcast %cst_21 : f32 to vector<8x32xf32>
    %c0_22 = arith.constant 0 : index
    %c32 = arith.constant 32 : index
    %43 = vector.load %arg14[%c0_22, %c32] : memref<64x288xf32, #tpu.memory_space<vmem>>, vector<8x32xf32>
    tpu.vector_store %arg14[%c0_22, %c32], %42 {strides = array<i32>} : memref<64x288xf32, #tpu.memory_space<vmem>>, vector<8x32xf32>,
    %44 = vector.extract_strided_slice %5 {offsets = [0, 0], sizes = [56, 32], strides = [1, 1]} : vector<64x32xf32> to vector<56x32xf32>
    %c8 = arith.constant 8 : index
    %c32_23 = arith.constant 32 : index
    %45 = vector.load %arg14[%c8, %c32_23] : memref<64x288xf32, #tpu.memory_space<vmem>>, vector<56x32xf32>
    tpu.vector_store %arg14[%c8, %c32_23], %44 {strides = array<i32>} : memref<64x288xf32, #tpu.memory_space<vmem>>, vector<56x32xf32>,
    %cst_24 = arith.constant 0.000000e+00 : f32
    %46 = vector.broadcast %cst_24 : f32 to vector<8x32xf32>
    %c0_25 = arith.constant 0 : index
    %c64 = arith.constant 64 : index
    %47 = vector.load %arg14[%c0_25, %c64] : memref<64x288xf32, #tpu.memory_space<vmem>>, vector<8x32xf32>
    tpu.vector_store %arg14[%c0_25, %c64], %46 {strides = array<i32>} : memref<64x288xf32, #tpu.memory_space<vmem>>, vector<8x32xf32>,
    %48 = vector.extract_strided_slice %7 {offsets = [0, 0], sizes = [56, 32], strides = [1, 1]} : vector<64x32xf32> to vector<56x32xf32>
    %c8_26 = arith.constant 8 : index
    %c64_27 = arith.constant 64 : index
    %49 = vector.load %arg14[%c8_26, %c64_27] : memref<64x288xf32, #tpu.memory_space<vmem>>, vector<56x32xf32>
    tpu.vector_store %arg14[%c8_26, %c64_27], %48 {strides = array<i32>} : memref<64x288xf32, #tpu.memory_space<vmem>>, vector<56x32xf32>,
    %cst_28 = arith.constant 0.000000e+00 : f32
    %50 = vector.broadcast %cst_28 : f32 to vector<1x32xf32>
    %c0_29 = arith.constant 0 : index
    %c96 = arith.constant 96 : index
    %51 = vector.load %arg14[%c0_29, %c96] : memref<64x288xf32, #tpu.memory_space<vmem>>, vector<1x32xf32>
    tpu.vector_store %arg14[%c0_29, %c96], %50 {strides = array<i32>} : memref<64x288xf32, #tpu.memory_space<vmem>>, vector<1x32xf32>,
    %52 = vector.extract_strided_slice %3 {offsets = [0, 0], sizes = [63, 32], strides = [1, 1]} : vector<64x32xf32> to vector<63x32xf32>
    %53 = tpu.iota {dimensions = array<i32: 0>} : vector<63x32xi32>
    %c1_i32_30 = arith.constant 1 : i32
    %54 = vector.broadcast %c1_i32_30 : i32 to vector<63x32xi32>
    %55 = arith.addi %53, %54 : vector<63x32xi32>
    %c8_i32_31 = arith.constant 8 : i32
    %c0_i32_32 = arith.constant 0 : i32
    %56 = arith.cmpi eq, %c8_i32_31, %c0_i32_32 : i32
    %c1_i32_33 = arith.constant 1 : i32
    %57 = arith.select %56, %c1_i32_33, %c8_i32_31 : i32
    %58 = vector.broadcast %57 : i32 to vector<63x32xi32>
    %59 = arith.remsi %55, %58 : vector<63x32xi32>
    %c0_i32_34 = arith.constant 0 : i32
    %60 = vector.broadcast %c0_i32_34 : i32 to vector<63x32xi32>
    %61 = arith.cmpi ne, %59, %60 : vector<63x32xi32>
    %c0_i32_35 = arith.constant 0 : i32
    %62 = vector.broadcast %c0_i32_35 : i32 to vector<63x32xi32>
    %63 = arith.cmpi slt, %59, %62 : vector<63x32xi32>
    %c0_i32_36 = arith.constant 0 : i32
    %64 = arith.cmpi slt, %57, %c0_i32_36 : i32
    %65 = vector.broadcast %64 : i1 to vector<63x32xi1>
    %66 = vector.broadcast %65 : vector<63x32xi1> to vector<63x32xi1>
    %67 = arith.xori %63, %66 : vector<63x32xi1>
    %68 = arith.andi %67, %61 : vector<63x32xi1>
    %69 = vector.broadcast %57 : i32 to vector<63x32xi32>
    %70 = arith.addi %59, %69 : vector<63x32xi32>
    %71 = arith.select %68, %70, %59 : vector<63x32xi1>, vector<63x32xi32>
    %c-1_i32_37 = arith.constant -1 : i32
    %72 = vector.broadcast %c-1_i32_37 : i32 to vector<63x32xi32>
    %73 = arith.addi %71, %72 : vector<63x32xi32>
    %c0_i32_38 = arith.constant 0 : i32
    %74 = vector.broadcast %c0_i32_38 : i32 to vector<63x32xi32>
    %75 = arith.cmpi sge, %73, %74 : vector<63x32xi32>
    %c-1_i32_39 = arith.constant -1 : i32
    %76 = vector.broadcast %c-1_i32_39 : i32 to vector<63x32xi32>
    %77 = arith.addi %71, %76 : vector<63x32xi32>
    %c8_i32_40 = arith.constant 8 : i32
    %78 = vector.broadcast %c8_i32_40 : i32 to vector<63x32xi32>
    %79 = arith.cmpi slt, %77, %78 : vector<63x32xi32>
    %80 = arith.andi %75, %79 : vector<63x32xi1>
    %cst_41 = arith.constant 0.000000e+00 : f32
    %81 = vector.broadcast %cst_41 : f32 to vector<63x32xf32>
    %82 = arith.select %80, %52, %81 : vector<63x32xi1>, vector<63x32xf32>
    %c1 = arith.constant 1 : index
    %c96_42 = arith.constant 96 : index
    %83 = vector.load %arg14[%c1, %c96_42] : memref<64x288xf32, #tpu.memory_space<vmem>>, vector<63x32xf32>
    tpu.vector_store %arg14[%c1, %c96_42], %82 {strides = array<i32>} : memref<64x288xf32, #tpu.memory_space<vmem>>, vector<63x32xf32>,
    %c0_43 = arith.constant 0 : index
    %c128 = arith.constant 128 : index
    %84 = vector.load %arg14[%c0_43, %c128] : memref<64x288xf32, #tpu.memory_space<vmem>>, vector<64x32xf32>
    tpu.vector_store %arg14[%c0_43, %c128], %1 {strides = array<i32>} : memref<64x288xf32, #tpu.memory_space<vmem>>, vector<64x32xf32>,
    %c0_44 = arith.constant 0 : index
    %c160 = arith.constant 160 : index
    %85 = vector.load %arg14[%c0_44, %c160] : memref<64x288xf32, #tpu.memory_space<vmem>>, vector<64x32xf32>
    tpu.vector_store %arg14[%c0_44, %c160], %3 {strides = array<i32>} : memref<64x288xf32, #tpu.memory_space<vmem>>, vector<64x32xf32>,
    %cst_45 = arith.constant 0.000000e+00 : f32
    %86 = vector.broadcast %cst_45 : f32 to vector<1x32xf32>
    %c0_46 = arith.constant 0 : index
    %c192 = arith.constant 192 : index
    %87 = vector.load %arg14[%c0_46, %c192] : memref<64x288xf32, #tpu.memory_space<vmem>>, vector<1x32xf32>
    tpu.vector_store %arg14[%c0_46, %c192], %86 {strides = array<i32>} : memref<64x288xf32, #tpu.memory_space<vmem>>, vector<1x32xf32>,
    %88 = vector.extract_strided_slice %7 {offsets = [0, 0], sizes = [63, 32], strides = [1, 1]} : vector<64x32xf32> to vector<63x32xf32>
    %89 = tpu.iota {dimensions = array<i32: 0>} : vector<63x32xi32>
    %c1_i32_47 = arith.constant 1 : i32
    %90 = vector.broadcast %c1_i32_47 : i32 to vector<63x32xi32>
    %91 = arith.addi %89, %90 : vector<63x32xi32>
    %c8_i32_48 = arith.constant 8 : i32
    %c0_i32_49 = arith.constant 0 : i32
    %92 = arith.cmpi eq, %c8_i32_48, %c0_i32_49 : i32
    %c1_i32_50 = arith.constant 1 : i32
    %93 = arith.select %92, %c1_i32_50, %c8_i32_48 : i32
    %94 = vector.broadcast %93 : i32 to vector<63x32xi32>
    %95 = arith.remsi %91, %94 : vector<63x32xi32>
    %c0_i32_51 = arith.constant 0 : i32
    %96 = vector.broadcast %c0_i32_51 : i32 to vector<63x32xi32>
    %97 = arith.cmpi ne, %95, %96 : vector<63x32xi32>
    %c0_i32_52 = arith.constant 0 : i32
    %98 = vector.broadcast %c0_i32_52 : i32 to vector<63x32xi32>
    %99 = arith.cmpi slt, %95, %98 : vector<63x32xi32>
    %c0_i32_53 = arith.constant 0 : i32
    %100 = arith.cmpi slt, %93, %c0_i32_53 : i32
    %101 = vector.broadcast %100 : i1 to vector<63x32xi1>
    %102 = vector.broadcast %101 : vector<63x32xi1> to vector<63x32xi1>
    %103 = arith.xori %99, %102 : vector<63x32xi1>
    %104 = arith.andi %103, %97 : vector<63x32xi1>
    %105 = vector.broadcast %93 : i32 to vector<63x32xi32>
    %106 = arith.addi %95, %105 : vector<63x32xi32>
    %107 = arith.select %104, %106, %95 : vector<63x32xi1>, vector<63x32xi32>
    %c-1_i32_54 = arith.constant -1 : i32
    %108 = vector.broadcast %c-1_i32_54 : i32 to vector<63x32xi32>
    %109 = arith.addi %107, %108 : vector<63x32xi32>
    %c0_i32_55 = arith.constant 0 : i32
    %110 = vector.broadcast %c0_i32_55 : i32 to vector<63x32xi32>
    %111 = arith.cmpi sge, %109, %110 : vector<63x32xi32>
    %c-1_i32_56 = arith.constant -1 : i32
    %112 = vector.broadcast %c-1_i32_56 : i32 to vector<63x32xi32>
    %113 = arith.addi %107, %112 : vector<63x32xi32>
    %c8_i32_57 = arith.constant 8 : i32
    %114 = vector.broadcast %c8_i32_57 : i32 to vector<63x32xi32>
    %115 = arith.cmpi slt, %113, %114 : vector<63x32xi32>
    %116 = arith.andi %111, %115 : vector<63x32xi1>
    %cst_58 = arith.constant 0.000000e+00 : f32
    %117 = vector.broadcast %cst_58 : f32 to vector<63x32xf32>
    %118 = arith.select %116, %88, %117 : vector<63x32xi1>, vector<63x32xf32>
    %c1_59 = arith.constant 1 : index
    %c192_60 = arith.constant 192 : index
    %119 = vector.load %arg14[%c1_59, %c192_60] : memref<64x288xf32, #tpu.memory_space<vmem>>, vector<63x32xf32>
    tpu.vector_store %arg14[%c1_59, %c192_60], %118 {strides = array<i32>} : memref<64x288xf32, #tpu.memory_space<vmem>>, vector<63x32xf32>,
    %c0_61 = arith.constant 0 : index
    %c224 = arith.constant 224 : index
    %120 = vector.load %arg14[%c0_61, %c224] : memref<64x288xf32, #tpu.memory_space<vmem>>, vector<64x32xf32>
    tpu.vector_store %arg14[%c0_61, %c224], %5 {strides = array<i32>} : memref<64x288xf32, #tpu.memory_space<vmem>>, vector<64x32xf32>,
    %c0_62 = arith.constant 0 : index
    %c256 = arith.constant 256 : index
    %121 = vector.load %arg14[%c0_62, %c256] : memref<64x288xf32, #tpu.memory_space<vmem>>, vector<64x32xf32>
    tpu.vector_store %arg14[%c0_62, %c256], %7 {strides = array<i32>} : memref<64x288xf32, #tpu.memory_space<vmem>>, vector<64x32xf32>,
    %c0_63 = arith.constant 0 : index
    %c0_64 = arith.constant 0 : index
    %122 = vector.load %arg14[%c0_63, %c0_64] : memref<64x288xf32, #tpu.memory_space<vmem>>, vector<64x288xf32>
    %c0_65 = arith.constant 0 : index
    %c0_66 = arith.constant 0 : index
    %123 = vector.load %arg5[%c0_65, %c0_66] : memref<288x32xf32, #tpu.memory_space<vmem>>, vector<288x32xf32>
    %cst_67 = arith.constant dense<0.000000e+00> : vector<64x32xf32>
    %124 = tpu.matmul %122, %123, %cst_67 {dimension_numbers = #tpu.dot_dimension_numbers<[1], [0], [0], [1], [0, 0, 1, 1], [], []>} : vector<64x288xf32>, vector<288x32xf32>, vector<64x32xf32> -> vector<64x32xf32>
    %c0_68 = arith.constant 0 : index
    %c0_69 = arith.constant 0 : index
    %125 = vector.load %arg6[%c0_68, %c0_69] : memref<1x32xf32, #tpu.memory_space<vmem>>, vector<1x32xf32>
    %126 = vector.broadcast %125 : vector<1x32xf32> to vector<64x32xf32>
    %127 = arith.addf %124, %126 : vector<64x32xf32>
    %cst_70 = arith.constant dense<0.000000e+00> : vector<32xf32>
    %128 = vector.multi_reduction <add>, %127, %cst_70 [0] : vector<64x32xf32> to vector<32xf32>
    %129 = vector.shape_cast %128 : vector<32xf32> to vector<1x32xf32>
    %cst_71 = arith.constant 6.400000e+01 : f32
    %130 = vector.broadcast %cst_71 : f32 to vector<1x32xf32>
    %131 = arith.divf %129, %130 : vector<1x32xf32>
    %132 = vector.broadcast %131 : vector<1x32xf32> to vector<64x32xf32>
    %133 = arith.subf %127, %132 : vector<64x32xf32>
    %134 = arith.mulf %133, %133 : vector<64x32xf32>
    %cst_72 = arith.constant dense<0.000000e+00> : vector<32xf32>
    %135 = vector.multi_reduction <add>, %134, %cst_72 [0] : vector<64x32xf32> to vector<32xf32>
    %136 = vector.shape_cast %135 : vector<32xf32> to vector<1x32xf32>
    %cst_73 = arith.constant 6.400000e+01 : f32
    %137 = vector.broadcast %cst_73 : f32 to vector<1x32xf32>
    %138 = arith.divf %136, %137 : vector<1x32xf32>
    %cst_74 = arith.constant 9.99999974E-6 : f32
    %139 = vector.broadcast %cst_74 : f32 to vector<1x32xf32>
    %140 = arith.addf %138, %139 : vector<1x32xf32>
    %141 = math.rsqrt %140 : vector<1x32xf32>
    %142 = vector.broadcast %141 : vector<1x32xf32> to vector<64x32xf32>
    %143 = arith.mulf %133, %142 : vector<64x32xf32>
    %c0_75 = arith.constant 0 : index
    %c0_76 = arith.constant 0 : index
    %144 = vector.load %arg7[%c0_75, %c0_76] : memref<1x32xf32, #tpu.memory_space<vmem>>, vector<1x32xf32>
    %145 = vector.broadcast %144 : vector<1x32xf32> to vector<64x32xf32>
    %146 = arith.mulf %143, %145 : vector<64x32xf32>
    %c0_77 = arith.constant 0 : index
    %c0_78 = arith.constant 0 : index
    %147 = vector.load %arg8[%c0_77, %c0_78] : memref<1x32xf32, #tpu.memory_space<vmem>>, vector<1x32xf32>
    %148 = vector.broadcast %147 : vector<1x32xf32> to vector<64x32xf32>
    %149 = arith.addf %146, %148 : vector<64x32xf32>
    %cst_79 = arith.constant 0.000000e+00 : f32
    %150 = vector.broadcast %cst_79 : f32 to vector<9x32xf32>
    %c0_80 = arith.constant 0 : index
    %c0_81 = arith.constant 0 : index
    %151 = vector.load %arg15[%c0_80, %c0_81] : memref<64x288xf32, #tpu.memory_space<vmem>>, vector<9x32xf32>
    tpu.vector_store %arg15[%c0_80, %c0_81], %150 {strides = array<i32>} : memref<64x288xf32, #tpu.memory_space<vmem>>, vector<9x32xf32>,
    %152 = vector.extract_strided_slice %149 {offsets = [0, 0], sizes = [55, 32], strides = [1, 1]} : vector<64x32xf32> to vector<55x32xf32>
    %153 = tpu.iota {dimensions = array<i32: 0>} : vector<55x32xi32>
    %c9_i32_82 = arith.constant 9 : i32
    %154 = vector.broadcast %c9_i32_82 : i32 to vector<55x32xi32>
    %155 = arith.addi %153, %154 : vector<55x32xi32>
    %c8_i32_83 = arith.constant 8 : i32
    %c0_i32_84 = arith.constant 0 : i32
    %156 = arith.cmpi eq, %c8_i32_83, %c0_i32_84 : i32
    %c1_i32_85 = arith.constant 1 : i32
    %157 = arith.select %156, %c1_i32_85, %c8_i32_83 : i32
    %158 = vector.broadcast %157 : i32 to vector<55x32xi32>
    %159 = arith.remsi %155, %158 : vector<55x32xi32>
    %c0_i32_86 = arith.constant 0 : i32
    %160 = vector.broadcast %c0_i32_86 : i32 to vector<55x32xi32>
    %161 = arith.cmpi ne, %159, %160 : vector<55x32xi32>
    %c0_i32_87 = arith.constant 0 : i32
    %162 = vector.broadcast %c0_i32_87 : i32 to vector<55x32xi32>
    %163 = arith.cmpi slt, %159, %162 : vector<55x32xi32>
    %c0_i32_88 = arith.constant 0 : i32
    %164 = arith.cmpi slt, %157, %c0_i32_88 : i32
    %165 = vector.broadcast %164 : i1 to vector<55x32xi1>
    %166 = vector.broadcast %165 : vector<55x32xi1> to vector<55x32xi1>
    %167 = arith.xori %163, %166 : vector<55x32xi1>
    %168 = arith.andi %167, %161 : vector<55x32xi1>
    %169 = vector.broadcast %157 : i32 to vector<55x32xi32>
    %170 = arith.addi %159, %169 : vector<55x32xi32>
    %171 = arith.select %168, %170, %159 : vector<55x32xi1>, vector<55x32xi32>
    %c-1_i32_89 = arith.constant -1 : i32
    %172 = vector.broadcast %c-1_i32_89 : i32 to vector<55x32xi32>
    %173 = arith.addi %171, %172 : vector<55x32xi32>
    %c0_i32_90 = arith.constant 0 : i32
    %174 = vector.broadcast %c0_i32_90 : i32 to vector<55x32xi32>
    %175 = arith.cmpi sge, %173, %174 : vector<55x32xi32>
    %c-1_i32_91 = arith.constant -1 : i32
    %176 = vector.broadcast %c-1_i32_91 : i32 to vector<55x32xi32>
    %177 = arith.addi %171, %176 : vector<55x32xi32>
    %c8_i32_92 = arith.constant 8 : i32
    %178 = vector.broadcast %c8_i32_92 : i32 to vector<55x32xi32>
    %179 = arith.cmpi slt, %177, %178 : vector<55x32xi32>
    %180 = arith.andi %175, %179 : vector<55x32xi1>
    %cst_93 = arith.constant 0.000000e+00 : f32
    %181 = vector.broadcast %cst_93 : f32 to vector<55x32xf32>
    %182 = arith.select %180, %152, %181 : vector<55x32xi1>, vector<55x32xf32>
    %c9_94 = arith.constant 9 : index
    %c0_95 = arith.constant 0 : index
    %183 = vector.load %arg15[%c9_94, %c0_95] : memref<64x288xf32, #tpu.memory_space<vmem>>, vector<55x32xf32>
    tpu.vector_store %arg15[%c9_94, %c0_95], %182 {strides = array<i32>} : memref<64x288xf32, #tpu.memory_space<vmem>>, vector<55x32xf32>,
    %cst_96 = arith.constant 0.000000e+00 : f32
    %184 = vector.broadcast %cst_96 : f32 to vector<8x32xf32>
    %c0_97 = arith.constant 0 : index
    %c32_98 = arith.constant 32 : index
    %185 = vector.load %arg15[%c0_97, %c32_98] : memref<64x288xf32, #tpu.memory_space<vmem>>, vector<8x32xf32>
    tpu.vector_store %arg15[%c0_97, %c32_98], %184 {strides = array<i32>} : memref<64x288xf32, #tpu.memory_space<vmem>>, vector<8x32xf32>,
    %186 = vector.extract_strided_slice %149 {offsets = [0, 0], sizes = [56, 32], strides = [1, 1]} : vector<64x32xf32> to vector<56x32xf32>
    %c8_99 = arith.constant 8 : index
    %c32_100 = arith.constant 32 : index
    %187 = vector.load %arg15[%c8_99, %c32_100] : memref<64x288xf32, #tpu.memory_space<vmem>>, vector<56x32xf32>
    tpu.vector_store %arg15[%c8_99, %c32_100], %186 {strides = array<i32>} : memref<64x288xf32, #tpu.memory_space<vmem>>, vector<56x32xf32>,
    %cst_101 = arith.constant 0.000000e+00 : f32
    %188 = vector.broadcast %cst_101 : f32 to vector<7x32xf32>
    %c0_102 = arith.constant 0 : index
    %c64_103 = arith.constant 64 : index
    %189 = vector.load %arg15[%c0_102, %c64_103] : memref<64x288xf32, #tpu.memory_space<vmem>>, vector<7x32xf32>
    tpu.vector_store %arg15[%c0_102, %c64_103], %188 {strides = array<i32>} : memref<64x288xf32, #tpu.memory_space<vmem>>, vector<7x32xf32>,
    %190 = vector.extract_strided_slice %149 {offsets = [0, 0], sizes = [57, 32], strides = [1, 1]} : vector<64x32xf32> to vector<57x32xf32>
    %191 = tpu.iota {dimensions = array<i32: 0>} : vector<57x32xi32>
    %c7_i32 = arith.constant 7 : i32
    %192 = vector.broadcast %c7_i32 : i32 to vector<57x32xi32>
    %193 = arith.addi %191, %192 : vector<57x32xi32>
    %c8_i32_104 = arith.constant 8 : i32
    %c0_i32_105 = arith.constant 0 : i32
    %194 = arith.cmpi eq, %c8_i32_104, %c0_i32_105 : i32
    %c1_i32_106 = arith.constant 1 : i32
    %195 = arith.select %194, %c1_i32_106, %c8_i32_104 : i32
    %196 = vector.broadcast %195 : i32 to vector<57x32xi32>
    %197 = arith.remsi %193, %196 : vector<57x32xi32>
    %c0_i32_107 = arith.constant 0 : i32
    %198 = vector.broadcast %c0_i32_107 : i32 to vector<57x32xi32>
    %199 = arith.cmpi ne, %197, %198 : vector<57x32xi32>
    %c0_i32_108 = arith.constant 0 : i32
    %200 = vector.broadcast %c0_i32_108 : i32 to vector<57x32xi32>
    %201 = arith.cmpi slt, %197, %200 : vector<57x32xi32>
    %c0_i32_109 = arith.constant 0 : i32
    %202 = arith.cmpi slt, %195, %c0_i32_109 : i32
    %203 = vector.broadcast %202 : i1 to vector<57x32xi1>
    %204 = vector.broadcast %203 : vector<57x32xi1> to vector<57x32xi1>
    %205 = arith.xori %201, %204 : vector<57x32xi1>
    %206 = arith.andi %205, %199 : vector<57x32xi1>
    %207 = vector.broadcast %195 : i32 to vector<57x32xi32>
    %208 = arith.addi %197, %207 : vector<57x32xi32>
    %209 = arith.select %206, %208, %197 : vector<57x32xi1>, vector<57x32xi32>
    %c1_i32_110 = arith.constant 1 : i32
    %210 = vector.broadcast %c1_i32_110 : i32 to vector<57x32xi32>
    %211 = arith.addi %209, %210 : vector<57x32xi32>
    %c0_i32_111 = arith.constant 0 : i32
    %212 = vector.broadcast %c0_i32_111 : i32 to vector<57x32xi32>
    %213 = arith.cmpi sge, %211, %212 : vector<57x32xi32>
    %c1_i32_112 = arith.constant 1 : i32
    %214 = vector.broadcast %c1_i32_112 : i32 to vector<57x32xi32>
    %215 = arith.addi %209, %214 : vector<57x32xi32>
    %c8_i32_113 = arith.constant 8 : i32
    %216 = vector.broadcast %c8_i32_113 : i32 to vector<57x32xi32>
    %217 = arith.cmpi slt, %215, %216 : vector<57x32xi32>
    %218 = arith.andi %213, %217 : vector<57x32xi1>
    %cst_114 = arith.constant 0.000000e+00 : f32
    %219 = vector.broadcast %cst_114 : f32 to vector<57x32xf32>
    %220 = arith.select %218, %190, %219 : vector<57x32xi1>, vector<57x32xf32>
    %c7 = arith.constant 7 : index
    %c64_115 = arith.constant 64 : index
    %221 = vector.load %arg15[%c7, %c64_115] : memref<64x288xf32, #tpu.memory_space<vmem>>, vector<57x32xf32>
    tpu.vector_store %arg15[%c7, %c64_115], %220 {strides = array<i32>} : memref<64x288xf32, #tpu.memory_space<vmem>>, vector<57x32xf32>,
    %cst_116 = arith.constant 0.000000e+00 : f32
    %222 = vector.broadcast %cst_116 : f32 to vector<1x32xf32>
    %c0_117 = arith.constant 0 : index
    %c96_118 = arith.constant 96 : index
    %223 = vector.load %arg15[%c0_117, %c96_118] : memref<64x288xf32, #tpu.memory_space<vmem>>, vector<1x32xf32>
    tpu.vector_store %arg15[%c0_117, %c96_118], %222 {strides = array<i32>} : memref<64x288xf32, #tpu.memory_space<vmem>>, vector<1x32xf32>,
    %224 = vector.extract_strided_slice %149 {offsets = [0, 0], sizes = [63, 32], strides = [1, 1]} : vector<64x32xf32> to vector<63x32xf32>
    %225 = tpu.iota {dimensions = array<i32: 0>} : vector<63x32xi32>
    %c1_i32_119 = arith.constant 1 : i32
    %226 = vector.broadcast %c1_i32_119 : i32 to vector<63x32xi32>
    %227 = arith.addi %225, %226 : vector<63x32xi32>
    %c8_i32_120 = arith.constant 8 : i32
    %c0_i32_121 = arith.constant 0 : i32
    %228 = arith.cmpi eq, %c8_i32_120, %c0_i32_121 : i32
    %c1_i32_122 = arith.constant 1 : i32
    %229 = arith.select %228, %c1_i32_122, %c8_i32_120 : i32
    %230 = vector.broadcast %229 : i32 to vector<63x32xi32>
    %231 = arith.remsi %227, %230 : vector<63x32xi32>
    %c0_i32_123 = arith.constant 0 : i32
    %232 = vector.broadcast %c0_i32_123 : i32 to vector<63x32xi32>
    %233 = arith.cmpi ne, %231, %232 : vector<63x32xi32>
    %c0_i32_124 = arith.constant 0 : i32
    %234 = vector.broadcast %c0_i32_124 : i32 to vector<63x32xi32>
    %235 = arith.cmpi slt, %231, %234 : vector<63x32xi32>
    %c0_i32_125 = arith.constant 0 : i32
    %236 = arith.cmpi slt, %229, %c0_i32_125 : i32
    %237 = vector.broadcast %236 : i1 to vector<63x32xi1>
    %238 = vector.broadcast %237 : vector<63x32xi1> to vector<63x32xi1>
    %239 = arith.xori %235, %238 : vector<63x32xi1>
    %240 = arith.andi %239, %233 : vector<63x32xi1>
    %241 = vector.broadcast %229 : i32 to vector<63x32xi32>
    %242 = arith.addi %231, %241 : vector<63x32xi32>
    %243 = arith.select %240, %242, %231 : vector<63x32xi1>, vector<63x32xi32>
    %c-1_i32_126 = arith.constant -1 : i32
    %244 = vector.broadcast %c-1_i32_126 : i32 to vector<63x32xi32>
    %245 = arith.addi %243, %244 : vector<63x32xi32>
    %c0_i32_127 = arith.constant 0 : i32
    %246 = vector.broadcast %c0_i32_127 : i32 to vector<63x32xi32>
    %247 = arith.cmpi sge, %245, %246 : vector<63x32xi32>
    %c-1_i32_128 = arith.constant -1 : i32
    %248 = vector.broadcast %c-1_i32_128 : i32 to vector<63x32xi32>
    %249 = arith.addi %243, %248 : vector<63x32xi32>
    %c8_i32_129 = arith.constant 8 : i32
    %250 = vector.broadcast %c8_i32_129 : i32 to vector<63x32xi32>
    %251 = arith.cmpi slt, %249, %250 : vector<63x32xi32>
    %252 = arith.andi %247, %251 : vector<63x32xi1>
    %cst_130 = arith.constant 0.000000e+00 : f32
    %253 = vector.broadcast %cst_130 : f32 to vector<63x32xf32>
    %254 = arith.select %252, %224, %253 : vector<63x32xi1>, vector<63x32xf32>
    %c1_131 = arith.constant 1 : index
    %c96_132 = arith.constant 96 : index
    %255 = vector.load %arg15[%c1_131, %c96_132] : memref<64x288xf32, #tpu.memory_space<vmem>>, vector<63x32xf32>
    tpu.vector_store %arg15[%c1_131, %c96_132], %254 {strides = array<i32>} : memref<64x288xf32, #tpu.memory_space<vmem>>, vector<63x32xf32>,
    %c0_133 = arith.constant 0 : index
    %c128_134 = arith.constant 128 : index
    %256 = vector.load %arg15[%c0_133, %c128_134] : memref<64x288xf32, #tpu.memory_space<vmem>>, vector<64x32xf32>
    tpu.vector_store %arg15[%c0_133, %c128_134], %149 {strides = array<i32>} : memref<64x288xf32, #tpu.memory_space<vmem>>, vector<64x32xf32>,
    %cst_135 = arith.constant 0.000000e+00 : f32
    %257 = vector.broadcast %cst_135 : f32 to vector<1x32xf32>
    %c63 = arith.constant 63 : index
    %c160_136 = arith.constant 160 : index
    %258 = vector.load %arg15[%c63, %c160_136] : memref<64x288xf32, #tpu.memory_space<vmem>>, vector<1x32xf32>
    tpu.vector_store %arg15[%c63, %c160_136], %257 {strides = array<i32>} : memref<64x288xf32, #tpu.memory_space<vmem>>, vector<1x32xf32>,
    %259 = vector.extract_strided_slice %149 {offsets = [1, 0], sizes = [63, 32], strides = [1, 1]} : vector<64x32xf32> to vector<63x32xf32>
    %260 = tpu.iota {dimensions = array<i32: 0>} : vector<63x32xi32>
    %c0_i32_137 = arith.constant 0 : i32
    %261 = vector.broadcast %c0_i32_137 : i32 to vector<63x32xi32>
    %262 = arith.addi %260, %261 : vector<63x32xi32>
    %c8_i32_138 = arith.constant 8 : i32
    %c0_i32_139 = arith.constant 0 : i32
    %263 = arith.cmpi eq, %c8_i32_138, %c0_i32_139 : i32
    %c1_i32_140 = arith.constant 1 : i32
    %264 = arith.select %263, %c1_i32_140, %c8_i32_138 : i32
    %265 = vector.broadcast %264 : i32 to vector<63x32xi32>
    %266 = arith.remsi %262, %265 : vector<63x32xi32>
    %c0_i32_141 = arith.constant 0 : i32
    %267 = vector.broadcast %c0_i32_141 : i32 to vector<63x32xi32>
    %268 = arith.cmpi ne, %266, %267 : vector<63x32xi32>
    %c0_i32_142 = arith.constant 0 : i32
    %269 = vector.broadcast %c0_i32_142 : i32 to vector<63x32xi32>
    %270 = arith.cmpi slt, %266, %269 : vector<63x32xi32>
    %c0_i32_143 = arith.constant 0 : i32
    %271 = arith.cmpi slt, %264, %c0_i32_143 : i32
    %272 = vector.broadcast %271 : i1 to vector<63x32xi1>
    %273 = vector.broadcast %272 : vector<63x32xi1> to vector<63x32xi1>
    %274 = arith.xori %270, %273 : vector<63x32xi1>
    %275 = arith.andi %274, %268 : vector<63x32xi1>
    %276 = vector.broadcast %264 : i32 to vector<63x32xi32>
    %277 = arith.addi %266, %276 : vector<63x32xi32>
    %278 = arith.select %275, %277, %266 : vector<63x32xi1>, vector<63x32xi32>
    %c1_i32_144 = arith.constant 1 : i32
    %279 = vector.broadcast %c1_i32_144 : i32 to vector<63x32xi32>
    %280 = arith.addi %278, %279 : vector<63x32xi32>
    %c0_i32_145 = arith.constant 0 : i32
    %281 = vector.broadcast %c0_i32_145 : i32 to vector<63x32xi32>
    %282 = arith.cmpi sge, %280, %281 : vector<63x32xi32>
    %c1_i32_146 = arith.constant 1 : i32
    %283 = vector.broadcast %c1_i32_146 : i32 to vector<63x32xi32>
    %284 = arith.addi %278, %283 : vector<63x32xi32>
    %c8_i32_147 = arith.constant 8 : i32
    %285 = vector.broadcast %c8_i32_147 : i32 to vector<63x32xi32>
    %286 = arith.cmpi slt, %284, %285 : vector<63x32xi32>
    %287 = arith.andi %282, %286 : vector<63x32xi1>
    %cst_148 = arith.constant 0.000000e+00 : f32
    %288 = vector.broadcast %cst_148 : f32 to vector<63x32xf32>
    %289 = arith.select %287, %259, %288 : vector<63x32xi1>, vector<63x32xf32>
    %c0_149 = arith.constant 0 : index
    %c160_150 = arith.constant 160 : index
    %290 = vector.load %arg15[%c0_149, %c160_150] : memref<64x288xf32, #tpu.memory_space<vmem>>, vector<63x32xf32>
    tpu.vector_store %arg15[%c0_149, %c160_150], %289 {strides = array<i32>} : memref<64x288xf32, #tpu.memory_space<vmem>>, vector<63x32xf32>,
    %cst_151 = arith.constant 0.000000e+00 : f32
    %291 = vector.broadcast %cst_151 : f32 to vector<7x32xf32>
    %c57 = arith.constant 57 : index
    %c192_152 = arith.constant 192 : index
    %292 = vector.load %arg15[%c57, %c192_152] : memref<64x288xf32, #tpu.memory_space<vmem>>, vector<7x32xf32>
    tpu.vector_store %arg15[%c57, %c192_152], %291 {strides = array<i32>} : memref<64x288xf32, #tpu.memory_space<vmem>>, vector<7x32xf32>,
    %293 = vector.extract_strided_slice %149 {offsets = [7, 0], sizes = [57, 32], strides = [1, 1]} : vector<64x32xf32> to vector<57x32xf32>
    %294 = tpu.iota {dimensions = array<i32: 0>} : vector<57x32xi32>
    %c0_i32_153 = arith.constant 0 : i32
    %295 = vector.broadcast %c0_i32_153 : i32 to vector<57x32xi32>
    %296 = arith.addi %294, %295 : vector<57x32xi32>
    %c8_i32_154 = arith.constant 8 : i32
    %c0_i32_155 = arith.constant 0 : i32
    %297 = arith.cmpi eq, %c8_i32_154, %c0_i32_155 : i32
    %c1_i32_156 = arith.constant 1 : i32
    %298 = arith.select %297, %c1_i32_156, %c8_i32_154 : i32
    %299 = vector.broadcast %298 : i32 to vector<57x32xi32>
    %300 = arith.remsi %296, %299 : vector<57x32xi32>
    %c0_i32_157 = arith.constant 0 : i32
    %301 = vector.broadcast %c0_i32_157 : i32 to vector<57x32xi32>
    %302 = arith.cmpi ne, %300, %301 : vector<57x32xi32>
    %c0_i32_158 = arith.constant 0 : i32
    %303 = vector.broadcast %c0_i32_158 : i32 to vector<57x32xi32>
    %304 = arith.cmpi slt, %300, %303 : vector<57x32xi32>
    %c0_i32_159 = arith.constant 0 : i32
    %305 = arith.cmpi slt, %298, %c0_i32_159 : i32
    %306 = vector.broadcast %305 : i1 to vector<57x32xi1>
    %307 = vector.broadcast %306 : vector<57x32xi1> to vector<57x32xi1>
    %308 = arith.xori %304, %307 : vector<57x32xi1>
    %309 = arith.andi %308, %302 : vector<57x32xi1>
    %310 = vector.broadcast %298 : i32 to vector<57x32xi32>
    %311 = arith.addi %300, %310 : vector<57x32xi32>
    %312 = arith.select %309, %311, %300 : vector<57x32xi1>, vector<57x32xi32>
    %c-1_i32_160 = arith.constant -1 : i32
    %313 = vector.broadcast %c-1_i32_160 : i32 to vector<57x32xi32>
    %314 = arith.addi %312, %313 : vector<57x32xi32>
    %c0_i32_161 = arith.constant 0 : i32
    %315 = vector.broadcast %c0_i32_161 : i32 to vector<57x32xi32>
    %316 = arith.cmpi sge, %314, %315 : vector<57x32xi32>
    %c-1_i32_162 = arith.constant -1 : i32
    %317 = vector.broadcast %c-1_i32_162 : i32 to vector<57x32xi32>
    %318 = arith.addi %312, %317 : vector<57x32xi32>
    %c8_i32_163 = arith.constant 8 : i32
    %319 = vector.broadcast %c8_i32_163 : i32 to vector<57x32xi32>
    %320 = arith.cmpi slt, %318, %319 : vector<57x32xi32>
    %321 = arith.andi %316, %320 : vector<57x32xi1>
    %cst_164 = arith.constant 0.000000e+00 : f32
    %322 = vector.broadcast %cst_164 : f32 to vector<57x32xf32>
    %323 = arith.select %321, %293, %322 : vector<57x32xi1>, vector<57x32xf32>
    %c0_165 = arith.constant 0 : index
    %c192_166 = arith.constant 192 : index
    %324 = vector.load %arg15[%c0_165, %c192_166] : memref<64x288xf32, #tpu.memory_space<vmem>>, vector<57x32xf32>
    tpu.vector_store %arg15[%c0_165, %c192_166], %323 {strides = array<i32>} : memref<64x288xf32, #tpu.memory_space<vmem>>, vector<57x32xf32>,
    %cst_167 = arith.constant 0.000000e+00 : f32
    %325 = vector.broadcast %cst_167 : f32 to vector<8x32xf32>
    %c56 = arith.constant 56 : index
    %c224_168 = arith.constant 224 : index
    %326 = vector.load %arg15[%c56, %c224_168] : memref<64x288xf32, #tpu.memory_space<vmem>>, vector<8x32xf32>
    tpu.vector_store %arg15[%c56, %c224_168], %325 {strides = array<i32>} : memref<64x288xf32, #tpu.memory_space<vmem>>, vector<8x32xf32>,
    %327 = vector.extract_strided_slice %149 {offsets = [8, 0], sizes = [56, 32], strides = [1, 1]} : vector<64x32xf32> to vector<56x32xf32>
    %c0_169 = arith.constant 0 : index
    %c224_170 = arith.constant 224 : index
    %328 = vector.load %arg15[%c0_169, %c224_170] : memref<64x288xf32, #tpu.memory_space<vmem>>, vector<56x32xf32>
    tpu.vector_store %arg15[%c0_169, %c224_170], %327 {strides = array<i32>} : memref<64x288xf32, #tpu.memory_space<vmem>>, vector<56x32xf32>,
    %cst_171 = arith.constant 0.000000e+00 : f32
    %329 = vector.broadcast %cst_171 : f32 to vector<9x32xf32>
    %c55 = arith.constant 55 : index
    %c256_172 = arith.constant 256 : index
    %330 = vector.load %arg15[%c55, %c256_172] : memref<64x288xf32, #tpu.memory_space<vmem>>, vector<9x32xf32>
    tpu.vector_store %arg15[%c55, %c256_172], %329 {strides = array<i32>} : memref<64x288xf32, #tpu.memory_space<vmem>>, vector<9x32xf32>,
    %331 = vector.extract_strided_slice %149 {offsets = [9, 0], sizes = [55, 32], strides = [1, 1]} : vector<64x32xf32> to vector<55x32xf32>
    %332 = tpu.iota {dimensions = array<i32: 0>} : vector<55x32xi32>
    %c0_i32_173 = arith.constant 0 : i32
    %333 = vector.broadcast %c0_i32_173 : i32 to vector<55x32xi32>
    %334 = arith.addi %332, %333 : vector<55x32xi32>
    %c8_i32_174 = arith.constant 8 : i32
    %c0_i32_175 = arith.constant 0 : i32
    %335 = arith.cmpi eq, %c8_i32_174, %c0_i32_175 : i32
    %c1_i32_176 = arith.constant 1 : i32
    %336 = arith.select %335, %c1_i32_176, %c8_i32_174 : i32
    %337 = vector.broadcast %336 : i32 to vector<55x32xi32>
    %338 = arith.remsi %334, %337 : vector<55x32xi32>
    %c0_i32_177 = arith.constant 0 : i32
    %339 = vector.broadcast %c0_i32_177 : i32 to vector<55x32xi32>
    %340 = arith.cmpi ne, %338, %339 : vector<55x32xi32>
    %c0_i32_178 = arith.constant 0 : i32
    %341 = vector.broadcast %c0_i32_178 : i32 to vector<55x32xi32>
    %342 = arith.cmpi slt, %338, %341 : vector<55x32xi32>
    %c0_i32_179 = arith.constant 0 : i32
    %343 = arith.cmpi slt, %336, %c0_i32_179 : i32
    %344 = vector.broadcast %343 : i1 to vector<55x32xi1>
    %345 = vector.broadcast %344 : vector<55x32xi1> to vector<55x32xi1>
    %346 = arith.xori %342, %345 : vector<55x32xi1>
    %347 = arith.andi %346, %340 : vector<55x32xi1>
    %348 = vector.broadcast %336 : i32 to vector<55x32xi32>
    %349 = arith.addi %338, %348 : vector<55x32xi32>
    %350 = arith.select %347, %349, %338 : vector<55x32xi1>, vector<55x32xi32>
    %c1_i32_180 = arith.constant 1 : i32
    %351 = vector.broadcast %c1_i32_180 : i32 to vector<55x32xi32>
    %352 = arith.addi %350, %351 : vector<55x32xi32>
    %c0_i32_181 = arith.constant 0 : i32
    %353 = vector.broadcast %c0_i32_181 : i32 to vector<55x32xi32>
    %354 = arith.cmpi sge, %352, %353 : vector<55x32xi32>
    %c1_i32_182 = arith.constant 1 : i32
    %355 = vector.broadcast %c1_i32_182 : i32 to vector<55x32xi32>
    %356 = arith.addi %350, %355 : vector<55x32xi32>
    %c8_i32_183 = arith.constant 8 : i32
    %357 = vector.broadcast %c8_i32_183 : i32 to vector<55x32xi32>
    %358 = arith.cmpi slt, %356, %357 : vector<55x32xi32>
    %359 = arith.andi %354, %358 : vector<55x32xi1>
    %cst_184 = arith.constant 0.000000e+00 : f32
    %360 = vector.broadcast %cst_184 : f32 to vector<55x32xf32>
    %361 = arith.select %359, %331, %360 : vector<55x32xi1>, vector<55x32xf32>
    %c0_185 = arith.constant 0 : index
    %c256_186 = arith.constant 256 : index
    %362 = vector.load %arg15[%c0_185, %c256_186] : memref<64x288xf32, #tpu.memory_space<vmem>>, vector<55x32xf32>
    tpu.vector_store %arg15[%c0_185, %c256_186], %361 {strides = array<i32>} : memref<64x288xf32, #tpu.memory_space<vmem>>, vector<55x32xf32>,
    %c0_187 = arith.constant 0 : index
    %c0_188 = arith.constant 0 : index
    %363 = vector.load %arg15[%c0_187, %c0_188] : memref<64x288xf32, #tpu.memory_space<vmem>>, vector<64x288xf32>
    %c0_189 = arith.constant 0 : index
    %c0_190 = arith.constant 0 : index
    %364 = vector.load %arg9[%c0_189, %c0_190] : memref<288x32xf32, #tpu.memory_space<vmem>>, vector<288x32xf32>
    %cst_191 = arith.constant dense<0.000000e+00> : vector<64x32xf32>
    %365 = tpu.matmul %363, %364, %cst_191 {dimension_numbers = #tpu.dot_dimension_numbers<[1], [0], [0], [1], [0, 0, 1, 1], [], []>} : vector<64x288xf32>, vector<288x32xf32>, vector<64x32xf32> -> vector<64x32xf32>
    %c0_192 = arith.constant 0 : index
    %c0_193 = arith.constant 0 : index
    %366 = vector.load %arg10[%c0_192, %c0_193] : memref<1x32xf32, #tpu.memory_space<vmem>>, vector<1x32xf32>
    %367 = vector.broadcast %366 : vector<1x32xf32> to vector<64x32xf32>
    %368 = arith.addf %365, %367 : vector<64x32xf32>
    %369 = arith.negf %368 : vector<64x32xf32>
    %370 = math.exp %369 : vector<64x32xf32>
    %cst_194 = arith.constant 1.000000e+00 : f32
    %371 = vector.broadcast %cst_194 : f32 to vector<64x32xf32>
    %372 = arith.addf %371, %370 : vector<64x32xf32>
    %373 = arith.divf %371, %372 : vector<64x32xf32>
    %374 = arith.mulf %368, %373 : vector<64x32xf32>
    %c0_195 = arith.constant 0 : index
    %c0_196 = arith.constant 0 : index
    %375 = vector.load %arg16[%c0_195, %c0_196] : memref<64x64xf32, #tpu.memory_space<vmem>>, vector<64x32xf32>
    tpu.vector_store %arg16[%c0_195, %c0_196], %374 {strides = array<i32>} : memref<64x64xf32, #tpu.memory_space<vmem>>, vector<64x32xf32>,
    %c0_197 = arith.constant 0 : index
    %c32_198 = arith.constant 32 : index
    %376 = vector.load %arg16[%c0_197, %c32_198] : memref<64x64xf32, #tpu.memory_space<vmem>>, vector<64x32xf32>
    tpu.vector_store %arg16[%c0_197, %c32_198], %149 {strides = array<i32>} : memref<64x64xf32, #tpu.memory_space<vmem>>, vector<64x32xf32>,
    %c0_199 = arith.constant 0 : index
    %c0_200 = arith.constant 0 : index
    %377 = vector.load %arg16[%c0_199, %c0_200] : memref<64x64xf32, #tpu.memory_space<vmem>>, vector<64x64xf32>
    %c0_201 = arith.constant 0 : index
    %c0_202 = arith.constant 0 : index
    %378 = vector.load %arg11[%c0_201, %c0_202] : memref<64x32xf32, #tpu.memory_space<vmem>>, vector<64x32xf32>
    %cst_203 = arith.constant dense<0.000000e+00> : vector<64x32xf32>
    %379 = tpu.matmul %377, %378, %cst_203 {dimension_numbers = #tpu.dot_dimension_numbers<[1], [0], [0], [1], [0, 0, 1, 1], [], []>} : vector<64x64xf32>, vector<64x32xf32>, vector<64x32xf32> -> vector<64x32xf32>
    %c0_204 = arith.constant 0 : index
    %c0_205 = arith.constant 0 : index
    %380 = vector.load %arg12[%c0_204, %c0_205] : memref<1x32xf32, #tpu.memory_space<vmem>>, vector<1x32xf32>
    %381 = vector.broadcast %380 : vector<1x32xf32> to vector<64x32xf32>
    %382 = arith.addf %379, %381 : vector<64x32xf32>
    %c0_206 = arith.constant 0 : index
    %c0_207 = arith.constant 0 : index
    %c0_208 = arith.constant 0 : index
    %383 = vector.load %arg13[%c0_206, %c0_207, %c0_208] : memref<1x64x32xf32, #tpu.memory_space<vmem>>, vector<1x64x32xf32>
    %384 = vector.shape_cast %383 : vector<1x64x32xf32> to vector<64x32xf32>
    %385 = vector.shape_cast %382 : vector<64x32xf32> to vector<1x64x32xf32>
    tpu.vector_store %arg13[%c0_206, %c0_207, %c0_208], %385 {strides = array<i32>} : memref<1x64x32xf32, #tpu.memory_space<vmem>>, vector<1x64x32xf32>,
    return
  }
  func.func @transform_0(%arg0: i32) -> (i32, i32, i32) {
    %c0_i32 = arith.constant 0 : i32
    %c0_i32_0 = arith.constant 0 : i32
    %c0_i32_1 = arith.constant 0 : i32
    return %arg0, %c0_i32, %c0_i32_0 : i32, i32, i32
  }
  func.func @transform_1(%arg0: i32) -> (i32, i32, i32) {
    %c0_i32 = arith.constant 0 : i32
    %c0_i32_0 = arith.constant 0 : i32
    %c0_i32_1 = arith.constant 0 : i32
    return %arg0, %c0_i32, %c0_i32_0 : i32, i32, i32
  }
  func.func @transform_2(%arg0: i32) -> (i32, i32, i32) {
    %c0_i32 = arith.constant 0 : i32
    %c0_i32_0 = arith.constant 0 : i32
    %c0_i32_1 = arith.constant 0 : i32
    return %arg0, %c0_i32, %c0_i32_0 : i32, i32, i32
  }
  func.func @transform_3(%arg0: i32) -> (i32, i32, i32) {
    %c0_i32 = arith.constant 0 : i32
    %c0_i32_0 = arith.constant 0 : i32
    %c0_i32_1 = arith.constant 0 : i32
    return %arg0, %c0_i32, %c0_i32_0 : i32, i32, i32
  }
  func.func @transform_4(%arg0: i32) -> (i32, i32) {
    %c0_i32 = arith.constant 0 : i32
    %c0_i32_0 = arith.constant 0 : i32
    %c0_i32_1 = arith.constant 0 : i32
    return %c0_i32, %c0_i32_0 : i32, i32
  }
  func.func @transform_5(%arg0: i32) -> (i32, i32) {
    %c0_i32 = arith.constant 0 : i32
    %c0_i32_0 = arith.constant 0 : i32
    %c0_i32_1 = arith.constant 0 : i32
    return %c0_i32, %c0_i32_0 : i32, i32
  }
  func.func @transform_6(%arg0: i32) -> (i32, i32) {
    %c0_i32 = arith.constant 0 : i32
    %c0_i32_0 = arith.constant 0 : i32
    %c0_i32_1 = arith.constant 0 : i32
    return %c0_i32, %c0_i32_0 : i32, i32
  }
  func.func @transform_7(%arg0: i32) -> (i32, i32) {
    %c0_i32 = arith.constant 0 : i32
    %c0_i32_0 = arith.constant 0 : i32
    %c0_i32_1 = arith.constant 0 : i32
    return %c0_i32, %c0_i32_0 : i32, i32
  }
  func.func @transform_8(%arg0: i32) -> (i32, i32) {
    %c0_i32 = arith.constant 0 : i32
    %c0_i32_0 = arith.constant 0 : i32
    %c0_i32_1 = arith.constant 0 : i32
    return %c0_i32, %c0_i32_0 : i32, i32
  }
  func.func @transform_9(%arg0: i32) -> (i32, i32) {
    %c0_i32 = arith.constant 0 : i32
    %c0_i32_0 = arith.constant 0 : i32
    %c0_i32_1 = arith.constant 0 : i32
    return %c0_i32, %c0_i32_0 : i32, i32
  }
  func.func @transform_10(%arg0: i32) -> (i32, i32) {
    %c0_i32 = arith.constant 0 : i32
    %c0_i32_0 = arith.constant 0 : i32
    %c0_i32_1 = arith.constant 0 : i32
    return %c0_i32, %c0_i32_0 : i32, i32
  }
  func.func @transform_11(%arg0: i32) -> (i32, i32) {
    %c0_i32 = arith.constant 0 : i32
    %c0_i32_0 = arith.constant 0 : i32
    %c0_i32_1 = arith.constant 0 : i32
    return %c0_i32, %c0_i32_0 : i32, i32
  }
  func.func @transform_12(%arg0: i32) -> (i32, i32, i32) {
    %c0_i32 = arith.constant 0 : i32
    %c0_i32_0 = arith.constant 0 : i32
    %c0_i32_1 = arith.constant 0 : i32
    return %arg0, %c0_i32, %c0_i32_0 : i32, i32, i32
  }
}

</mosaic_0001>

<llo_original>
// kernel: tpu_custom_call.1
$region0: #{tpu_custom_call.1}
  #allocation0 [shape = 'u32[]', space=smem, size = 0x4, offset = 0x4, fixed_abs, tag = 'smem constant byte address 0x4 - core index']
  #allocation1 [shape = 'u32[144,128]{1,0:T(1,128)}', space=vmem, size = 0x12000, scoped, tag = 'internal scratch']
  #allocation2 [shape = 'f32[64,288]{1,0:T(8,128)}', space=vmem, size = 0x18000, scoped, tag = 'scratch operand']
  #allocation3 [shape = 'f32[64,288]{1,0:T(8,128)}', space=vmem, size = 0x18000, scoped, tag = 'scratch operand']
  #allocation4 [shape = 'f32[64,64]{1,0:T(8,128)}', space=vmem, size = 0x8000, scoped, tag = 'scratch operand']
  %s0 = inlined_call_operand.vmem [shape: f32[2,64,32], index: 0, kind: input, shape index: {}]
  %s1 = inlined_call_operand.vmem [shape: f32[2,64,32], index: 1, kind: input, shape index: {}]
  %s2 = inlined_call_operand.vmem [shape: f32[2,64,32], index: 2, kind: input, shape index: {}]
  %s3 = inlined_call_operand.vmem [shape: f32[2,64,32], index: 3, kind: input, shape index: {}]
  %s4 = inlined_call_operand.vmem [shape: f32[288,32], index: 4, kind: input, shape index: {}]
  %s5 = inlined_call_operand.vmem [shape: f32[1,32], index: 5, kind: input, shape index: {}]
  %s6 = inlined_call_operand.vmem [shape: f32[1,32], index: 6, kind: input, shape index: {}]
  %s7 = inlined_call_operand.vmem [shape: f32[1,32], index: 7, kind: input, shape index: {}]
  %s8 = inlined_call_operand.vmem [shape: f32[288,32], index: 8, kind: input, shape index: {}]
  %s9 = inlined_call_operand.vmem [shape: f32[1,32], index: 9, kind: input, shape index: {}]
  %s10 = inlined_call_operand.vmem [shape: f32[64,32], index: 10, kind: input, shape index: {}]
  %s11 = inlined_call_operand.vmem [shape: f32[1,32], index: 11, kind: input, shape index: {}]
  %s12 = inlined_call_operand.vmem [shape: f32[2,64,32], index: 12, kind: output, shape index: {}]
  %s13 = sld [smem:[#allocation0]]
  $region81: #{tpu_custom_call.1} parent=0
    _
  %s15 = ssub.s32 1, %s13
  %s16 = scalar_select 0, %s15, %s13
  loop: start=0, step=1, limit=4
  $region2: #{tpu_custom_call.1} parent=0 // loop_pre_header
    _
  $region3: #{tpu_custom_call.1} parent=0 // loop_header
    %s18 = sphi 0, %s22
    %p19 = scmp.ge.s32.totalorder %s18, 4
    %s28 = sphi 0, %s30
    %s31 = sphi 0, %s28
    %s32 = sphi 0, %s31
    %s48 = sphi 0, %s32
    %s54 = sphi 0, %s56
    %s57 = sphi 0, %s54
    %s58 = sphi 0, %s57
    %s74 = sphi 0, %s58
    %s80 = sphi 0, %s82
    %s83 = sphi 0, %s80
    %s84 = sphi 0, %s83
    %s100 = sphi 0, %s84
    %s106 = sphi 0, %s108
    %s109 = sphi 0, %s106
    %s110 = sphi 0, %s109
    %s126 = sphi 0, %s110
    %s130 = sphi 0, %s130
    %s132 = sphi 0, %s130
    %s133 = sphi 0, %s132
    %s147 = sphi 0, %s133
    %s151 = sphi 0, %s151
    %s153 = sphi 0, %s151
    %s154 = sphi 0, %s153
    %s168 = sphi 0, %s154
    %s172 = sphi 0, %s172
    %s174 = sphi 0, %s172
    %s175 = sphi 0, %s174
    %s189 = sphi 0, %s175
    %s193 = sphi 0, %s193
    %s195 = sphi 0, %s193
    %s196 = sphi 0, %s195
    %s210 = sphi 0, %s196
    %s214 = sphi 0, %s214
    %s216 = sphi 0, %s214
    %s217 = sphi 0, %s216
    %s231 = sphi 0, %s217
    %s235 = sphi 0, %s235
    %s237 = sphi 0, %s235
    %s238 = sphi 0, %s237
    %s252 = sphi 0, %s238
    %s256 = sphi 0, %s256
    %s258 = sphi 0, %s256
    %s259 = sphi 0, %s258
    %s273 = sphi 0, %s259
    %s277 = sphi 0, %s277
    %s279 = sphi 0, %s277
    %s280 = sphi 0, %s279
    %s294 = sphi 0, %s280
    %s300 = sphi 0, %s302
    %s303 = sphi 0, %s300
    %s304 = sphi 0, %s303
    %s320 = sphi 0, %s304
  $region4: #{tpu_custom_call.1} parent=0 // loop_header_branch
    %21 = sbr.rel (%p19) target = $region8
  $region5: #{tpu_custom_call.1} parent=0 // loop_body
    %s23 = ssub.s32 %s18, 1
    %s24 = ssub.s32 %s18, 2
    %s25 = sadd.s32 %s18, 1
    %s26 = ssub.s32 %s18, %s25
    %p27 = scmp.eq.s32.totalorder %s26, 0
    %s29 = sadd.s32 %s28, 1
    %s30 = scalar_select %p27, %s28, %s29
    %p33 = pneg %p27
    %p34 = scmp.eq.s32.totalorder %s18, 1
    %p35 = por %p33, %p34
    %p36 = scmp.ne.s32.totalorder %s28, %s31
    %p37 = scmp.eq.s32.totalorder %s18, 0
    %p38 = por %p36, %p37
    %p39 = scmp.ne.s32.totalorder %s28, %s31
    %p40 = scmp.eq.s32.totalorder %s23, 1
    %p41 = por %p39, %p40
    %p42 = scmp.ne.s32.totalorder %s31, %s32
    %p43 = scmp.eq.s32.totalorder %s23, 0
    %p44 = por %p42, %p43
    %p45 = scmp.ne.s32.totalorder %s31, %s32
    %p46 = scmp.eq.s32.totalorder %s24, 1
    %p47 = por %p45, %p46
    %p49 = scmp.ne.s32.totalorder %s32, %s48
    %p50 = scmp.eq.s32.totalorder %s24, 0
    %p51 = por %p49, %p50
    %s52 = ssub.s32 %s18, %s25
    %p53 = scmp.eq.s32.totalorder %s52, 0
    %s55 = sadd.s32 %s54, 1
    %s56 = scalar_select %p53, %s54, %s55
    %p59 = pneg %p53
    %p60 = scmp.eq.s32.totalorder %s18, 1
    %p61 = por %p59, %p60
    %p62 = scmp.ne.s32.totalorder %s54, %s57
    %p63 = scmp.eq.s32.totalorder %s18, 0
    %p64 = por %p62, %p63
    %p65 = scmp.ne.s32.totalorder %s54, %s57
    %p66 = scmp.eq.s32.totalorder %s23, 1
    %p67 = por %p65, %p66
    %p68 = scmp.ne.s32.totalorder %s57, %s58
    %p69 = scmp.eq.s32.totalorder %s23, 0
    %p70 = por %p68, %p69
    %p71 = scmp.ne.s32.totalorder %s57, %s58
    %p72 = scmp.eq.s32.totalorder %s24, 1
    %p73 = por %p71, %p72
    %p75 = scmp.ne.s32.totalorder %s58, %s74
    %p76 = scmp.eq.s32.totalorder %s24, 0
    %p77 = por %p75, %p76
    %s78 = ssub.s32 %s18, %s25
    %p79 = scmp.eq.s32.totalorder %s78, 0
    %s81 = sadd.s32 %s80, 1
    %s82 = scalar_select %p79, %s80, %s81
    %p85 = pneg %p79
    %p86 = scmp.eq.s32.totalorder %s18, 1
    %p87 = por %p85, %p86
    %p88 = scmp.ne.s32.totalorder %s80, %s83
    %p89 = scmp.eq.s32.totalorder %s18, 0
    %p90 = por %p88, %p89
    %p91 = scmp.ne.s32.totalorder %s80, %s83
    %p92 = scmp.eq.s32.totalorder %s23, 1
    %p93 = por %p91, %p92
    %p94 = scmp.ne.s32.totalorder %s83, %s84
    %p95 = scmp.eq.s32.totalorder %s23, 0
    %p96 = por %p94, %p95
    %p97 = scmp.ne.s32.totalorder %s83, %s84
    %p98 = scmp.eq.s32.totalorder %s24, 1
    %p99 = por %p97, %p98
    %p101 = scmp.ne.s32.totalorder %s84, %s100
    %p102 = scmp.eq.s32.totalorder %s24, 0
    %p103 = por %p101, %p102
    %s104 = ssub.s32 %s18, %s25
    %p105 = scmp.eq.s32.totalorder %s104, 0
    %s107 = sadd.s32 %s106, 1
    %s108 = scalar_select %p105, %s106, %s107
    %p111 = pneg %p105
    %p112 = scmp.eq.s32.totalorder %s18, 1
    %p113 = por %p111, %p112
    %p114 = scmp.ne.s32.totalorder %s106, %s109
    %p115 = scmp.eq.s32.totalorder %s18, 0
    %p116 = por %p114, %p115
    %p117 = scmp.ne.s32.totalorder %s106, %s109
    %p118 = scmp.eq.s32.totalorder %s23, 1
    %p119 = por %p117, %p118
    %p120 = scmp.ne.s32.totalorder %s109, %s110
    %p121 = scmp.eq.s32.totalorder %s23, 0
    %p122 = por %p120, %p121
    %p123 = scmp.ne.s32.totalorder %s109, %s110
    %p124 = scmp.eq.s32.totalorder %s24, 1
    %p125 = por %p123, %p124
    %p127 = scmp.ne.s32.totalorder %s110, %s126
    %p128 = scmp.eq.s32.totalorder %s24, 0
    %p129 = por %p127, %p128
    %s131 = sadd.s32 %s130, 1
    %p134 = scmp.eq.s32.totalorder %s18, 1
    %p135 = scmp.ne.s32.totalorder %s130, %s132
    %p136 = scmp.eq.s32.totalorder %s18, 0
    %p137 = por %p135, %p136
    %p138 = scmp.ne.s32.totalorder %s130, %s132
    %p139 = scmp.eq.s32.totalorder %s23, 1
    %p140 = por %p138, %p139
    %p141 = scmp.ne.s32.totalorder %s132, %s133
    %p142 = scmp.eq.s32.totalorder %s23, 0
    %p143 = por %p141, %p142
    %p144 = scmp.ne.s32.totalorder %s132, %s133
    %p145 = scmp.eq.s32.totalorder %s24, 1
    %p146 = por %p144, %p145
    %p148 = scmp.ne.s32.totalorder %s133, %s147
    %p149 = scmp.eq.s32.totalorder %s24, 0
    %p150 = por %p148, %p149
    %s152 = sadd.s32 %s151, 1
    %p155 = scmp.eq.s32.totalorder %s18, 1
    %p156 = scmp.ne.s32.totalorder %s151, %s153
    %p157 = scmp.eq.s32.totalorder %s18, 0
    %p158 = por %p156, %p157
    %p159 = scmp.ne.s32.totalorder %s151, %s153
    %p160 = scmp.eq.s32.totalorder %s23, 1
    %p161 = por %p159, %p160
    %p162 = scmp.ne.s32.totalorder %s153, %s154
    %p163 = scmp.eq.s32.totalorder %s23, 0
    %p164 = por %p162, %p163
    %p165 = scmp.ne.s32.totalorder %s153, %s154
    %p166 = scmp.eq.s32.totalorder %s24, 1
    %p167 = por %p165, %p166
    %p169 = scmp.ne.s32.totalorder %s154, %s168
    %p170 = scmp.eq.s32.totalorder %s24, 0
    %p171 = por %p169, %p170
    %s173 = sadd.s32 %s172, 1
    %p176 = scmp.eq.s32.totalorder %s18, 1
    %p177 = scmp.ne.s32.totalorder %s172, %s174
    %p178 = scmp.eq.s32.totalorder %s18, 0
    %p179 = por %p177, %p178
    %p180 = scmp.ne.s32.totalorder %s172, %s174
    %p181 = scmp.eq.s32.totalorder %s23, 1
    %p182 = por %p180, %p181
    %p183 = scmp.ne.s32.totalorder %s174, %s175
    %p184 = scmp.eq.s32.totalorder %s23, 0
    %p185 = por %p183, %p184
    %p186 = scmp.ne.s32.totalorder %s174, %s175
    %p187 = scmp.eq.s32.totalorder %s24, 1
    %p188 = por %p186, %p187
    %p190 = scmp.ne.s32.totalorder %s175, %s189
    %p191 = scmp.eq.s32.totalorder %s24, 0
    %p192 = por %p190, %p191
    %s194 = sadd.s32 %s193, 1
    %p197 = scmp.eq.s32.totalorder %s18, 1
    %p198 = scmp.ne.s32.totalorder %s193, %s195
    %p199 = scmp.eq.s32.totalorder %s18, 0
    %p200 = por %p198, %p199
    %p201 = scmp.ne.s32.totalorder %s193, %s195
    %p202 = scmp.eq.s32.totalorder %s23, 1
    %p203 = por %p201, %p202
    %p204 = scmp.ne.s32.totalorder %s195, %s196
    %p205 = scmp.eq.s32.totalorder %s23, 0
    %p206 = por %p204, %p205
    %p207 = scmp.ne.s32.totalorder %s195, %s196
    %p208 = scmp.eq.s32.totalorder %s24, 1
    %p209 = por %p207, %p208
    %p211 = scmp.ne.s32.totalorder %s196, %s210
    %p212 = scmp.eq.s32.totalorder %s24, 0
    %p213 = por %p211, %p212
    %s215 = sadd.s32 %s214, 1
    %p218 = scmp.eq.s32.totalorder %s18, 1
    %p219 = scmp.ne.s32.totalorder %s214, %s216
    %p220 = scmp.eq.s32.totalorder %s18, 0
    %p221 = por %p219, %p220
    %p222 = scmp.ne.s32.totalorder %s214, %s216
    %p223 = scmp.eq.s32.totalorder %s23, 1
    %p224 = por %p222, %p223
    %p225 = scmp.ne.s32.totalorder %s216, %s217
    %p226 = scmp.eq.s32.totalorder %s23, 0
    %p227 = por %p225, %p226
    %p228 = scmp.ne.s32.totalorder %s216, %s217
    %p229 = scmp.eq.s32.totalorder %s24, 1
    %p230 = por %p228, %p229
    %p232 = scmp.ne.s32.totalorder %s217, %s231
    %p233 = scmp.eq.s32.totalorder %s24, 0
    %p234 = por %p232, %p233
    %s236 = sadd.s32 %s235, 1
    %p239 = scmp.eq.s32.totalorder %s18, 1
    %p240 = scmp.ne.s32.totalorder %s235, %s237
    %p241 = scmp.eq.s32.totalorder %s18, 0
    %p242 = por %p240, %p241
    %p243 = scmp.ne.s32.totalorder %s235, %s237
    %p244 = scmp.eq.s32.totalorder %s23, 1
    %p245 = por %p243, %p244
    %p246 = scmp.ne.s32.totalorder %s237, %s238
    %p247 = scmp.eq.s32.totalorder %s23, 0
    %p248 = por %p246, %p247
    %p249 = scmp.ne.s32.totalorder %s237, %s238
    %p250 = scmp.eq.s32.totalorder %s24, 1
    %p251 = por %p249, %p250
    %p253 = scmp.ne.s32.totalorder %s238, %s252
    %p254 = scmp.eq.s32.totalorder %s24, 0
    %p255 = por %p253, %p254
    %s257 = sadd.s32 %s256, 1
    %p260 = scmp.eq.s32.totalorder %s18, 1
    %p261 = scmp.ne.s32.totalorder %s256, %s258
    %p262 = scmp.eq.s32.totalorder %s18, 0
    %p263 = por %p261, %p262
    %p264 = scmp.ne.s32.totalorder %s256, %s258
    %p265 = scmp.eq.s32.totalorder %s23, 1
    %p266 = por %p264, %p265
    %p267 = scmp.ne.s32.totalorder %s258, %s259
    %p268 = scmp.eq.s32.totalorder %s23, 0
    %p269 = por %p267, %p268
    %p270 = scmp.ne.s32.totalorder %s258, %s259
    %p271 = scmp.eq.s32.totalorder %s24, 1
    %p272 = por %p270, %p271
    %p274 = scmp.ne.s32.totalorder %s259, %s273
    %p275 = scmp.eq.s32.totalorder %s24, 0
    %p276 = por %p274, %p275
    %s278 = sadd.s32 %s277, 1
    %p281 = scmp.eq.s32.totalorder %s18, 1
    %p282 = scmp.ne.s32.totalorder %s277, %s279
    %p283 = scmp.eq.s32.totalorder %s18, 0
    %p284 = por %p282, %p283
    %p285 = scmp.ne.s32.totalorder %s277, %s279
    %p286 = scmp.eq.s32.totalorder %s23, 1
    %p287 = por %p285, %p286
    %p288 = scmp.ne.s32.totalorder %s279, %s280
    %p289 = scmp.eq.s32.totalorder %s23, 0
    %p290 = por %p288, %p289
    %p291 = scmp.ne.s32.totalorder %s279, %s280
    %p292 = scmp.eq.s32.totalorder %s24, 1
    %p293 = por %p291, %p292
    %p295 = scmp.ne.s32.totalorder %s280, %s294
    %p296 = scmp.eq.s32.totalorder %s24, 0
    %p297 = por %p295, %p296
    %s298 = ssub.s32 %s18, %s25
    %p299 = scmp.eq.s32.totalorder %s298, 0
    %s301 = sadd.s32 %s300, 1
    %s302 = scalar_select %p299, %s300, %s301
    %p305 = pneg %p299
    %p306 = scmp.eq.s32.totalorder %s18, 1
    %p307 = por %p305, %p306
    %p308 = scmp.ne.s32.totalorder %s300, %s303
    %p309 = scmp.eq.s32.totalorder %s18, 0
    %p310 = por %p308, %p309
    %p311 = scmp.ne.s32.totalorder %s300, %s303
    %p312 = scmp.eq.s32.totalorder %s23, 1
    %p313 = por %p311, %p312
    %p314 = scmp.ne.s32.totalorder %s303, %s304
    %p315 = scmp.eq.s32.totalorder %s23, 0
    %p316 = por %p314, %p315
    %p317 = scmp.ne.s32.totalorder %s303, %s304
    %p318 = scmp.eq.s32.totalorder %s24, 1
    %p319 = por %p317, %p318
    %p321 = scmp.ne.s32.totalorder %s304, %s320
    %p322 = scmp.eq.s32.totalorder %s24, 0
    %p323 = por %p321, %p322
    %p324 = scmp.le.s32.totalorder 1, %s18
    %p325 = scmp.lt.s32.totalorder %s18, 3
    %p326 = pnand %p324, %p325
    %p327 = pneg %p326
    // Predicated region
    $region9: #{tpu_custom_call.1} parent=5 // pred_check
      _
    $region10: #{tpu_custom_call.1} parent=5 // pred_check_branch
      %329 = sbr.rel (%p326) target = $region12
    $region11: #{tpu_custom_call.1} parent=5 // pred_region
      %s330 = ssub.s32 %s18, 1
      // Predicated region
      $region13: #{tpu_custom_call.1} parent=11 // pred_check
        %p331 = pneg %p143
      $region14: #{tpu_custom_call.1} parent=11 // pred_check_branch
        %333 = sbr.rel (%p331) target = $region16
      $region15: #{tpu_custom_call.1} parent=11 // pred_region
        _
      $region16: #{tpu_custom_call.1} parent=11 // pred_fallthru
        _
      // Predicated region
      $region17: #{tpu_custom_call.1} parent=11 // pred_check
        %p334 = pneg %p164
      $region18: #{tpu_custom_call.1} parent=11 // pred_check_branch
        %336 = sbr.rel (%p334) target = $region20
      $region19: #{tpu_custom_call.1} parent=11 // pred_region
        _
      $region20: #{tpu_custom_call.1} parent=11 // pred_fallthru
        _
      // Predicated region
      $region21: #{tpu_custom_call.1} parent=11 // pred_check
        %p337 = pneg %p185
      $region22: #{tpu_custom_call.1} parent=11 // pred_check_branch
        %339 = sbr.rel (%p337) target = $region24
      $region23: #{tpu_custom_call.1} parent=11 // pred_region
        _
      $region24: #{tpu_custom_call.1} parent=11 // pred_fallthru
        _
      // Predicated region
      $region25: #{tpu_custom_call.1} parent=11 // pred_check
        %p340 = pneg %p206
      $region26: #{tpu_custom_call.1} parent=11 // pred_check_branch
        %342 = sbr.rel (%p340) target = $region28
      $region27: #{tpu_custom_call.1} parent=11 // pred_region
        _
      $region28: #{tpu_custom_call.1} parent=11 // pred_fallthru
        _
      // Predicated region
      $region29: #{tpu_custom_call.1} parent=11 // pred_check
        %p343 = pneg %p227
      $region30: #{tpu_custom_call.1} parent=11 // pred_check_branch
        %345 = sbr.rel (%p343) target = $region32
      $region31: #{tpu_custom_call.1} parent=11 // pred_region
        _
      $region32: #{tpu_custom_call.1} parent=11 // pred_fallthru
        _
      // Predicated region
      $region33: #{tpu_custom_call.1} parent=11 // pred_check
        %p346 = pneg %p248
      $region34: #{tpu_custom_call.1} parent=11 // pred_check_branch
        %348 = sbr.rel (%p346) target = $region36
      $region35: #{tpu_custom_call.1} parent=11 // pred_region
        _
      $region36: #{tpu_custom_call.1} parent=11 // pred_fallthru
        _
      // Predicated region
      $region37: #{tpu_custom_call.1} parent=11 // pred_check
        %p349 = pneg %p269
      $region38: #{tpu_custom_call.1} parent=11 // pred_check_branch
        %351 = sbr.rel (%p349) target = $region40
      $region39: #{tpu_custom_call.1} parent=11 // pred_region
        _
      $region40: #{tpu_custom_call.1} parent=11 // pred_fallthru
        _
      // Predicated region
      $region41: #{tpu_custom_call.1} parent=11 // pred_check
        %p352 = pneg %p290
      $region42: #{tpu_custom_call.1} parent=11 // pred_check_branch
        %354 = sbr.rel (%p352) target = $region44
      $region43: #{tpu_custom_call.1} parent=11 // pred_region
        _
      $region44: #{tpu_custom_call.1} parent=11 // pred_fallthru
        _
    $region12: #{tpu_custom_call.1} parent=5 // pred_fallthru
      _
    %p355 = scmp.lt.s32.totalorder %s18, 2
    // Predicated region
    $region45: #{tpu_custom_call.1} parent=5 // pred_check
      %p356 = pneg %p355
    $region46: #{tpu_custom_call.1} parent=5 // pred_check_branch
      %358 = sbr.rel (%p356) target = $region48
    $region47: #{tpu_custom_call.1} parent=5 // pred_region
      // Predicated region
      $region49: #{tpu_custom_call.1} parent=47 // pred_check
        %p359 = pneg %p38
      $region50: #{tpu_custom_call.1} parent=47 // pred_check_branch
        %361 = sbr.rel (%p359) target = $region52
      $region51: #{tpu_custom_call.1} parent=47 // pred_region
        %p362 = scmp.lt.s32.totalorder %s18, 1
        %s363 = scalar_select %p362, %s18, 1
        %s364 = smul.addr %s363, 8
        %s365 = smul.addr %s364, 8
        %s366 = scalar_lea.vmem %s0, %s365
      $region52: #{tpu_custom_call.1} parent=47 // pred_fallthru
        _
      // Predicated region
      $region53: #{tpu_custom_call.1} parent=47 // pred_check
        %p367 = pneg %p64
      $region54: #{tpu_custom_call.1} parent=47 // pred_check_branch
        %369 = sbr.rel (%p367) target = $region56
      $region55: #{tpu_custom_call.1} parent=47 // pred_region
        %p370 = scmp.lt.s32.totalorder %s18, 1
        %s371 = scalar_select %p370, %s18, 1
        %s372 = smul.addr %s371, 8
        %s373 = smul.addr %s372, 8
        %s374 = scalar_lea.vmem %s1, %s373
      $region56: #{tpu_custom_call.1} parent=47 // pred_fallthru
        _
      // Predicated region
      $region57: #{tpu_custom_call.1} parent=47 // pred_check
        %p375 = pneg %p90
      $region58: #{tpu_custom_call.1} parent=47 // pred_check_branch
        %377 = sbr.rel (%p375) target = $region60
      $region59: #{tpu_custom_call.1} parent=47 // pred_region
        %p378 = scmp.lt.s32.totalorder %s18, 1
        %s379 = scalar_select %p378, %s18, 1
        %s380 = smul.addr %s379, 8
        %s381 = smul.addr %s380, 8
        %s382 = scalar_lea.vmem %s2, %s381
      $region60: #{tpu_custom_call.1} parent=47 // pred_fallthru
        _
      // Predicated region
      $region61: #{tpu_custom_call.1} parent=47 // pred_check
        %p383 = pneg %p116
      $region62: #{tpu_custom_call.1} parent=47 // pred_check_branch
        %385 = sbr.rel (%p383) target = $region64
      $region63: #{tpu_custom_call.1} parent=47 // pred_region
        %p386 = scmp.lt.s32.totalorder %s18, 1
        %s387 = scalar_select %p386, %s18, 1
        %s388 = smul.addr %s387, 8
        %s389 = smul.addr %s388, 8
        %s390 = scalar_lea.vmem %s3, %s389
      $region64: #{tpu_custom_call.1} parent=47 // pred_fallthru
        _
    $region48: #{tpu_custom_call.1} parent=5 // pred_fallthru
      _
    %p391 = scmp.le.s32.totalorder 1, %s18
    %p392 = scmp.lt.s32.totalorder %s18, 3
    %p393 = pnand %p391, %p392
    %p394 = pneg %p393
    // Predicated region
    $region65: #{tpu_custom_call.1} parent=5 // pred_check
      _
    $region66: #{tpu_custom_call.1} parent=5 // pred_check_branch
      %396 = sbr.rel (%p393) target = $region68
    $region67: #{tpu_custom_call.1} parent=5 // pred_region
      %s397 = ssub.s32 %s18, 1
      %p398 = scmp.lt.s32.totalorder %s23, 1
      %s399 = scalar_select %p398, %s23, 1
      %s400 = smul.addr %s399, 8
      %s401 = smul.addr %s400, 8
      %s402 = scalar_lea.vmem %s0, %s401
      %p403 = pneg %p44
      %p404 = pneg %p41
      %p405 = scmp.lt.s32.totalorder %s23, 1
      %s406 = scalar_select %p405, %s23, 1
      %s407 = smul.addr %s406, 8
      %s408 = smul.addr %s407, 8
      %s409 = scalar_lea.vmem %s1, %s408
      %p410 = pneg %p70
      %p411 = pneg %p67
      %p412 = scmp.lt.s32.totalorder %s23, 1
      %s413 = scalar_select %p412, %s23, 1
      %s414 = smul.addr %s413, 8
      %s415 = smul.addr %s414, 8
      %s416 = scalar_lea.vmem %s2, %s415
      %p417 = pneg %p96
      %p418 = pneg %p93
      %p419 = scmp.lt.s32.totalorder %s23, 1
      %s420 = scalar_select %p419, %s23, 1
      %s421 = smul.addr %s420, 8
      %s422 = smul.addr %s421, 8
      %s423 = scalar_lea.vmem %s3, %s422
      %p424 = pneg %p122
      %p425 = pneg %p119
      %p426 = pneg %p143
      %p427 = pneg %p140
      %p428 = pneg %p164
      %p429 = pneg %p161
      %p430 = pneg %p185
      %p431 = pneg %p182
      %p432 = pneg %p206
      %p433 = pneg %p203
      %p434 = pneg %p227
      %p435 = pneg %p224
      %p436 = pneg %p248
      %p437 = pneg %p245
      %p438 = pneg %p269
      %p439 = pneg %p266
      %p440 = pneg %p290
      %p441 = pneg %p287
      %p442 = pneg %p316
      %p443 = pneg %p313
      %p444 = scmp.lt.s32.totalorder %s23, 1
      %s445 = scalar_select %p444, %s23, 1
      %s446 = smul.addr %s445, 8
      %s447 = smul.addr %s446, 8
      %s448 = scalar_lea.vmem %s12, %s447
      %p449 = scmp.lt.s32.totalorder %s23, 1
      %s450 = scalar_select %p449, %s23, 1
      %s451 = smul.addr %s450, 8
      %s452 = smul.addr %s451, 8
      %s453 = scalar_lea.vmem %s0, %s452
      %p454 = scmp.lt.s32.totalorder %s23, 1
      %s455 = scalar_select %p454, %s23, 1
      %s456 = smul.addr %s455, 8
      %s457 = smul.addr %s456, 8
      %s458 = scalar_lea.vmem %s1, %s457
      %p459 = scmp.lt.s32.totalorder %s23, 1
      %s460 = scalar_select %p459, %s23, 1
      %s461 = smul.addr %s460, 8
      %s462 = smul.addr %s461, 8
      %s463 = scalar_lea.vmem %s2, %s462
      %p464 = scmp.lt.s32.totalorder %s23, 1
      %s465 = scalar_select %p464, %s23, 1
      %s466 = smul.addr %s465, 8
      %s467 = smul.addr %s466, 8
      %s468 = scalar_lea.vmem %s3, %s467
      %p469 = scmp.lt.s32.totalorder %s23, 1
      %s470 = scalar_select %p469, %s23, 1
      %s471 = smul.addr %s470, 8
      %s472 = smul.addr %s471, 8
      %s473 = scalar_lea.vmem %s12, %s472
      %v474 = vld [vmem:[%s453] sm:$0xff]
      %v475 = vld [vmem:[%s453 + $0x8] sm:$0xff]
      %v476 = vld [vmem:[%s453 + $0x10] sm:$0xff]
      %v477 = vld [vmem:[%s453 + $0x18] sm:$0xff]
      %v478 = vld [vmem:[%s453 + $0x20] sm:$0xff]
      %v479 = vld [vmem:[%s453 + $0x28] sm:$0xff]
      %v480 = vld [vmem:[%s453 + $0x30] sm:$0xff]
      %v481 = vld [vmem:[%s453 + $0x38] sm:$0xff]
      %v482 = vld [vmem:[%s458] sm:$0xff]
      %v483 = vld [vmem:[%s458 + $0x8] sm:$0xff]
      %v484 = vld [vmem:[%s458 + $0x10] sm:$0xff]
      %v485 = vld [vmem:[%s458 + $0x18] sm:$0xff]
      %v486 = vld [vmem:[%s458 + $0x20] sm:$0xff]
      %v487 = vld [vmem:[%s458 + $0x28] sm:$0xff]
      %v488 = vld [vmem:[%s458 + $0x30] sm:$0xff]
      %v489 = vld [vmem:[%s458 + $0x38] sm:$0xff]
      %v490 = vld [vmem:[%s463] sm:$0xff]
      %v491 = vld [vmem:[%s463 + $0x8] sm:$0xff]
      %v492 = vld [vmem:[%s463 + $0x10] sm:$0xff]
      %v493 = vld [vmem:[%s463 + $0x18] sm:$0xff]
      %v494 = vld [vmem:[%s463 + $0x20] sm:$0xff]
      %v495 = vld [vmem:[%s463 + $0x28] sm:$0xff]
      %v496 = vld [vmem:[%s463 + $0x30] sm:$0xff]
      %v497 = vld [vmem:[%s463 + $0x38] sm:$0xff]
      %v498 = vld [vmem:[%s468] sm:$0xff]
      %v499 = vld [vmem:[%s468 + $0x8] sm:$0xff]
      %v500 = vld [vmem:[%s468 + $0x10] sm:$0xff]
      %v501 = vld [vmem:[%s468 + $0x18] sm:$0xff]
      %v502 = vld [vmem:[%s468 + $0x20] sm:$0xff]
      %v503 = vld [vmem:[%s468 + $0x28] sm:$0xff]
      %v504 = vld [vmem:[%s468 + $0x30] sm:$0xff]
      %v505 = vld [vmem:[%s468 + $0x38] sm:$0xff]
      %vm506 = vcmask 261120
      %507 = vst.msk [vmem:[#allocation2] sm:$0xff] %vm506, 0.0
      %vm508 = vcmask 253952
      %509 = vst.msk [vmem:[#allocation2 + $0x18] sm:$0x1] %vm508, 0.0
      %v510 = vlaneseq
      %v511 = vshrl.u32 %v510, 7
      %v512 = vadd.s32 %v511, 8
      %v513 = vadd.s32 %v511, 16
      %v514 = vadd.s32 %v511, 24
      %v515 = vadd.s32 %v511, 32
      %v516 = vadd.s32 %v511, 40
      %v517 = vadd.s32 %v511, 48
      %v518 = vadd.s32 %v511, 9
      %v519 = vadd.s32 %v512, 9
      %v520 = vadd.s32 %v513, 9
      %v521 = vadd.s32 %v514, 9
      %v522 = vadd.s32 %v515, 9
      %v523 = vadd.s32 %v516, 9
      %v524 = vadd.s32 %v517, 9
      %vm525 = vcmp.lt.s32.totalorder %v518, 0
      %v526 = vsub.s32 0, %v518
      %v527 = vsel %vm525, %v526, %v518
      %v528 = vshrl.u32 %v527, 3
      %v529 = vand.u32 %v527, 7
      %v530 = vsub.s32 0, %v529
      %v531 = vsel %vm525, %v530, %v529
      %vm532 = vcmp.lt.s32.totalorder %v519, 0
      %v533 = vsub.s32 0, %v519
      %v534 = vsel %vm532, %v533, %v519
      %v535 = vshrl.u32 %v534, 3
      %v536 = vand.u32 %v534, 7
      %v537 = vsub.s32 0, %v536
      %v538 = vsel %vm532, %v537, %v536
      %vm539 = vcmp.lt.s32.totalorder %v520, 0
      %v540 = vsub.s32 0, %v520
      %v541 = vsel %vm539, %v540, %v520
      %v542 = vshrl.u32 %v541, 3
      %v543 = vand.u32 %v541, 7
      %v544 = vsub.s32 0, %v543
      %v545 = vsel %vm539, %v544, %v543
      %vm546 = vcmp.lt.s32.totalorder %v521, 0
      %v547 = vsub.s32 0, %v521
      %v548 = vsel %vm546, %v547, %v521
      %v549 = vshrl.u32 %v548, 3
      %v550 = vand.u32 %v548, 7
      %v551 = vsub.s32 0, %v550
      %v552 = vsel %vm546, %v551, %v550
      %vm553 = vcmp.lt.s32.totalorder %v522, 0
      %v554 = vsub.s32 0, %v522
      %v555 = vsel %vm553, %v554, %v522
      %v556 = vshrl.u32 %v555, 3
      %v557 = vand.u32 %v555, 7
      %v558 = vsub.s32 0, %v557
      %v559 = vsel %vm553, %v558, %v557
      %vm560 = vcmp.lt.s32.totalorder %v523, 0
      %v561 = vsub.s32 0, %v523
      %v562 = vsel %vm560, %v561, %v523
      %v563 = vshrl.u32 %v562, 3
      %v564 = vand.u32 %v562, 7
      %v565 = vsub.s32 0, %v564
      %v566 = vsel %vm560, %v565, %v564
      %vm567 = vcmp.lt.s32.totalorder %v524, 0
      %v568 = vsub.s32 0, %v524
      %v569 = vsel %vm567, %v568, %v524
      %v570 = vshrl.u32 %v569, 3
      %v571 = vand.u32 %v569, 7
      %v572 = vsub.s32 0, %v571
      %v573 = vsel %vm567, %v572, %v571
      %vm574 = vcmp.ne.s32.totalorder %v531, 0
      %vm575 = vcmp.ne.s32.totalorder %v538, 0
      %vm576 = vcmp.ne.s32.totalorder %v545, 0
      %vm577 = vcmp.ne.s32.totalorder %v552, 0
      %vm578 = vcmp.ne.s32.totalorder %v559, 0
      %vm579 = vcmp.ne.s32.totalorder %v566, 0
      %vm580 = vcmp.ne.s32.totalorder %v573, 0
      %vm581 = vcmp.lt.s32.totalorder %v531, 0
      %vm582 = vcmp.lt.s32.totalorder %v538, 0
      %vm583 = vcmp.lt.s32.totalorder %v545, 0
      %vm584 = vcmp.lt.s32.totalorder %v552, 0
      %vm585 = vcmp.lt.s32.totalorder %v559, 0
      %vm586 = vcmp.lt.s32.totalorder %v566, 0
      %vm587 = vcmp.lt.s32.totalorder %v573, 0
      %vm588 = vmand %vm581, %vm574
      %vm589 = vmand %vm582, %vm575
      %vm590 = vmand %vm583, %vm576
      %vm591 = vmand %vm584, %vm577
      %vm592 = vmand %vm585, %vm578
      %vm593 = vmand %vm586, %vm579
      %vm594 = vmand %vm587, %vm580
      %v595 = vadd.s32 %v531, 8
      %v596 = vadd.s32 %v538, 8
      %v597 = vadd.s32 %v545, 8
      %v598 = vadd.s32 %v552, 8
      %v599 = vadd.s32 %v559, 8
      %v600 = vadd.s32 %v566, 8
      %v601 = vadd.s32 %v573, 8
      %v602 = vsel %vm588, %v595, %v531
      %v603 = vsel %vm589, %v596, %v538
      %v604 = vsel %vm590, %v597, %v545
      %v605 = vsel %vm591, %v598, %v552
      %v606 = vsel %vm592, %v599, %v559
      %v607 = vsel %vm593, %v600, %v566
      %v608 = vsel %vm594, %v601, %v573
      %v609 = vadd.s32 %v602, 4294967295
      %v610 = vadd.s32 %v603, 4294967295
      %v611 = vadd.s32 %v604, 4294967295
      %v612 = vadd.s32 %v605, 4294967295
      %v613 = vadd.s32 %v606, 4294967295
      %v614 = vadd.s32 %v607, 4294967295
      %v615 = vadd.s32 %v608, 4294967295
      %vm616 = vcmp.ge.s32.totalorder %v609, 0
      %vm617 = vcmp.ge.s32.totalorder %v610, 0
      %vm618 = vcmp.ge.s32.totalorder %v611, 0
      %vm619 = vcmp.ge.s32.totalorder %v612, 0
      %vm620 = vcmp.ge.s32.totalorder %v613, 0
      %vm621 = vcmp.ge.s32.totalorder %v614, 0
      %vm622 = vcmp.ge.s32.totalorder %v615, 0
      %vm623 = vcmp.lt.s32.totalorder %v609, 8
      %vm624 = vcmp.lt.s32.totalorder %v610, 8
      %vm625 = vcmp.lt.s32.totalorder %v611, 8
      %vm626 = vcmp.lt.s32.totalorder %v612, 8
      %vm627 = vcmp.lt.s32.totalorder %v613, 8
      %vm628 = vcmp.lt.s32.totalorder %v614, 8
      %vm629 = vcmp.lt.s32.totalorder %v615, 8
      %vm630 = vmand %vm616, %vm623
      %vm631 = vmand %vm617, %vm624
      %vm632 = vmand %vm618, %vm625
      %vm633 = vmand %vm619, %vm626
      %vm634 = vmand %vm620, %vm627
      %vm635 = vmand %vm621, %vm628
      %vm636 = vmand %vm622, %vm629
      %v637 = vsel %vm630, %v498, 0.0
      %v638 = vsel %vm631, %v499, 0.0
      %v639 = vsel %vm632, %v500, 0.0
      %v640 = vsel %vm633, %v501, 0.0
      %v641 = vsel %vm634, %v502, 0.0
      %v642 = vsel %vm635, %v503, 0.0
      %v643 = vsel %vm636, %v504, 0.0
      %vm651 = vcmask 1040384
      %v652 = vrot.slane %v637, 7
      %v653 = vrot.slane %v638, 7
      %v654 = vsel %vm651, %v652, %v653
      %v655 = vrot.slane %v639, 7
      %v656 = vsel %vm651, %v653, %v655
      %v657 = vrot.slane %v640, 7
      %v658 = vsel %vm651, %v655, %v657
      %v659 = vrot.slane %v641, 7
      %v660 = vsel %vm651, %v657, %v659
      %v661 = vrot.slane %v642, 7
      %v662 = vsel %vm651, %v659, %v661
      %v663 = vrot.slane %v643, 7
      %v664 = vsel %vm651, %v661, %v663
      %vm672 = vcmask 261121
      %673 = vst.msk [vmem:[#allocation2 + $0x18] sm:$0xfe] %vm672, %v652
      %674 = vst.msk [vmem:[#allocation2 + $0x30] sm:$0xff] %vm506, %v654
      %675 = vst.msk [vmem:[#allocation2 + $0x48] sm:$0xff] %vm506, %v656
      %676 = vst.msk [vmem:[#allocation2 + $0x60] sm:$0xff] %vm506, %v658
      %677 = vst.msk [vmem:[#allocation2 + $0x78] sm:$0xff] %vm506, %v660
      %678 = vst.msk [vmem:[#allocation2 + $0x90] sm:$0xff] %vm506, %v662
      %679 = vst.msk [vmem:[#allocation2 + $0xa8] sm:$0xff] %vm506, %v664
      %vm680 = vcmask 523520
      %681 = vst.msk [vmem:[#allocation2] sm:$0xff] %vm680, 0.0
      %689 = vrot.lane.b32.xlu0 %v490, 32
      %v690 = vpop.permute.xlu0 %689
      %691 = vrot.lane.b32.xlu0 %v491, 32
      %v692 = vpop.permute.xlu0 %691
      %693 = vrot.lane.b32.xlu0 %v492, 32
      %v694 = vpop.permute.xlu0 %693
      %695 = vrot.lane.b32.xlu0 %v493, 32
      %v696 = vpop.permute.xlu0 %695
      %697 = vrot.lane.b32.xlu0 %v494, 32
      %v698 = vpop.permute.xlu0 %697
      %699 = vrot.lane.b32.xlu0 %v495, 32
      %v700 = vpop.permute.xlu0 %699
      %701 = vrot.lane.b32.xlu0 %v496, 32
      %v702 = vpop.permute.xlu0 %701
      %710 = vst.msk [vmem:[#allocation2 + $0x18] sm:$0xff] %vm680, %v690
      %711 = vst.msk [vmem:[#allocation2 + $0x30] sm:$0xff] %vm680, %v692
      %712 = vst.msk [vmem:[#allocation2 + $0x48] sm:$0xff] %vm680, %v694
      %713 = vst.msk [vmem:[#allocation2 + $0x60] sm:$0xff] %vm680, %v696
      %714 = vst.msk [vmem:[#allocation2 + $0x78] sm:$0xff] %vm680, %v698
      %715 = vst.msk [vmem:[#allocation2 + $0x90] sm:$0xff] %vm680, %v700
      %716 = vst.msk [vmem:[#allocation2 + $0xa8] sm:$0xff] %vm680, %v702
      %vm717 = vcmask 785920
      %718 = vst.msk [vmem:[#allocation2] sm:$0xff] %vm717, 0.0
      %726 = vrot.lane.b32.xlu0 %v498, 64
      %v727 = vpop.permute.xlu0 %726
      %728 = vrot.lane.b32.xlu0 %v499, 64
      %v729 = vpop.permute.xlu0 %728
      %730 = vrot.lane.b32.xlu0 %v500, 64
      %v731 = vpop.permute.xlu0 %730
      %732 = vrot.lane.b32.xlu0 %v501, 64
      %v733 = vpop.permute.xlu0 %732
      %734 = vrot.lane.b32.xlu0 %v502, 64
      %v735 = vpop.permute.xlu0 %734
      %736 = vrot.lane.b32.xlu0 %v503, 64
      %v737 = vpop.permute.xlu0 %736
      %738 = vrot.lane.b32.xlu0 %v504, 64
      %v739 = vpop.permute.xlu0 %738
      %747 = vst.msk [vmem:[#allocation2 + $0x18] sm:$0xff] %vm717, %v727
      %748 = vst.msk [vmem:[#allocation2 + $0x30] sm:$0xff] %vm717, %v729
      %749 = vst.msk [vmem:[#allocation2 + $0x48] sm:$0xff] %vm717, %v731
      %750 = vst.msk [vmem:[#allocation2 + $0x60] sm:$0xff] %vm717, %v733
      %751 = vst.msk [vmem:[#allocation2 + $0x78] sm:$0xff] %vm717, %v735
      %752 = vst.msk [vmem:[#allocation2 + $0x90] sm:$0xff] %vm717, %v737
      %753 = vst.msk [vmem:[#allocation2 + $0xa8] sm:$0xff] %vm717, %v739
      %vm754 = vcmask 1041152
      %755 = vst.msk [vmem:[#allocation2] sm:$0x1] %vm754, 0.0
      %v756 = vadd.s32 %v511, 56
      %v757 = vadd.s32 %v511, 1
      %v758 = vadd.s32 %v512, 1
      %v759 = vadd.s32 %v513, 1
      %v760 = vadd.s32 %v514, 1
      %v761 = vadd.s32 %v515, 1
      %v762 = vadd.s32 %v516, 1
      %v763 = vadd.s32 %v517, 1
      %v764 = vadd.s32 %v756, 1
      %vm765 = vcmp.lt.s32.totalorder %v757, 0
      %v766 = vsub.s32 0, %v757
      %v767 = vsel %vm765, %v766, %v757
      %v768 = vshrl.u32 %v767, 3
      %v769 = vand.u32 %v767, 7
      %v770 = vsub.s32 0, %v769
      %v771 = vsel %vm765, %v770, %v769
      %vm772 = vcmp.lt.s32.totalorder %v758, 0
      %v773 = vsub.s32 0, %v758
      %v774 = vsel %vm772, %v773, %v758
      %v775 = vshrl.u32 %v774, 3
      %v776 = vand.u32 %v774, 7
      %v777 = vsub.s32 0, %v776
      %v778 = vsel %vm772, %v777, %v776
      %vm779 = vcmp.lt.s32.totalorder %v759, 0
      %v780 = vsub.s32 0, %v759
      %v781 = vsel %vm779, %v780, %v759
      %v782 = vshrl.u32 %v781, 3
      %v783 = vand.u32 %v781, 7
      %v784 = vsub.s32 0, %v783
      %v785 = vsel %vm779, %v784, %v783
      %vm786 = vcmp.lt.s32.totalorder %v760, 0
      %v787 = vsub.s32 0, %v760
      %v788 = vsel %vm786, %v787, %v760
      %v789 = vshrl.u32 %v788, 3
      %v790 = vand.u32 %v788, 7
      %v791 = vsub.s32 0, %v790
      %v792 = vsel %vm786, %v791, %v790
      %vm793 = vcmp.lt.s32.totalorder %v761, 0
      %v794 = vsub.s32 0, %v761
      %v795 = vsel %vm793, %v794, %v761
      %v796 = vshrl.u32 %v795, 3
      %v797 = vand.u32 %v795, 7
      %v798 = vsub.s32 0, %v797
      %v799 = vsel %vm793, %v798, %v797
      %vm800 = vcmp.lt.s32.totalorder %v762, 0
      %v801 = vsub.s32 0, %v762
      %v802 = vsel %vm800, %v801, %v762
      %v803 = vshrl.u32 %v802, 3
      %v804 = vand.u32 %v802, 7
      %v805 = vsub.s32 0, %v804
      %v806 = vsel %vm800, %v805, %v804
      %vm807 = vcmp.lt.s32.totalorder %v763, 0
      %v808 = vsub.s32 0, %v763
      %v809 = vsel %vm807, %v808, %v763
      %v810 = vshrl.u32 %v809, 3
      %v811 = vand.u32 %v809, 7
      %v812 = vsub.s32 0, %v811
      %v813 = vsel %vm807, %v812, %v811
      %vm814 = vcmp.lt.s32.totalorder %v764, 0
      %v815 = vsub.s32 0, %v764
      %v816 = vsel %vm814, %v815, %v764
      %v817 = vshrl.u32 %v816, 3
      %v818 = vand.u32 %v816, 7
      %v819 = vsub.s32 0, %v818
      %v820 = vsel %vm814, %v819, %v818
      %vm821 = vcmp.ne.s32.totalorder %v771, 0
      %vm822 = vcmp.ne.s32.totalorder %v778, 0
      %vm823 = vcmp.ne.s32.totalorder %v785, 0
      %vm824 = vcmp.ne.s32.totalorder %v792, 0
      %vm825 = vcmp.ne.s32.totalorder %v799, 0
      %vm826 = vcmp.ne.s32.totalorder %v806, 0
      %vm827 = vcmp.ne.s32.totalorder %v813, 0
      %vm828 = vcmp.ne.s32.totalorder %v820, 0
      %vm829 = vcmp.lt.s32.totalorder %v771, 0
      %vm830 = vcmp.lt.s32.totalorder %v778, 0
      %vm831 = vcmp.lt.s32.totalorder %v785, 0
      %vm832 = vcmp.lt.s32.totalorder %v792, 0
      %vm833 = vcmp.lt.s32.totalorder %v799, 0
      %vm834 = vcmp.lt.s32.totalorder %v806, 0
      %vm835 = vcmp.lt.s32.totalorder %v813, 0
      %vm836 = vcmp.lt.s32.totalorder %v820, 0
      %vm837 = vmand %vm829, %vm821
      %vm838 = vmand %vm830, %vm822
      %vm839 = vmand %vm831, %vm823
      %vm840 = vmand %vm832, %vm824
      %vm841 = vmand %vm833, %vm825
      %vm842 = vmand %vm834, %vm826
      %vm843 = vmand %vm835, %vm827
      %vm844 = vmand %vm836, %vm828
      %v845 = vadd.s32 %v771, 8
      %v846 = vadd.s32 %v778, 8
      %v847 = vadd.s32 %v785, 8
      %v848 = vadd.s32 %v792, 8
      %v849 = vadd.s32 %v799, 8
      %v850 = vadd.s32 %v806, 8
      %v851 = vadd.s32 %v813, 8
      %v852 = vadd.s32 %v820, 8
      %v853 = vsel %vm837, %v845, %v771
      %v854 = vsel %vm838, %v846, %v778
      %v855 = vsel %vm839, %v847, %v785
      %v856 = vsel %vm840, %v848, %v792
      %v857 = vsel %vm841, %v849, %v799
      %v858 = vsel %vm842, %v850, %v806
      %v859 = vsel %vm843, %v851, %v813
      %v860 = vsel %vm844, %v852, %v820
      %v861 = vadd.s32 %v853, 4294967295
      %v862 = vadd.s32 %v854, 4294967295
      %v863 = vadd.s32 %v855, 4294967295
      %v864 = vadd.s32 %v856, 4294967295
      %v865 = vadd.s32 %v857, 4294967295
      %v866 = vadd.s32 %v858, 4294967295
      %v867 = vadd.s32 %v859, 4294967295
      %v868 = vadd.s32 %v860, 4294967295
      %vm869 = vcmp.ge.s32.totalorder %v861, 0
      %vm870 = vcmp.ge.s32.totalorder %v862, 0
      %vm871 = vcmp.ge.s32.totalorder %v863, 0
      %vm872 = vcmp.ge.s32.totalorder %v864, 0
      %vm873 = vcmp.ge.s32.totalorder %v865, 0
      %vm874 = vcmp.ge.s32.totalorder %v866, 0
      %vm875 = vcmp.ge.s32.totalorder %v867, 0
      %vm876 = vcmp.ge.s32.totalorder %v868, 0
      %vm877 = vcmp.lt.s32.totalorder %v861, 8
      %vm878 = vcmp.lt.s32.totalorder %v862, 8
      %vm879 = vcmp.lt.s32.totalorder %v863, 8
      %vm880 = vcmp.lt.s32.totalorder %v864, 8
      %vm881 = vcmp.lt.s32.totalorder %v865, 8
      %vm882 = vcmp.lt.s32.totalorder %v866, 8
      %vm883 = vcmp.lt.s32.totalorder %v867, 8
      %vm884 = vcmp.lt.s32.totalorder %v868, 8
      %vm885 = vmand %vm869, %vm877
      %vm886 = vmand %vm870, %vm878
      %vm887 = vmand %vm871, %vm879
      %vm888 = vmand %vm872, %vm880
      %vm889 = vmand %vm873, %vm881
      %vm890 = vmand %vm874, %vm882
      %vm891 = vmand %vm875, %vm883
      %vm892 = vmand %vm876, %vm884
      %v893 = vsel %vm885, %v482, 0.0
      %v894 = vsel %vm886, %v483, 0.0
      %v895 = vsel %vm887, %v484, 0.0
      %v896 = vsel %vm888, %v485, 0.0
      %v897 = vsel %vm889, %v486, 0.0
      %v898 = vsel %vm890, %v487, 0.0
      %v899 = vsel %vm891, %v488, 0.0
      %v900 = vsel %vm892, %v489, 0.0
      %v909 = vrot.slane %v893, 7
      %v910 = vrot.slane %v894, 7
      %v911 = vsel %vm651, %v909, %v910
      %v912 = vrot.slane %v895, 7
      %v913 = vsel %vm651, %v910, %v912
      %v914 = vrot.slane %v896, 7
      %v915 = vsel %vm651, %v912, %v914
      %v916 = vrot.slane %v897, 7
      %v917 = vsel %vm651, %v914, %v916
      %v918 = vrot.slane %v898, 7
      %v919 = vsel %vm651, %v916, %v918
      %v920 = vrot.slane %v899, 7
      %v921 = vsel %vm651, %v918, %v920
      %v922 = vrot.slane %v900, 7
      %v923 = vsel %vm651, %v920, %v922
      %924 = vrot.lane.b32.xlu0 %v909, 96
      %v925 = vpop.permute.xlu0 %924
      %926 = vrot.lane.b32.xlu0 %v911, 96
      %v927 = vpop.permute.xlu0 %926
      %928 = vrot.lane.b32.xlu0 %v913, 96
      %v929 = vpop.permute.xlu0 %928
      %930 = vrot.lane.b32.xlu0 %v915, 96
      %v931 = vpop.permute.xlu0 %930
      %932 = vrot.lane.b32.xlu0 %v917, 96
      %v933 = vpop.permute.xlu0 %932
      %934 = vrot.lane.b32.xlu0 %v919, 96
      %v935 = vpop.permute.xlu0 %934
      %936 = vrot.lane.b32.xlu0 %v921, 96
      %v937 = vpop.permute.xlu0 %936
      %938 = vrot.lane.b32.xlu0 %v923, 96
      %v939 = vpop.permute.xlu0 %938
      %vm948 = vcmask 1048321
      %949 = vst.msk [vmem:[#allocation2] sm:$0xfe] %vm948, %v925
      %vm950 = vcmask 1048320
      %951 = vst.msk [vmem:[#allocation2 + $0x18] sm:$0xff] %vm950, %v927
      %952 = vst.msk [vmem:[#allocation2 + $0x30] sm:$0xff] %vm950, %v929
      %953 = vst.msk [vmem:[#allocation2 + $0x48] sm:$0xff] %vm950, %v931
      %954 = vst.msk [vmem:[#allocation2 + $0x60] sm:$0xff] %vm950, %v933
      %955 = vst.msk [vmem:[#allocation2 + $0x78] sm:$0xff] %vm950, %v935
      %956 = vst.msk [vmem:[#allocation2 + $0x90] sm:$0xff] %vm950, %v937
      %957 = vst.msk [vmem:[#allocation2 + $0xa8] sm:$0xff] %vm950, %v939
      %958 = vst.msk [vmem:[#allocation2 + $0x8] sm:$0xff] %vm506, %v474
      %959 = vst.msk [vmem:[#allocation2 + $0x20] sm:$0xff] %vm506, %v475
      %960 = vst.msk [vmem:[#allocation2 + $0x38] sm:$0xff] %vm506, %v476
      %961 = vst.msk [vmem:[#allocation2 + $0x50] sm:$0xff] %vm506, %v477
      %962 = vst.msk [vmem:[#allocation2 + $0x68] sm:$0xff] %vm506, %v478
      %963 = vst.msk [vmem:[#allocation2 + $0x80] sm:$0xff] %vm506, %v479
      %964 = vst.msk [vmem:[#allocation2 + $0x98] sm:$0xff] %vm506, %v480
      %965 = vst.msk [vmem:[#allocation2 + $0xb0] sm:$0xff] %vm506, %v481
      %974 = vrot.lane.b32.xlu0 %v482, 32
      %v975 = vpop.permute.xlu0 %974
      %976 = vrot.lane.b32.xlu0 %v483, 32
      %v977 = vpop.permute.xlu0 %976
      %978 = vrot.lane.b32.xlu0 %v484, 32
      %v979 = vpop.permute.xlu0 %978
      %980 = vrot.lane.b32.xlu0 %v485, 32
      %v981 = vpop.permute.xlu0 %980
      %982 = vrot.lane.b32.xlu0 %v486, 32
      %v983 = vpop.permute.xlu0 %982
      %984 = vrot.lane.b32.xlu0 %v487, 32
      %v985 = vpop.permute.xlu0 %984
      %986 = vrot.lane.b32.xlu0 %v488, 32
      %v987 = vpop.permute.xlu0 %986
      %988 = vrot.lane.b32.xlu0 %v489, 32
      %v989 = vpop.permute.xlu0 %988
      %998 = vst.msk [vmem:[#allocation2 + $0x8] sm:$0xff] %vm680, %v975
      %999 = vst.msk [vmem:[#allocation2 + $0x20] sm:$0xff] %vm680, %v977
      %1000 = vst.msk [vmem:[#allocation2 + $0x38] sm:$0xff] %vm680, %v979
      %1001 = vst.msk [vmem:[#allocation2 + $0x50] sm:$0xff] %vm680, %v981
      %1002 = vst.msk [vmem:[#allocation2 + $0x68] sm:$0xff] %vm680, %v983
      %1003 = vst.msk [vmem:[#allocation2 + $0x80] sm:$0xff] %vm680, %v985
      %1004 = vst.msk [vmem:[#allocation2 + $0x98] sm:$0xff] %vm680, %v987
      %1005 = vst.msk [vmem:[#allocation2 + $0xb0] sm:$0xff] %vm680, %v989
      %vm1006 = vcmask 778752
      %1007 = vst.msk [vmem:[#allocation2 + $0x8] sm:$0x1] %vm1006, 0.0
      %v1008 = vsel %vm885, %v498, 0.0
      %v1009 = vsel %vm886, %v499, 0.0
      %v1010 = vsel %vm887, %v500, 0.0
      %v1011 = vsel %vm888, %v501, 0.0
      %v1012 = vsel %vm889, %v502, 0.0
      %v1013 = vsel %vm890, %v503, 0.0
      %v1014 = vsel %vm891, %v504, 0.0
      %v1015 = vsel %vm892, %v505, 0.0
      %v1024 = vrot.slane %v1008, 7
      %v1025 = vrot.slane %v1009, 7
      %v1026 = vsel %vm651, %v1024, %v1025
      %v1027 = vrot.slane %v1010, 7
      %v1028 = vsel %vm651, %v1025, %v1027
      %v1029 = vrot.slane %v1011, 7
      %v1030 = vsel %vm651, %v1027, %v1029
      %v1031 = vrot.slane %v1012, 7
      %v1032 = vsel %vm651, %v1029, %v1031
      %v1033 = vrot.slane %v1013, 7
      %v1034 = vsel %vm651, %v1031, %v1033
      %v1035 = vrot.slane %v1014, 7
      %v1036 = vsel %vm651, %v1033, %v1035
      %v1037 = vrot.slane %v1015, 7
      %v1038 = vsel %vm651, %v1035, %v1037
      %1039 = vrot.lane.b32.xlu0 %v1024, 64
      %v1040 = vpop.permute.xlu0 %1039
      %1041 = vrot.lane.b32.xlu0 %v1026, 64
      %v1042 = vpop.permute.xlu0 %1041
      %1043 = vrot.lane.b32.xlu0 %v1028, 64
      %v1044 = vpop.permute.xlu0 %1043
      %1045 = vrot.lane.b32.xlu0 %v1030, 64
      %v1046 = vpop.permute.xlu0 %1045
      %1047 = vrot.lane.b32.xlu0 %v1032, 64
      %v1048 = vpop.permute.xlu0 %1047
      %1049 = vrot.lane.b32.xlu0 %v1034, 64
      %v1050 = vpop.permute.xlu0 %1049
      %1051 = vrot.lane.b32.xlu0 %v1036, 64
      %v1052 = vpop.permute.xlu0 %1051
      %1053 = vrot.lane.b32.xlu0 %v1038, 64
      %v1054 = vpop.permute.xlu0 %1053
      %vm1063 = vcmask 785921
      %1064 = vst.msk [vmem:[#allocation2 + $0x8] sm:$0xfe] %vm1063, %v1040
      %1065 = vst.msk [vmem:[#allocation2 + $0x20] sm:$0xff] %vm717, %v1042
      %1066 = vst.msk [vmem:[#allocation2 + $0x38] sm:$0xff] %vm717, %v1044
      %1067 = vst.msk [vmem:[#allocation2 + $0x50] sm:$0xff] %vm717, %v1046
      %1068 = vst.msk [vmem:[#allocation2 + $0x68] sm:$0xff] %vm717, %v1048
      %1069 = vst.msk [vmem:[#allocation2 + $0x80] sm:$0xff] %vm717, %v1050
      %1070 = vst.msk [vmem:[#allocation2 + $0x98] sm:$0xff] %vm717, %v1052
      %1071 = vst.msk [vmem:[#allocation2 + $0xb0] sm:$0xff] %vm717, %v1054
      %1073 = vrot.lane.b32.xlu0 %v490, 96
      %v1074 = vpop.permute.xlu0 %1073
      %1075 = vrot.lane.b32.xlu0 %v491, 96
      %v1076 = vpop.permute.xlu0 %1075
      %1077 = vrot.lane.b32.xlu0 %v492, 96
      %v1078 = vpop.permute.xlu0 %1077
      %1079 = vrot.lane.b32.xlu0 %v493, 96
      %v1080 = vpop.permute.xlu0 %1079
      %1081 = vrot.lane.b32.xlu0 %v494, 96
      %v1082 = vpop.permute.xlu0 %1081
      %1083 = vrot.lane.b32.xlu0 %v495, 96
      %v1084 = vpop.permute.xlu0 %1083
      %1085 = vrot.lane.b32.xlu0 %v496, 96
      %v1086 = vpop.permute.xlu0 %1085
      %1087 = vrot.lane.b32.xlu0 %v497, 96
      %v1088 = vpop.permute.xlu0 %1087
      %1097 = vst.msk [vmem:[#allocation2 + $0x8] sm:$0xff] %vm950, %v1074
      %1098 = vst.msk [vmem:[#allocation2 + $0x20] sm:$0xff] %vm950, %v1076
      %1099 = vst.msk [vmem:[#allocation2 + $0x38] sm:$0xff] %vm950, %v1078
      %1100 = vst.msk [vmem:[#allocation2 + $0x50] sm:$0xff] %vm950, %v1080
      %1101 = vst.msk [vmem:[#allocation2 + $0x68] sm:$0xff] %vm950, %v1082
      %1102 = vst.msk [vmem:[#allocation2 + $0x80] sm:$0xff] %vm950, %v1084
      %1103 = vst.msk [vmem:[#allocation2 + $0x98] sm:$0xff] %vm950, %v1086
      %1104 = vst.msk [vmem:[#allocation2 + $0xb0] sm:$0xff] %vm950, %v1088
      %1105 = vst.msk [vmem:[#allocation2 + $0x10] sm:$0xff] %vm506, %v498
      %1106 = vst.msk [vmem:[#allocation2 + $0x28] sm:$0xff] %vm506, %v499
      %1107 = vst.msk [vmem:[#allocation2 + $0x40] sm:$0xff] %vm506, %v500
      %1108 = vst.msk [vmem:[#allocation2 + $0x58] sm:$0xff] %vm506, %v501
      %1109 = vst.msk [vmem:[#allocation2 + $0x70] sm:$0xff] %vm506, %v502
      %1110 = vst.msk [vmem:[#allocation2 + $0x88] sm:$0xff] %vm506, %v503
      %1111 = vst.msk [vmem:[#allocation2 + $0xa0] sm:$0xff] %vm506, %v504
      %1112 = vst.msk [vmem:[#allocation2 + $0xb8] sm:$0xff] %vm506, %v505
      %v1113 = vld [vmem:[#allocation2] sm:$0xff]
      %v1114 = vld [vmem:[#allocation2 + $0x8] sm:$0xff]
      %v1115 = vld [vmem:[#allocation2 + $0x10] sm:$0xff]
      %v1116 = vld [vmem:[#allocation2 + $0x18] sm:$0xff]
      %v1117 = vld [vmem:[#allocation2 + $0x20] sm:$0xff]
      %v1118 = vld [vmem:[#allocation2 + $0x28] sm:$0xff]
      %v1119 = vld [vmem:[#allocation2 + $0x30] sm:$0xff]
      %v1120 = vld [vmem:[#allocation2 + $0x38] sm:$0xff]
      %v1121 = vld [vmem:[#allocation2 + $0x40] sm:$0xff]
      %v1122 = vld [vmem:[#allocation2 + $0x48] sm:$0xff]
      %v1123 = vld [vmem:[#allocation2 + $0x50] sm:$0xff]
      %v1124 = vld [vmem:[#allocation2 + $0x58] sm:$0xff]
      %v1125 = vld [vmem:[#allocation2 + $0x60] sm:$0xff]
      %v1126 = vld [vmem:[#allocation2 + $0x68] sm:$0xff]
      %v1127 = vld [vmem:[#allocation2 + $0x70] sm:$0xff]
      %v1128 = vld [vmem:[#allocation2 + $0x78] sm:$0xff]
      %v1129 = vld [vmem:[#allocation2 + $0x80] sm:$0xff]
      %v1130 = vld [vmem:[#allocation2 + $0x88] sm:$0xff]
      %v1131 = vld [vmem:[#allocation2 + $0x90] sm:$0xff]
      %v1132 = vld [vmem:[#allocation2 + $0x98] sm:$0xff]
      %v1133 = vld [vmem:[#allocation2 + $0xa0] sm:$0xff]
      %v1134 = vld [vmem:[#allocation2 + $0xa8] sm:$0xff]
      %v1135 = vld [vmem:[#allocation2 + $0xb0] sm:$0xff]
      %v1136 = vld [vmem:[#allocation2 + $0xb8] sm:$0xff]
      %v1137 = vld [vmem:[%s4] sm:$0xff]
      %v1138 = vld [vmem:[%s4 + $0x8] sm:$0xff]
      %v1139 = vld [vmem:[%s4 + $0x10] sm:$0xff]
      %v1140 = vld [vmem:[%s4 + $0x18] sm:$0xff]
      %v1141 = vld [vmem:[%s4 + $0x20] sm:$0xff]
      %v1142 = vld [vmem:[%s4 + $0x28] sm:$0xff]
      %v1143 = vld [vmem:[%s4 + $0x30] sm:$0xff]
      %v1144 = vld [vmem:[%s4 + $0x38] sm:$0xff]
      %v1145 = vld [vmem:[%s4 + $0x40] sm:$0xff]
      %v1146 = vld [vmem:[%s4 + $0x48] sm:$0xff]
      %v1147 = vld [vmem:[%s4 + $0x50] sm:$0xff]
      %v1148 = vld [vmem:[%s4 + $0x58] sm:$0xff]
      %v1149 = vld [vmem:[%s4 + $0x60] sm:$0xff]
      %v1150 = vld [vmem:[%s4 + $0x68] sm:$0xff]
      %v1151 = vld [vmem:[%s4 + $0x70] sm:$0xff]
      %v1152 = vld [vmem:[%s4 + $0x78] sm:$0xff]
      %v1153 = vld [vmem:[%s4 + $0x80] sm:$0xff]
      %v1154 = vld [vmem:[%s4 + $0x88] sm:$0xff]
      %v1155 = vld [vmem:[%s4 + $0x90] sm:$0xff]
      %v1156 = vld [vmem:[%s4 + $0x98] sm:$0xff]
      %v1157 = vld [vmem:[%s4 + $0xa0] sm:$0xff]
      %v1158 = vld [vmem:[%s4 + $0xa8] sm:$0xff]
      %v1159 = vld [vmem:[%s4 + $0xb0] sm:$0xff]
      %v1160 = vld [vmem:[%s4 + $0xb8] sm:$0xff]
      %v1161 = vld [vmem:[%s4 + $0xc0] sm:$0xff]
      %v1162 = vld [vmem:[%s4 + $0xc8] sm:$0xff]
      %v1163 = vld [vmem:[%s4 + $0xd0] sm:$0xff]
      %v1164 = vld [vmem:[%s4 + $0xd8] sm:$0xff]
      %v1165 = vld [vmem:[%s4 + $0xe0] sm:$0xff]
      %v1166 = vld [vmem:[%s4 + $0xe8] sm:$0xff]
      %v1167 = vld [vmem:[%s4 + $0xf0] sm:$0xff]
      %v1168 = vld [vmem:[%s4 + $0xf8] sm:$0xff]
      %v1169 = vld [vmem:[%s4 + $0x100] sm:$0xff]
      %v1170 = vld [vmem:[%s4 + $0x108] sm:$0xff]
      %v1171 = vld [vmem:[%s4 + $0x110] sm:$0xff]
      %v1172 = vld [vmem:[%s4 + $0x118] sm:$0xff]
      %v1173 = vld [vmem:[%s5] sm:$0x1]
      %v1175 = vlaneseq
      %v1176 = vshrl.u32 %v1175, 7
      %v1177 = vsub.s32 0, %v1176
      %v1178 = vrot.slane %v1173, %v1177
      %v1181 = vsel %vm506, %v1115, 0
      %v1184 = vsel %vm506, %v1118, 0
      %v1187 = vsel %vm506, %v1121, 0
      %v1190 = vsel %vm506, %v1124, 0
      %v1193 = vsel %vm506, %v1127, 0
      %v1196 = vsel %vm506, %v1130, 0
      %v1199 = vsel %vm506, %v1133, 0
      %v1202 = vsel %vm506, %v1136, 0
      %1204 = vmatprep.subr.mxu0 0.0
      %1205 = vmatpush1.msra.mxu0 %v1137
      %1206 = vmatprep.subr.mxu0 0.0
      %1207 = vmatpush1.msra.mxu0 %v1138
      %1208 = vmatprep.subr.mxu0 0.0
      %1209 = vmatpush1.msra.mxu0 %v1139
      %1210 = vmatprep.subr.mxu0 0.0
      %1211 = vmatpush1.msra.mxu0 %v1140
      %1212 = vmatprep.subr.mxu0 0.0
      %1213 = vmatpush1.msra.mxu0 %v1141
      %1214 = vmatprep.subr.mxu0 0.0
      %1215 = vmatpush1.msra.mxu0 %v1142
      %1216 = vmatprep.subr.mxu0 0.0
      %1217 = vmatpush1.msra.mxu0 %v1143
      %1218 = vmatprep.subr.mxu0 0.0
      %1219 = vmatpush1.msra.mxu0 %v1144
      %1220 = vmatprep.subr.mxu0 0.0
      %1221 = vmatpush1.msra.mxu0 %v1145
      %1222 = vmatprep.subr.mxu0 0.0
      %1223 = vmatpush1.msra.mxu0 %v1146
      %1224 = vmatprep.subr.mxu0 0.0
      %1225 = vmatpush1.msra.mxu0 %v1147
      %1226 = vmatprep.subr.mxu0 0.0
      %1227 = vmatpush1.msra.mxu0 %v1148
      %1228 = vmatprep.subr.mxu0 0.0
      %1229 = vmatpush1.msra.mxu0 %v1149
      %1230 = vmatprep.subr.mxu0 0.0
      %1231 = vmatpush1.msra.mxu0 %v1150
      %1232 = vmatprep.subr.mxu0 0.0
      %1233 = vmatpush1.msra.mxu0 %v1151
      %1234 = vmatprep.subr.mxu0 0.0
      %1235 = vmatpush1.msra.mxu0 %v1152
      %1236 = vmatprep.subr.mxu0 0.0
      %1237 = vmatpush1.msra.mxu0 %v1153
      %1238 = vmatprep.subr.mxu0 0.0
      %1239 = vmatpush1.msra.mxu0 %v1154
      %1240 = vmatprep.subr.mxu0 0.0
      %1241 = vmatpush1.msra.mxu0 %v1155
      %1242 = vmatprep.subr.mxu0 0.0
      %1243 = vmatpush1.msra.mxu0 %v1156
      %1244 = vmatprep.subr.mxu0 0.0
      %1245 = vmatpush1.msra.mxu0 %v1157
      %1246 = vmatprep.subr.mxu0 0.0
      %1247 = vmatpush1.msra.mxu0 %v1158
      %1248 = vmatprep.subr.mxu0 0.0
      %1249 = vmatpush1.msra.mxu0 %v1159
      %1250 = vmatprep.subr.mxu0 0.0
      %1251 = vmatpush1.msra.mxu0 %v1160
      %1252 = vmatprep.subr.mxu0 0.0
      %1253 = vmatpush1.msra.mxu0 %v1161
      %1254 = vmatprep.subr.mxu0 0.0
      %1255 = vmatpush1.msra.mxu0 %v1162
      %1256 = vmatprep.subr.mxu0 0.0
      %1257 = vmatpush1.msra.mxu0 %v1163
      %1258 = vmatprep.subr.mxu0 0.0
      %1259 = vmatpush1.msra.mxu0 %v1164
      %1260 = vmatprep.subr.mxu0 0.0
      %1261 = vmatpush1.msra.mxu0 %v1165
      %1262 = vmatprep.subr.mxu0 0.0
      %1263 = vmatpush1.msra.mxu0 %v1166
      %1264 = vmatprep.subr.mxu0 0.0
      %1265 = vmatpush1.msra.mxu0 %v1167
      %1266 = vmatprep.subr.mxu0 0.0
      %1267 = vmatpush1.msra.mxu0 %v1168
      %1268 = vmatprep.mubr.f32.mxu0 %v1114
      %1269 = vmatmul.mubr.f32.gmra.mrb[0].mxu0 %v1113
      %v1270 = vpop.f32.mrb[0].mxu0
      %v1271 = vadd.f32 %v1178, %v1270
      %v1272 = vpop.f32.mrb[0].mxu0
      %1273 = vmatprep.mubr.f32.mxu0 %v1117
      %1274 = vmatmul.mubr.f32.gmra.mrb[0].mxu0 %v1116
      %v1275 = vpop.f32.mrb[0].mxu0
      %v1276 = vadd.f32 %v1178, %v1275
      %v1277 = vpop.f32.mrb[0].mxu0
      %1278 = vmatprep.mubr.f32.mxu0 %v1120
      %1279 = vmatmul.mubr.f32.gmra.mrb[0].mxu0 %v1119
      %v1280 = vpop.f32.mrb[0].mxu0
      %v1281 = vadd.f32 %v1178, %v1280
      %v1282 = vpop.f32.mrb[0].mxu0
      %1283 = vmatprep.mubr.f32.mxu0 %v1123
      %1284 = vmatmul.mubr.f32.gmra.mrb[0].mxu0 %v1122
      %v1285 = vpop.f32.mrb[0].mxu0
      %v1286 = vadd.f32 %v1178, %v1285
      %v1287 = vpop.f32.mrb[0].mxu0
      %1288 = vmatprep.mubr.f32.mxu0 %v1126
      %1289 = vmatmul.mubr.f32.gmra.mrb[0].mxu0 %v1125
      %v1290 = vpop.f32.mrb[0].mxu0
      %v1291 = vadd.f32 %v1178, %v1290
      %v1292 = vpop.f32.mrb[0].mxu0
      %1293 = vmatprep.mubr.f32.mxu0 %v1129
      %1294 = vmatmul.mubr.f32.gmra.mrb[0].mxu0 %v1128
      %v1295 = vpop.f32.mrb[0].mxu0
      %v1296 = vadd.f32 %v1178, %v1295
      %v1297 = vpop.f32.mrb[0].mxu0
      %1298 = vmatprep.mubr.f32.mxu0 %v1132
      %1299 = vmatmul.mubr.f32.gmra.mrb[0].mxu0 %v1131
      %v1300 = vpop.f32.mrb[0].mxu0
      %v1301 = vadd.f32 %v1178, %v1300
      %v1302 = vpop.f32.mrb[0].mxu0
      %1303 = vmatprep.mubr.f32.mxu0 %v1135
      %1304 = vmatmul.mubr.f32.gmra.mrb[0].mxu0 %v1134
      %v1305 = vpop.f32.mrb[0].mxu0
      %v1306 = vadd.f32 %v1178, %v1305
      %v1307 = vpop.f32.mrb[0].mxu0
      %1308 = vdwg.mxu0
      %1309 = vmatprep.subr.mxu0 0.0
      %1310 = vmatpush1.msra.mxu0 %v1169
      %1311 = vmatprep.subr.mxu0 0.0
      %1312 = vmatpush1.msra.mxu0 %v1170
      %1313 = vmatprep.subr.mxu0 0.0
      %1314 = vmatpush1.msra.mxu0 %v1171
      %1315 = vmatprep.subr.mxu0 0.0
      %1316 = vmatpush1.msra.mxu0 %v1172
      %1317 = vmatprep.subr.mxu0 0.0
      %1318 = vmatpush1.msra.mxu0 0.0
      %1319 = vmatprep.subr.mxu0 0.0
      %1320 = vmatpush1.msra.mxu0 0.0
      %1321 = vmatprep.subr.mxu0 0.0
      %1322 = vmatpush1.msra.mxu0 0.0
      %1323 = vmatprep.subr.mxu0 0.0
      %1324 = vmatpush1.msra.mxu0 0.0
      %1325 = vmatprep.subr.mxu0 0.0
      %1326 = vmatpush1.msra.mxu0 0.0
      %1327 = vmatprep.subr.mxu0 0.0
      %1328 = vmatpush1.msra.mxu0 0.0
      %1329 = vmatprep.subr.mxu0 0.0
      %1330 = vmatpush1.msra.mxu0 0.0
      %1331 = vmatprep.subr.mxu0 0.0
      %1332 = vmatpush1.msra.mxu0 0.0
      %1333 = vmatprep.subr.mxu0 0.0
      %1334 = vmatpush1.msra.mxu0 0.0
      %1335 = vmatprep.subr.mxu0 0.0
      %1336 = vmatpush1.msra.mxu0 0.0
      %1337 = vmatprep.subr.mxu0 0.0
      %1338 = vmatpush1.msra.mxu0 0.0
      %1339 = vmatprep.subr.mxu0 0.0
      %1340 = vmatpush1.msra.mxu0 0.0
      %1341 = vmatprep.subr.mxu0 0.0
      %1342 = vmatpush1.msra.mxu0 0.0
      %1343 = vmatprep.subr.mxu0 0.0
      %1344 = vmatpush1.msra.mxu0 0.0
      %1345 = vmatprep.subr.mxu0 0.0
      %1346 = vmatpush1.msra.mxu0 0.0
      %1347 = vmatprep.subr.mxu0 0.0
      %1348 = vmatpush1.msra.mxu0 0.0
      %1349 = vmatprep.subr.mxu0 0.0
      %1350 = vmatpush1.msra.mxu0 0.0
      %1351 = vmatprep.subr.mxu0 0.0
      %1352 = vmatpush1.msra.mxu0 0.0
      %1353 = vmatprep.subr.mxu0 0.0
      %1354 = vmatpush1.msra.mxu0 0.0
      %1355 = vmatprep.subr.mxu0 0.0
      %1356 = vmatpush1.msra.mxu0 0.0
      %1357 = vmatprep.subr.mxu0 0.0
      %1358 = vmatpush1.msra.mxu0 0.0
      %1359 = vmatprep.subr.mxu0 0.0
      %1360 = vmatpush1.msra.mxu0 0.0
      %1361 = vmatprep.subr.mxu0 0.0
      %1362 = vmatpush1.msra.mxu0 0.0
      %1363 = vmatprep.subr.mxu0 0.0
      %1364 = vmatpush1.msra.mxu0 0.0
      %1365 = vmatprep.subr.mxu0 0.0
      %1366 = vmatpush1.msra.mxu0 0.0
      %1367 = vmatprep.subr.mxu0 0.0
      %1368 = vmatpush1.msra.mxu0 0.0
      %1369 = vmatprep.subr.mxu0 0.0
      %1370 = vmatpush1.msra.mxu0 0.0
      %1371 = vmatprep.subr.mxu0 0.0
      %1372 = vmatpush1.msra.mxu0 0.0
      %1373 = vmatprep.mubr.f32.mxu0 0.0
      %1374 = vmatmul.mubr.f32.gmra.mrb[0].mxu0 %v1181
      %v1375 = vpop.f32.mrb[0].mxu0
      %v1376 = vadd.f32 %v1271, %v1375
      %v1377 = vpop.f32.mrb[0].mxu0
      %1378 = vmatprep.mubr.f32.mxu0 0.0
      %1379 = vmatmul.mubr.f32.gmra.mrb[0].mxu0 %v1184
      %v1380 = vpop.f32.mrb[0].mxu0
      %v1381 = vadd.f32 %v1276, %v1380
      %v1382 = vpop.f32.mrb[0].mxu0
      %1383 = vmatprep.mubr.f32.mxu0 0.0
      %1384 = vmatmul.mubr.f32.gmra.mrb[0].mxu0 %v1187
      %v1385 = vpop.f32.mrb[0].mxu0
      %v1386 = vadd.f32 %v1281, %v1385
      %v1387 = vpop.f32.mrb[0].mxu0
      %1388 = vmatprep.mubr.f32.mxu0 0.0
      %1389 = vmatmul.mubr.f32.gmra.mrb[0].mxu0 %v1190
      %v1390 = vpop.f32.mrb[0].mxu0
      %v1391 = vadd.f32 %v1286, %v1390
      %v1392 = vpop.f32.mrb[0].mxu0
      %1393 = vmatprep.mubr.f32.mxu0 0.0
      %1394 = vmatmul.mubr.f32.gmra.mrb[0].mxu0 %v1193
      %v1395 = vpop.f32.mrb[0].mxu0
      %v1396 = vadd.f32 %v1291, %v1395
      %v1397 = vpop.f32.mrb[0].mxu0
      %1398 = vmatprep.mubr.f32.mxu0 0.0
      %1399 = vmatmul.mubr.f32.gmra.mrb[0].mxu0 %v1196
      %v1400 = vpop.f32.mrb[0].mxu0
      %v1401 = vadd.f32 %v1296, %v1400
      %v1402 = vpop.f32.mrb[0].mxu0
      %1403 = vmatprep.mubr.f32.mxu0 0.0
      %1404 = vmatmul.mubr.f32.gmra.mrb[0].mxu0 %v1199
      %v1405 = vpop.f32.mrb[0].mxu0
      %v1406 = vadd.f32 %v1301, %v1405
      %v1407 = vpop.f32.mrb[0].mxu0
      %1408 = vmatprep.mubr.f32.mxu0 0.0
      %1409 = vmatmul.mubr.f32.gmra.mrb[0].mxu0 %v1202
      %v1410 = vpop.f32.mrb[0].mxu0
      %v1411 = vadd.f32 %v1306, %v1410
      %v1412 = vpop.f32.mrb[0].mxu0
      %1413 = vdwg.mxu0
      %v1414 = vsel %vm506, %v1376, 0.0
      %v1415 = vsel %vm506, %v1381, 0.0
      %v1416 = vadd.f32 %v1414, %v1415
      %v1417 = vsel %vm506, %v1386, 0.0
      %v1418 = vadd.f32 %v1416, %v1417
      %v1419 = vsel %vm506, %v1391, 0.0
      %v1420 = vadd.f32 %v1418, %v1419
      %v1421 = vsel %vm506, %v1396, 0.0
      %v1422 = vadd.f32 %v1420, %v1421
      %v1423 = vsel %vm506, %v1401, 0.0
      %v1424 = vadd.f32 %v1422, %v1423
      %v1425 = vsel %vm506, %v1406, 0.0
      %v1426 = vadd.f32 %v1424, %v1425
      %v1427 = vsel %vm506, %v1411, 0.0
      %v1428 = vadd.f32 %v1426, %v1427
      %v1429 = vrot.slane %v1428, 4
      %v1430 = vadd.f32 %v1428, %v1429
      %v1431 = vrot.slane %v1430, 2
      %v1432 = vadd.f32 %v1430, %v1431
      %v1433 = vrot.slane %v1432, 1
      %v1434 = vadd.f32 %v1432, %v1433
      %v1435 = vrcp.pop 64.0
      %v1436 = vmul.f32 %v1434, %v1435
      %v1437 = vsub.f32 %v1376, %v1436
      %v1438 = vsub.f32 %v1381, %v1436
      %v1439 = vsub.f32 %v1386, %v1436
      %v1440 = vsub.f32 %v1391, %v1436
      %v1441 = vsub.f32 %v1396, %v1436
      %v1442 = vsub.f32 %v1401, %v1436
      %v1443 = vsub.f32 %v1406, %v1436
      %v1444 = vsub.f32 %v1411, %v1436
      %v1445 = vmul.f32 %v1437, %v1437
      %v1446 = vmul.f32 %v1438, %v1438
      %v1447 = vmul.f32 %v1439, %v1439
      %v1448 = vmul.f32 %v1440, %v1440
      %v1449 = vmul.f32 %v1441, %v1441
      %v1450 = vmul.f32 %v1442, %v1442
      %v1451 = vmul.f32 %v1443, %v1443
      %v1452 = vmul.f32 %v1444, %v1444
      %v1453 = vsel %vm506, %v1445, 0.0
      %v1454 = vsel %vm506, %v1446, 0.0
      %v1455 = vadd.f32 %v1453, %v1454
      %v1456 = vsel %vm506, %v1447, 0.0
      %v1457 = vadd.f32 %v1455, %v1456
      %v1458 = vsel %vm506, %v1448, 0.0
      %v1459 = vadd.f32 %v1457, %v1458
      %v1460 = vsel %vm506, %v1449, 0.0
      %v1461 = vadd.f32 %v1459, %v1460
      %v1462 = vsel %vm506, %v1450, 0.0
      %v1463 = vadd.f32 %v1461, %v1462
      %v1464 = vsel %vm506, %v1451, 0.0
      %v1465 = vadd.f32 %v1463, %v1464
      %v1466 = vsel %vm506, %v1452, 0.0
      %v1467 = vadd.f32 %v1465, %v1466
      %v1468 = vrot.slane %v1467, 4
      %v1469 = vadd.f32 %v1467, %v1468
      %v1470 = vrot.slane %v1469, 2
      %v1471 = vadd.f32 %v1469, %v1470
      %v1472 = vrot.slane %v1471, 1
      %v1473 = vadd.f32 %v1471, %v1472
      %v1474 = vmul.f32 %v1473, %v1435
      %v1475 = vadd.f32 %v1474, 1e-05
      %v1476 = vrsqrt.pop %v1475
      %v1477 = vmul.f32 %v1437, %v1476
      %v1478 = vmul.f32 %v1438, %v1476
      %v1479 = vmul.f32 %v1439, %v1476
      %v1480 = vmul.f32 %v1440, %v1476
      %v1481 = vmul.f32 %v1441, %v1476
      %v1482 = vmul.f32 %v1442, %v1476
      %v1483 = vmul.f32 %v1443, %v1476
      %v1484 = vmul.f32 %v1444, %v1476
      %v1485 = vld [vmem:[%s6] sm:$0x1]
      %v1487 = vlaneseq
      %v1488 = vshrl.u32 %v1487, 7
      %v1489 = vsub.s32 0, %v1488
      %v1490 = vrot.slane %v1485, %v1489
      %v1492 = vmul.f32 %v1477, %v1490
      %v1493 = vmul.f32 %v1478, %v1490
      %v1494 = vmul.f32 %v1479, %v1490
      %v1495 = vmul.f32 %v1480, %v1490
      %v1496 = vmul.f32 %v1481, %v1490
      %v1497 = vmul.f32 %v1482, %v1490
      %v1498 = vmul.f32 %v1483, %v1490
      %v1499 = vmul.f32 %v1484, %v1490
      %v1500 = vld [vmem:[%s7] sm:$0x1]
      %v1502 = vlaneseq
      %v1503 = vshrl.u32 %v1502, 7
      %v1504 = vsub.s32 0, %v1503
      %v1505 = vrot.slane %v1500, %v1504
      %v1507 = vadd.f32 %v1492, %v1505
      %v1508 = vadd.f32 %v1493, %v1505
      %v1509 = vadd.f32 %v1494, %v1505
      %v1510 = vadd.f32 %v1495, %v1505
      %v1511 = vadd.f32 %v1496, %v1505
      %v1512 = vadd.f32 %v1497, %v1505
      %v1513 = vadd.f32 %v1498, %v1505
      %v1514 = vadd.f32 %v1499, %v1505
      %1515 = vst.msk [vmem:[#allocation3] sm:$0xff] %vm506, 0.0
      %1516 = vst.msk [vmem:[#allocation3 + $0x18] sm:$0x1] %vm508, 0.0
      %v1517 = vsel %vm630, %v1507, 0.0
      %v1518 = vsel %vm631, %v1508, 0.0
      %v1519 = vsel %vm632, %v1509, 0.0
      %v1520 = vsel %vm633, %v1510, 0.0
      %v1521 = vsel %vm634, %v1511, 0.0
      %v1522 = vsel %vm635, %v1512, 0.0
      %v1523 = vsel %vm636, %v1513, 0.0
      %v1531 = vrot.slane %v1517, 7
      %v1532 = vrot.slane %v1518, 7
      %v1533 = vsel %vm651, %v1531, %v1532
      %v1534 = vrot.slane %v1519, 7
      %v1535 = vsel %vm651, %v1532, %v1534
      %v1536 = vrot.slane %v1520, 7
      %v1537 = vsel %vm651, %v1534, %v1536
      %v1538 = vrot.slane %v1521, 7
      %v1539 = vsel %vm651, %v1536, %v1538
      %v1540 = vrot.slane %v1522, 7
      %v1541 = vsel %vm651, %v1538, %v1540
      %v1542 = vrot.slane %v1523, 7
      %v1543 = vsel %vm651, %v1540, %v1542
      %1551 = vst.msk [vmem:[#allocation3 + $0x18] sm:$0xfe] %vm672, %v1531
      %1552 = vst.msk [vmem:[#allocation3 + $0x30] sm:$0xff] %vm506, %v1533
      %1553 = vst.msk [vmem:[#allocation3 + $0x48] sm:$0xff] %vm506, %v1535
      %1554 = vst.msk [vmem:[#allocation3 + $0x60] sm:$0xff] %vm506, %v1537
      %1555 = vst.msk [vmem:[#allocation3 + $0x78] sm:$0xff] %vm506, %v1539
      %1556 = vst.msk [vmem:[#allocation3 + $0x90] sm:$0xff] %vm506, %v1541
      %1557 = vst.msk [vmem:[#allocation3 + $0xa8] sm:$0xff] %vm506, %v1543
      %1558 = vst.msk [vmem:[#allocation3] sm:$0xff] %vm680, 0.0
      %1566 = vrot.lane.b32.xlu0 %v1507, 32
      %v1567 = vpop.permute.xlu0 %1566
      %1568 = vrot.lane.b32.xlu0 %v1508, 32
      %v1569 = vpop.permute.xlu0 %1568
      %1570 = vrot.lane.b32.xlu0 %v1509, 32
      %v1571 = vpop.permute.xlu0 %1570
      %1572 = vrot.lane.b32.xlu0 %v1510, 32
      %v1573 = vpop.permute.xlu0 %1572
      %1574 = vrot.lane.b32.xlu0 %v1511, 32
      %v1575 = vpop.permute.xlu0 %1574
      %1576 = vrot.lane.b32.xlu0 %v1512, 32
      %v1577 = vpop.permute.xlu0 %1576
      %1578 = vrot.lane.b32.xlu0 %v1513, 32
      %v1579 = vpop.permute.xlu0 %1578
      %1587 = vst.msk [vmem:[#allocation3 + $0x18] sm:$0xff] %vm680, %v1567
      %1588 = vst.msk [vmem:[#allocation3 + $0x30] sm:$0xff] %vm680, %v1569
      %1589 = vst.msk [vmem:[#allocation3 + $0x48] sm:$0xff] %vm680, %v1571
      %1590 = vst.msk [vmem:[#allocation3 + $0x60] sm:$0xff] %vm680, %v1573
      %1591 = vst.msk [vmem:[#allocation3 + $0x78] sm:$0xff] %vm680, %v1575
      %1592 = vst.msk [vmem:[#allocation3 + $0x90] sm:$0xff] %vm680, %v1577
      %1593 = vst.msk [vmem:[#allocation3 + $0xa8] sm:$0xff] %vm680, %v1579
      %vm1594 = vcmask 784896
      %1595 = vst.msk [vmem:[#allocation3] sm:$0x7f] %vm1594, 0.0
      %v1596 = vadd.s32 %v511, 7
      %v1597 = vadd.s32 %v512, 7
      %v1598 = vadd.s32 %v513, 7
      %v1599 = vadd.s32 %v514, 7
      %v1600 = vadd.s32 %v515, 7
      %v1601 = vadd.s32 %v516, 7
      %v1602 = vadd.s32 %v517, 7
      %v1603 = vadd.s32 %v756, 7
      %vm1604 = vcmp.lt.s32.totalorder %v1596, 0
      %v1605 = vsub.s32 0, %v1596
      %v1606 = vsel %vm1604, %v1605, %v1596
      %v1607 = vshrl.u32 %v1606, 3
      %v1608 = vand.u32 %v1606, 7
      %v1609 = vsub.s32 0, %v1608
      %v1610 = vsel %vm1604, %v1609, %v1608
      %vm1611 = vcmp.lt.s32.totalorder %v1597, 0
      %v1612 = vsub.s32 0, %v1597
      %v1613 = vsel %vm1611, %v1612, %v1597
      %v1614 = vshrl.u32 %v1613, 3
      %v1615 = vand.u32 %v1613, 7
      %v1616 = vsub.s32 0, %v1615
      %v1617 = vsel %vm1611, %v1616, %v1615
      %vm1618 = vcmp.lt.s32.totalorder %v1598, 0
      %v1619 = vsub.s32 0, %v1598
      %v1620 = vsel %vm1618, %v1619, %v1598
      %v1621 = vshrl.u32 %v1620, 3
      %v1622 = vand.u32 %v1620, 7
      %v1623 = vsub.s32 0, %v1622
      %v1624 = vsel %vm1618, %v1623, %v1622
      %vm1625 = vcmp.lt.s32.totalorder %v1599, 0
      %v1626 = vsub.s32 0, %v1599
      %v1627 = vsel %vm1625, %v1626, %v1599
      %v1628 = vshrl.u32 %v1627, 3
      %v1629 = vand.u32 %v1627, 7
      %v1630 = vsub.s32 0, %v1629
      %v1631 = vsel %vm1625, %v1630, %v1629
      %vm1632 = vcmp.lt.s32.totalorder %v1600, 0
      %v1633 = vsub.s32 0, %v1600
      %v1634 = vsel %vm1632, %v1633, %v1600
      %v1635 = vshrl.u32 %v1634, 3
      %v1636 = vand.u32 %v1634, 7
      %v1637 = vsub.s32 0, %v1636
      %v1638 = vsel %vm1632, %v1637, %v1636
      %vm1639 = vcmp.lt.s32.totalorder %v1601, 0
      %v1640 = vsub.s32 0, %v1601
      %v1641 = vsel %vm1639, %v1640, %v1601
      %v1642 = vshrl.u32 %v1641, 3
      %v1643 = vand.u32 %v1641, 7
      %v1644 = vsub.s32 0, %v1643
      %v1645 = vsel %vm1639, %v1644, %v1643
      %vm1646 = vcmp.lt.s32.totalorder %v1602, 0
      %v1647 = vsub.s32 0, %v1602
      %v1648 = vsel %vm1646, %v1647, %v1602
      %v1649 = vshrl.u32 %v1648, 3
      %v1650 = vand.u32 %v1648, 7
      %v1651 = vsub.s32 0, %v1650
      %v1652 = vsel %vm1646, %v1651, %v1650
      %vm1653 = vcmp.lt.s32.totalorder %v1603, 0
      %v1654 = vsub.s32 0, %v1603
      %v1655 = vsel %vm1653, %v1654, %v1603
      %v1656 = vshrl.u32 %v1655, 3
      %v1657 = vand.u32 %v1655, 7
      %v1658 = vsub.s32 0, %v1657
      %v1659 = vsel %vm1653, %v1658, %v1657
      %vm1660 = vcmp.ne.s32.totalorder %v1610, 0
      %vm1661 = vcmp.ne.s32.totalorder %v1617, 0
      %vm1662 = vcmp.ne.s32.totalorder %v1624, 0
      %vm1663 = vcmp.ne.s32.totalorder %v1631, 0
      %vm1664 = vcmp.ne.s32.totalorder %v1638, 0
      %vm1665 = vcmp.ne.s32.totalorder %v1645, 0
      %vm1666 = vcmp.ne.s32.totalorder %v1652, 0
      %vm1667 = vcmp.ne.s32.totalorder %v1659, 0
      %vm1668 = vcmp.lt.s32.totalorder %v1610, 0
      %vm1669 = vcmp.lt.s32.totalorder %v1617, 0
      %vm1670 = vcmp.lt.s32.totalorder %v1624, 0
      %vm1671 = vcmp.lt.s32.totalorder %v1631, 0
      %vm1672 = vcmp.lt.s32.totalorder %v1638, 0
      %vm1673 = vcmp.lt.s32.totalorder %v1645, 0
      %vm1674 = vcmp.lt.s32.totalorder %v1652, 0
      %vm1675 = vcmp.lt.s32.totalorder %v1659, 0
      %vm1676 = vmand %vm1668, %vm1660
      %vm1677 = vmand %vm1669, %vm1661
      %vm1678 = vmand %vm1670, %vm1662
      %vm1679 = vmand %vm1671, %vm1663
      %vm1680 = vmand %vm1672, %vm1664
      %vm1681 = vmand %vm1673, %vm1665
      %vm1682 = vmand %vm1674, %vm1666
      %vm1683 = vmand %vm1675, %vm1667
      %v1684 = vadd.s32 %v1610, 8
      %v1685 = vadd.s32 %v1617, 8
      %v1686 = vadd.s32 %v1624, 8
      %v1687 = vadd.s32 %v1631, 8
      %v1688 = vadd.s32 %v1638, 8
      %v1689 = vadd.s32 %v1645, 8
      %v1690 = vadd.s32 %v1652, 8
      %v1691 = vadd.s32 %v1659, 8
      %v1692 = vsel %vm1676, %v1684, %v1610
      %v1693 = vsel %vm1677, %v1685, %v1617
      %v1694 = vsel %vm1678, %v1686, %v1624
      %v1695 = vsel %vm1679, %v1687, %v1631
      %v1696 = vsel %vm1680, %v1688, %v1638
      %v1697 = vsel %vm1681, %v1689, %v1645
      %v1698 = vsel %vm1682, %v1690, %v1652
      %v1699 = vsel %vm1683, %v1691, %v1659
      %v1700 = vadd.s32 %v1692, 1
      %v1701 = vadd.s32 %v1693, 1
      %v1702 = vadd.s32 %v1694, 1
      %v1703 = vadd.s32 %v1695, 1
      %v1704 = vadd.s32 %v1696, 1
      %v1705 = vadd.s32 %v1697, 1
      %v1706 = vadd.s32 %v1698, 1
      %v1707 = vadd.s32 %v1699, 1
      %vm1708 = vcmp.ge.s32.totalorder %v1700, 0
      %vm1709 = vcmp.ge.s32.totalorder %v1701, 0
      %vm1710 = vcmp.ge.s32.totalorder %v1702, 0
      %vm1711 = vcmp.ge.s32.totalorder %v1703, 0
      %vm1712 = vcmp.ge.s32.totalorder %v1704, 0
      %vm1713 = vcmp.ge.s32.totalorder %v1705, 0
      %vm1714 = vcmp.ge.s32.totalorder %v1706, 0
      %vm1715 = vcmp.ge.s32.totalorder %v1707, 0
      %vm1716 = vcmp.lt.s32.totalorder %v1700, 8
      %vm1717 = vcmp.lt.s32.totalorder %v1701, 8
      %vm1718 = vcmp.lt.s32.totalorder %v1702, 8
      %vm1719 = vcmp.lt.s32.totalorder %v1703, 8
      %vm1720 = vcmp.lt.s32.totalorder %v1704, 8
      %vm1721 = vcmp.lt.s32.totalorder %v1705, 8
      %vm1722 = vcmp.lt.s32.totalorder %v1706, 8
      %vm1723 = vcmp.lt.s32.totalorder %v1707, 8
      %vm1724 = vmand %vm1708, %vm1716
      %vm1725 = vmand %vm1709, %vm1717
      %vm1726 = vmand %vm1710, %vm1718
      %vm1727 = vmand %vm1711, %vm1719
      %vm1728 = vmand %vm1712, %vm1720
      %vm1729 = vmand %vm1713, %vm1721
      %vm1730 = vmand %vm1714, %vm1722
      %vm1731 = vmand %vm1715, %vm1723
      %v1732 = vsel %vm1724, %v1507, 0.0
      %v1733 = vsel %vm1725, %v1508, 0.0
      %v1734 = vsel %vm1726, %v1509, 0.0
      %v1735 = vsel %vm1727, %v1510, 0.0
      %v1736 = vsel %vm1728, %v1511, 0.0
      %v1737 = vsel %vm1729, %v1512, 0.0
      %v1738 = vsel %vm1730, %v1513, 0.0
      %v1739 = vsel %vm1731, %v1514, 0.0
      %vm1748 = vcmask 1046528
      %v1749 = vrot.slane %v1732, 1
      %v1750 = vrot.slane %v1733, 1
      %v1751 = vsel %vm1748, %v1749, %v1750
      %v1752 = vrot.slane %v1734, 1
      %v1753 = vsel %vm1748, %v1750, %v1752
      %v1754 = vrot.slane %v1735, 1
      %v1755 = vsel %vm1748, %v1752, %v1754
      %v1756 = vrot.slane %v1736, 1
      %v1757 = vsel %vm1748, %v1754, %v1756
      %v1758 = vrot.slane %v1737, 1
      %v1759 = vsel %vm1748, %v1756, %v1758
      %v1760 = vrot.slane %v1738, 1
      %v1761 = vsel %vm1748, %v1758, %v1760
      %v1762 = vrot.slane %v1739, 1
      %v1763 = vsel %vm1748, %v1760, %v1762
      %1764 = vrot.lane.b32.xlu0 %v1749, 64
      %v1765 = vpop.permute.xlu0 %1764
      %1766 = vrot.lane.b32.xlu0 %v1751, 64
      %v1767 = vpop.permute.xlu0 %1766
      %1768 = vrot.lane.b32.xlu0 %v1753, 64
      %v1769 = vpop.permute.xlu0 %1768
      %1770 = vrot.lane.b32.xlu0 %v1755, 64
      %v1771 = vpop.permute.xlu0 %1770
      %1772 = vrot.lane.b32.xlu0 %v1757, 64
      %v1773 = vpop.permute.xlu0 %1772
      %1774 = vrot.lane.b32.xlu0 %v1759, 64
      %v1775 = vpop.permute.xlu0 %1774
      %1776 = vrot.lane.b32.xlu0 %v1761, 64
      %v1777 = vpop.permute.xlu0 %1776
      %1778 = vrot.lane.b32.xlu0 %v1763, 64
      %v1779 = vpop.permute.xlu0 %1778
      %vm1788 = vcmask 785927
      %1789 = vst.msk [vmem:[#allocation3] sm:$0x80] %vm1788, %v1765
      %1790 = vst.msk [vmem:[#allocation3 + $0x18] sm:$0xff] %vm717, %v1767
      %1791 = vst.msk [vmem:[#allocation3 + $0x30] sm:$0xff] %vm717, %v1769
      %1792 = vst.msk [vmem:[#allocation3 + $0x48] sm:$0xff] %vm717, %v1771
      %1793 = vst.msk [vmem:[#allocation3 + $0x60] sm:$0xff] %vm717, %v1773
      %1794 = vst.msk [vmem:[#allocation3 + $0x78] sm:$0xff] %vm717, %v1775
      %1795 = vst.msk [vmem:[#allocation3 + $0x90] sm:$0xff] %vm717, %v1777
      %1796 = vst.msk [vmem:[#allocation3 + $0xa8] sm:$0xff] %vm717, %v1779
      %1797 = vst.msk [vmem:[#allocation3] sm:$0x1] %vm754, 0.0
      %v1798 = vsel %vm885, %v1507, 0.0
      %v1799 = vsel %vm886, %v1508, 0.0
      %v1800 = vsel %vm887, %v1509, 0.0
      %v1801 = vsel %vm888, %v1510, 0.0
      %v1802 = vsel %vm889, %v1511, 0.0
      %v1803 = vsel %vm890, %v1512, 0.0
      %v1804 = vsel %vm891, %v1513, 0.0
      %v1805 = vsel %vm892, %v1514, 0.0
      %v1814 = vrot.slane %v1798, 7
      %v1815 = vrot.slane %v1799, 7
      %v1816 = vsel %vm651, %v1814, %v1815
      %v1817 = vrot.slane %v1800, 7
      %v1818 = vsel %vm651, %v1815, %v1817
      %v1819 = vrot.slane %v1801, 7
      %v1820 = vsel %vm651, %v1817, %v1819
      %v1821 = vrot.slane %v1802, 7
      %v1822 = vsel %vm651, %v1819, %v1821
      %v1823 = vrot.slane %v1803, 7
      %v1824 = vsel %vm651, %v1821, %v1823
      %v1825 = vrot.slane %v1804, 7
      %v1826 = vsel %vm651, %v1823, %v1825
      %v1827 = vrot.slane %v1805, 7
      %v1828 = vsel %vm651, %v1825, %v1827
      %1829 = vrot.lane.b32.xlu0 %v1814, 96
      %v1830 = vpop.permute.xlu0 %1829
      %1831 = vrot.lane.b32.xlu0 %v1816, 96
      %v1832 = vpop.permute.xlu0 %1831
      %1833 = vrot.lane.b32.xlu0 %v1818, 96
      %v1834 = vpop.permute.xlu0 %1833
      %1835 = vrot.lane.b32.xlu0 %v1820, 96
      %v1836 = vpop.permute.xlu0 %1835
      %1837 = vrot.lane.b32.xlu0 %v1822, 96
      %v1838 = vpop.permute.xlu0 %1837
      %1839 = vrot.lane.b32.xlu0 %v1824, 96
      %v1840 = vpop.permute.xlu0 %1839
      %1841 = vrot.lane.b32.xlu0 %v1826, 96
      %v1842 = vpop.permute.xlu0 %1841
      %1843 = vrot.lane.b32.xlu0 %v1828, 96
      %v1844 = vpop.permute.xlu0 %1843
      %1853 = vst.msk [vmem:[#allocation3] sm:$0xfe] %vm948, %v1830
      %1854 = vst.msk [vmem:[#allocation3 + $0x18] sm:$0xff] %vm950, %v1832
      %1855 = vst.msk [vmem:[#allocation3 + $0x30] sm:$0xff] %vm950, %v1834
      %1856 = vst.msk [vmem:[#allocation3 + $0x48] sm:$0xff] %vm950, %v1836
      %1857 = vst.msk [vmem:[#allocation3 + $0x60] sm:$0xff] %vm950, %v1838
      %1858 = vst.msk [vmem:[#allocation3 + $0x78] sm:$0xff] %vm950, %v1840
      %1859 = vst.msk [vmem:[#allocation3 + $0x90] sm:$0xff] %vm950, %v1842
      %1860 = vst.msk [vmem:[#allocation3 + $0xa8] sm:$0xff] %vm950, %v1844
      %1861 = vst.msk [vmem:[#allocation3 + $0x8] sm:$0xff] %vm506, %v1507
      %1862 = vst.msk [vmem:[#allocation3 + $0x20] sm:$0xff] %vm506, %v1508
      %1863 = vst.msk [vmem:[#allocation3 + $0x38] sm:$0xff] %vm506, %v1509
      %1864 = vst.msk [vmem:[#allocation3 + $0x50] sm:$0xff] %vm506, %v1510
      %1865 = vst.msk [vmem:[#allocation3 + $0x68] sm:$0xff] %vm506, %v1511
      %1866 = vst.msk [vmem:[#allocation3 + $0x80] sm:$0xff] %vm506, %v1512
      %1867 = vst.msk [vmem:[#allocation3 + $0x98] sm:$0xff] %vm506, %v1513
      %1868 = vst.msk [vmem:[#allocation3 + $0xb0] sm:$0xff] %vm506, %v1514
      %vm1869 = vcmask 516352
      %1870 = vst.msk [vmem:[#allocation3 + $0xb7] sm:$0x1] %vm1869, 0.0
      %vm1871 = vcmp.lt.s32.totalorder %v511, 0
      %v1872 = vsub.s32 0, %v511
      %v1873 = vsel %vm1871, %v1872, %v511
      %v1874 = vshrl.u32 %v1873, 3
      %v1875 = vand.u32 %v1873, 7
      %v1876 = vsub.s32 0, %v1875
      %v1877 = vsel %vm1871, %v1876, %v1875
      %vm1878 = vcmp.lt.s32.totalorder %v512, 0
      %v1879 = vsub.s32 0, %v512
      %v1880 = vsel %vm1878, %v1879, %v512
      %v1881 = vshrl.u32 %v1880, 3
      %v1882 = vand.u32 %v1880, 7
      %v1883 = vsub.s32 0, %v1882
      %v1884 = vsel %vm1878, %v1883, %v1882
      %vm1885 = vcmp.lt.s32.totalorder %v513, 0
      %v1886 = vsub.s32 0, %v513
      %v1887 = vsel %vm1885, %v1886, %v513
      %v1888 = vshrl.u32 %v1887, 3
      %v1889 = vand.u32 %v1887, 7
      %v1890 = vsub.s32 0, %v1889
      %v1891 = vsel %vm1885, %v1890, %v1889
      %vm1892 = vcmp.lt.s32.totalorder %v514, 0
      %v1893 = vsub.s32 0, %v514
      %v1894 = vsel %vm1892, %v1893, %v514
      %v1895 = vshrl.u32 %v1894, 3
      %v1896 = vand.u32 %v1894, 7
      %v1897 = vsub.s32 0, %v1896
      %v1898 = vsel %vm1892, %v1897, %v1896
      %vm1899 = vcmp.lt.s32.totalorder %v515, 0
      %v1900 = vsub.s32 0, %v515
      %v1901 = vsel %vm1899, %v1900, %v515
      %v1902 = vshrl.u32 %v1901, 3
      %v1903 = vand.u32 %v1901, 7
      %v1904 = vsub.s32 0, %v1903
      %v1905 = vsel %vm1899, %v1904, %v1903
      %vm1906 = vcmp.lt.s32.totalorder %v516, 0
      %v1907 = vsub.s32 0, %v516
      %v1908 = vsel %vm1906, %v1907, %v516
      %v1909 = vshrl.u32 %v1908, 3
      %v1910 = vand.u32 %v1908, 7
      %v1911 = vsub.s32 0, %v1910
      %v1912 = vsel %vm1906, %v1911, %v1910
      %vm1913 = vcmp.lt.s32.totalorder %v517, 0
      %v1914 = vsub.s32 0, %v517
      %v1915 = vsel %vm1913, %v1914, %v517
      %v1916 = vshrl.u32 %v1915, 3
      %v1917 = vand.u32 %v1915, 7
      %v1918 = vsub.s32 0, %v1917
      %v1919 = vsel %vm1913, %v1918, %v1917
      %vm1920 = vcmp.lt.s32.totalorder %v756, 0
      %v1921 = vsub.s32 0, %v756
      %v1922 = vsel %vm1920, %v1921, %v756
      %v1923 = vshrl.u32 %v1922, 3
      %v1924 = vand.u32 %v1922, 7
      %v1925 = vsub.s32 0, %v1924
      %v1926 = vsel %vm1920, %v1925, %v1924
      %vm1927 = vcmp.ne.s32.totalorder %v1877, 0
      %vm1928 = vcmp.ne.s32.totalorder %v1884, 0
      %vm1929 = vcmp.ne.s32.totalorder %v1891, 0
      %vm1930 = vcmp.ne.s32.totalorder %v1898, 0
      %vm1931 = vcmp.ne.s32.totalorder %v1905, 0
      %vm1932 = vcmp.ne.s32.totalorder %v1912, 0
      %vm1933 = vcmp.ne.s32.totalorder %v1919, 0
      %vm1934 = vcmp.ne.s32.totalorder %v1926, 0
      %vm1935 = vcmp.lt.s32.totalorder %v1877, 0
      %vm1936 = vcmp.lt.s32.totalorder %v1884, 0
      %vm1937 = vcmp.lt.s32.totalorder %v1891, 0
      %vm1938 = vcmp.lt.s32.totalorder %v1898, 0
      %vm1939 = vcmp.lt.s32.totalorder %v1905, 0
      %vm1940 = vcmp.lt.s32.totalorder %v1912, 0
      %vm1941 = vcmp.lt.s32.totalorder %v1919, 0
      %vm1942 = vcmp.lt.s32.totalorder %v1926, 0
      %vm1943 = vmand %vm1935, %vm1927
      %vm1944 = vmand %vm1936, %vm1928
      %vm1945 = vmand %vm1937, %vm1929
      %vm1946 = vmand %vm1938, %vm1930
      %vm1947 = vmand %vm1939, %vm1931
      %vm1948 = vmand %vm1940, %vm1932
      %vm1949 = vmand %vm1941, %vm1933
      %vm1950 = vmand %vm1942, %vm1934
      %v1951 = vadd.s32 %v1877, 8
      %v1952 = vadd.s32 %v1884, 8
      %v1953 = vadd.s32 %v1891, 8
      %v1954 = vadd.s32 %v1898, 8
      %v1955 = vadd.s32 %v1905, 8
      %v1956 = vadd.s32 %v1912, 8
      %v1957 = vadd.s32 %v1919, 8
      %v1958 = vadd.s32 %v1926, 8
      %v1959 = vsel %vm1943, %v1951, %v1877
      %v1960 = vsel %vm1944, %v1952, %v1884
      %v1961 = vsel %vm1945, %v1953, %v1891
      %v1962 = vsel %vm1946, %v1954, %v1898
      %v1963 = vsel %vm1947, %v1955, %v1905
      %v1964 = vsel %vm1948, %v1956, %v1912
      %v1965 = vsel %vm1949, %v1957, %v1919
      %v1966 = vsel %vm1950, %v1958, %v1926
      %v1967 = vadd.s32 %v1959, 1
      %v1968 = vadd.s32 %v1960, 1
      %v1969 = vadd.s32 %v1961, 1
      %v1970 = vadd.s32 %v1962, 1
      %v1971 = vadd.s32 %v1963, 1
      %v1972 = vadd.s32 %v1964, 1
      %v1973 = vadd.s32 %v1965, 1
      %v1974 = vadd.s32 %v1966, 1
      %vm1975 = vcmp.ge.s32.totalorder %v1967, 0
      %vm1976 = vcmp.ge.s32.totalorder %v1968, 0
      %vm1977 = vcmp.ge.s32.totalorder %v1969, 0
      %vm1978 = vcmp.ge.s32.totalorder %v1970, 0
      %vm1979 = vcmp.ge.s32.totalorder %v1971, 0
      %vm1980 = vcmp.ge.s32.totalorder %v1972, 0
      %vm1981 = vcmp.ge.s32.totalorder %v1973, 0
      %vm1982 = vcmp.ge.s32.totalorder %v1974, 0
      %vm1983 = vcmp.lt.s32.totalorder %v1967, 8
      %vm1984 = vcmp.lt.s32.totalorder %v1968, 8
      %vm1985 = vcmp.lt.s32.totalorder %v1969, 8
      %vm1986 = vcmp.lt.s32.totalorder %v1970, 8
      %vm1987 = vcmp.lt.s32.totalorder %v1971, 8
      %vm1988 = vcmp.lt.s32.totalorder %v1972, 8
      %vm1989 = vcmp.lt.s32.totalorder %v1973, 8
      %vm1990 = vcmp.lt.s32.totalorder %v1974, 8
      %vm1991 = vmand %vm1975, %vm1983
      %vm1992 = vmand %vm1976, %vm1984
      %vm1993 = vmand %vm1977, %vm1985
      %vm1994 = vmand %vm1978, %vm1986
      %vm1995 = vmand %vm1979, %vm1987
      %vm1996 = vmand %vm1980, %vm1988
      %vm1997 = vmand %vm1981, %vm1989
      %vm1998 = vmand %vm1982, %vm1990
      %v2000 = vrot.slane %v1507, 1
      %v2001 = vrot.slane %v1508, 1
      %v2002 = vsel %vm1748, %v2000, %v2001
      %v2003 = vrot.slane %v1509, 1
      %v2004 = vsel %vm1748, %v2001, %v2003
      %v2005 = vrot.slane %v1510, 1
      %v2006 = vsel %vm1748, %v2003, %v2005
      %v2007 = vrot.slane %v1511, 1
      %v2008 = vsel %vm1748, %v2005, %v2007
      %v2009 = vrot.slane %v1512, 1
      %v2010 = vsel %vm1748, %v2007, %v2009
      %v2011 = vrot.slane %v1513, 1
      %v2012 = vsel %vm1748, %v2009, %v2011
      %v2013 = vrot.slane %v1514, 1
      %v2014 = vsel %vm1748, %v2011, %v2013
      %v2023 = vsel %vm1991, %v2002, 0.0
      %v2024 = vsel %vm1992, %v2004, 0.0
      %v2025 = vsel %vm1993, %v2006, 0.0
      %v2026 = vsel %vm1994, %v2008, 0.0
      %v2027 = vsel %vm1995, %v2010, 0.0
      %v2028 = vsel %vm1996, %v2012, 0.0
      %v2029 = vsel %vm1997, %v2014, 0.0
      %v2030 = vsel %vm1998, %v2013, 0.0
      %2039 = vrot.lane.b32.xlu0 %v2023, 32
      %v2040 = vpop.permute.xlu0 %2039
      %2041 = vrot.lane.b32.xlu0 %v2024, 32
      %v2042 = vpop.permute.xlu0 %2041
      %2043 = vrot.lane.b32.xlu0 %v2025, 32
      %v2044 = vpop.permute.xlu0 %2043
      %2045 = vrot.lane.b32.xlu0 %v2026, 32
      %v2046 = vpop.permute.xlu0 %2045
      %2047 = vrot.lane.b32.xlu0 %v2027, 32
      %v2048 = vpop.permute.xlu0 %2047
      %2049 = vrot.lane.b32.xlu0 %v2028, 32
      %v2050 = vpop.permute.xlu0 %2049
      %2051 = vrot.lane.b32.xlu0 %v2029, 32
      %v2052 = vpop.permute.xlu0 %2051
      %2053 = vrot.lane.b32.xlu0 %v2030, 32
      %v2054 = vpop.permute.xlu0 %2053
      %2063 = vst.msk [vmem:[#allocation3 + $0x8] sm:$0xff] %vm680, %v2040
      %2064 = vst.msk [vmem:[#allocation3 + $0x20] sm:$0xff] %vm680, %v2042
      %2065 = vst.msk [vmem:[#allocation3 + $0x38] sm:$0xff] %vm680, %v2044
      %2066 = vst.msk [vmem:[#allocation3 + $0x50] sm:$0xff] %vm680, %v2046
      %2067 = vst.msk [vmem:[#allocation3 + $0x68] sm:$0xff] %vm680, %v2048
      %2068 = vst.msk [vmem:[#allocation3 + $0x80] sm:$0xff] %vm680, %v2050
      %2069 = vst.msk [vmem:[#allocation3 + $0x98] sm:$0xff] %vm680, %v2052
      %vm2070 = vcmask 522496
      %2071 = vst.msk [vmem:[#allocation3 + $0xb0] sm:$0x7f] %vm2070, %v2054
      %2072 = vst.msk [vmem:[#allocation3 + $0xb0] sm:$0xfe] %vm1063, 0.0
      %v2073 = vadd.s32 %v1959, 4294967295
      %v2074 = vadd.s32 %v1960, 4294967295
      %v2075 = vadd.s32 %v1961, 4294967295
      %v2076 = vadd.s32 %v1962, 4294967295
      %v2077 = vadd.s32 %v1963, 4294967295
      %v2078 = vadd.s32 %v1964, 4294967295
      %v2079 = vadd.s32 %v1965, 4294967295
      %v2080 = vadd.s32 %v1966, 4294967295
      %vm2081 = vcmp.ge.s32.totalorder %v2073, 0
      %vm2082 = vcmp.ge.s32.totalorder %v2074, 0
      %vm2083 = vcmp.ge.s32.totalorder %v2075, 0
      %vm2084 = vcmp.ge.s32.totalorder %v2076, 0
      %vm2085 = vcmp.ge.s32.totalorder %v2077, 0
      %vm2086 = vcmp.ge.s32.totalorder %v2078, 0
      %vm2087 = vcmp.ge.s32.totalorder %v2079, 0
      %vm2088 = vcmp.ge.s32.totalorder %v2080, 0
      %vm2089 = vcmp.lt.s32.totalorder %v2073, 8
      %vm2090 = vcmp.lt.s32.totalorder %v2074, 8
      %vm2091 = vcmp.lt.s32.totalorder %v2075, 8
      %vm2092 = vcmp.lt.s32.totalorder %v2076, 8
      %vm2093 = vcmp.lt.s32.totalorder %v2077, 8
      %vm2094 = vcmp.lt.s32.totalorder %v2078, 8
      %vm2095 = vcmp.lt.s32.totalorder %v2079, 8
      %vm2096 = vcmp.lt.s32.totalorder %v2080, 8
      %vm2097 = vmand %vm2081, %vm2089
      %vm2098 = vmand %vm2082, %vm2090
      %vm2099 = vmand %vm2083, %vm2091
      %vm2100 = vmand %vm2084, %vm2092
      %vm2101 = vmand %vm2085, %vm2093
      %vm2102 = vmand %vm2086, %vm2094
      %vm2103 = vmand %vm2087, %vm2095
      %vm2104 = vmand %vm2088, %vm2096
      %v2105 = vrot.slane %v1507, 7
      %v2106 = vrot.slane %v1508, 7
      %v2107 = vsel %vm651, %v2105, %v2106
      %v2108 = vrot.slane %v1509, 7
      %v2109 = vsel %vm651, %v2106, %v2108
      %v2110 = vrot.slane %v1510, 7
      %v2111 = vsel %vm651, %v2108, %v2110
      %v2112 = vrot.slane %v1511, 7
      %v2113 = vsel %vm651, %v2110, %v2112
      %v2114 = vrot.slane %v1512, 7
      %v2115 = vsel %vm651, %v2112, %v2114
      %v2116 = vrot.slane %v1513, 7
      %v2117 = vsel %vm651, %v2114, %v2116
      %v2118 = vrot.slane %v1514, 7
      %v2119 = vsel %vm651, %v2116, %v2118
      %v2128 = vsel %vm2097, %v2107, 0.0
      %v2129 = vsel %vm2098, %v2109, 0.0
      %v2130 = vsel %vm2099, %v2111, 0.0
      %v2131 = vsel %vm2100, %v2113, 0.0
      %v2132 = vsel %vm2101, %v2115, 0.0
      %v2133 = vsel %vm2102, %v2117, 0.0
      %v2134 = vsel %vm2103, %v2119, 0.0
      %v2135 = vsel %vm2104, %v2118, 0.0
      %2144 = vrot.lane.b32.xlu0 %v2128, 64
      %v2145 = vpop.permute.xlu0 %2144
      %2146 = vrot.lane.b32.xlu0 %v2129, 64
      %v2147 = vpop.permute.xlu0 %2146
      %2148 = vrot.lane.b32.xlu0 %v2130, 64
      %v2149 = vpop.permute.xlu0 %2148
      %2150 = vrot.lane.b32.xlu0 %v2131, 64
      %v2151 = vpop.permute.xlu0 %2150
      %2152 = vrot.lane.b32.xlu0 %v2132, 64
      %v2153 = vpop.permute.xlu0 %2152
      %2154 = vrot.lane.b32.xlu0 %v2133, 64
      %v2155 = vpop.permute.xlu0 %2154
      %2156 = vrot.lane.b32.xlu0 %v2134, 64
      %v2157 = vpop.permute.xlu0 %2156
      %2158 = vrot.lane.b32.xlu0 %v2135, 64
      %v2159 = vpop.permute.xlu0 %2158
      %2168 = vst.msk [vmem:[#allocation3 + $0x8] sm:$0xff] %vm717, %v2145
      %2169 = vst.msk [vmem:[#allocation3 + $0x20] sm:$0xff] %vm717, %v2147
      %2170 = vst.msk [vmem:[#allocation3 + $0x38] sm:$0xff] %vm717, %v2149
      %2171 = vst.msk [vmem:[#allocation3 + $0x50] sm:$0xff] %vm717, %v2151
      %2172 = vst.msk [vmem:[#allocation3 + $0x68] sm:$0xff] %vm717, %v2153
      %2173 = vst.msk [vmem:[#allocation3 + $0x80] sm:$0xff] %vm717, %v2155
      %2174 = vst.msk [vmem:[#allocation3 + $0x98] sm:$0xff] %vm717, %v2157
      %2175 = vst.msk [vmem:[#allocation3 + $0xb0] sm:$0x1] %vm1006, %v2159
      %2176 = vst.msk [vmem:[#allocation3 + $0xb0] sm:$0xff] %vm950, 0.0
      %2177 = vrot.lane.b32.xlu0 %v1508, 96
      %v2178 = vpop.permute.xlu0 %2177
      %2179 = vrot.lane.b32.xlu0 %v1509, 96
      %v2180 = vpop.permute.xlu0 %2179
      %2181 = vrot.lane.b32.xlu0 %v1510, 96
      %v2182 = vpop.permute.xlu0 %2181
      %2183 = vrot.lane.b32.xlu0 %v1511, 96
      %v2184 = vpop.permute.xlu0 %2183
      %2185 = vrot.lane.b32.xlu0 %v1512, 96
      %v2186 = vpop.permute.xlu0 %2185
      %2187 = vrot.lane.b32.xlu0 %v1513, 96
      %v2188 = vpop.permute.xlu0 %2187
      %2189 = vrot.lane.b32.xlu0 %v1514, 96
      %v2190 = vpop.permute.xlu0 %2189
      %2198 = vst.msk [vmem:[#allocation3 + $0x8] sm:$0xff] %vm950, %v2178
      %2199 = vst.msk [vmem:[#allocation3 + $0x20] sm:$0xff] %vm950, %v2180
      %2200 = vst.msk [vmem:[#allocation3 + $0x38] sm:$0xff] %vm950, %v2182
      %2201 = vst.msk [vmem:[#allocation3 + $0x50] sm:$0xff] %vm950, %v2184
      %2202 = vst.msk [vmem:[#allocation3 + $0x68] sm:$0xff] %vm950, %v2186
      %2203 = vst.msk [vmem:[#allocation3 + $0x80] sm:$0xff] %vm950, %v2188
      %2204 = vst.msk [vmem:[#allocation3 + $0x98] sm:$0xff] %vm950, %v2190
      %vm2205 = vcmask 261127
      %2206 = vst.msk [vmem:[#allocation3 + $0xa0] sm:$0x80] %vm2205, 0.0
      %2207 = vst.msk [vmem:[#allocation3 + $0xb8] sm:$0xff] %vm506, 0.0
      %v2208 = vsel %vm1991, %v2004, 0.0
      %v2209 = vsel %vm1992, %v2006, 0.0
      %v2210 = vsel %vm1993, %v2008, 0.0
      %v2211 = vsel %vm1994, %v2010, 0.0
      %v2212 = vsel %vm1995, %v2012, 0.0
      %v2213 = vsel %vm1996, %v2014, 0.0
      %v2214 = vsel %vm1997, %v2013, 0.0
      %2215 = vst.msk [vmem:[#allocation3 + $0x10] sm:$0xff] %vm506, %v2208
      %2216 = vst.msk [vmem:[#allocation3 + $0x28] sm:$0xff] %vm506, %v2209
      %2217 = vst.msk [vmem:[#allocation3 + $0x40] sm:$0xff] %vm506, %v2210
      %2218 = vst.msk [vmem:[#allocation3 + $0x58] sm:$0xff] %vm506, %v2211
      %2219 = vst.msk [vmem:[#allocation3 + $0x70] sm:$0xff] %vm506, %v2212
      %2220 = vst.msk [vmem:[#allocation3 + $0x88] sm:$0xff] %vm506, %v2213
      %vm2221 = vcmask 260096
      %2222 = vst.msk [vmem:[#allocation3 + $0xa0] sm:$0x7f] %vm2221, %v2214
      %v2223 = vld [vmem:[#allocation3] sm:$0xff]
      %v2224 = vld [vmem:[#allocation3 + $0x8] sm:$0xff]
      %v2225 = vld [vmem:[#allocation3 + $0x10] sm:$0xff]
      %v2226 = vld [vmem:[#allocation3 + $0x18] sm:$0xff]
      %v2227 = vld [vmem:[#allocation3 + $0x20] sm:$0xff]
      %v2228 = vld [vmem:[#allocation3 + $0x28] sm:$0xff]
      %v2229 = vld [vmem:[#allocation3 + $0x30] sm:$0xff]
      %v2230 = vld [vmem:[#allocation3 + $0x38] sm:$0xff]
      %v2231 = vld [vmem:[#allocation3 + $0x40] sm:$0xff]
      %v2232 = vld [vmem:[#allocation3 + $0x48] sm:$0xff]
      %v2233 = vld [vmem:[#allocation3 + $0x50] sm:$0xff]
      %v2234 = vld [vmem:[#allocation3 + $0x58] sm:$0xff]
      %v2235 = vld [vmem:[#allocation3 + $0x60] sm:$0xff]
      %v2236 = vld [vmem:[#allocation3 + $0x68] sm:$0xff]
      %v2237 = vld [vmem:[#allocation3 + $0x70] sm:$0xff]
      %v2238 = vld [vmem:[#allocation3 + $0x78] sm:$0xff]
      %v2239 = vld [vmem:[#allocation3 + $0x80] sm:$0xff]
      %v2240 = vld [vmem:[#allocation3 + $0x88] sm:$0xff]
      %v2241 = vld [vmem:[#allocation3 + $0x90] sm:$0xff]
      %v2242 = vld [vmem:[#allocation3 + $0x98] sm:$0xff]
      %v2243 = vld [vmem:[#allocation3 + $0xa0] sm:$0xff]
      %v2244 = vld [vmem:[#allocation3 + $0xa8] sm:$0xff]
      %v2245 = vld [vmem:[#allocation3 + $0xb0] sm:$0xff]
      %v2246 = vld [vmem:[#allocation3 + $0xb8] sm:$0xff]
      %v2247 = vld [vmem:[%s8] sm:$0xff]
      %v2248 = vld [vmem:[%s8 + $0x8] sm:$0xff]
      %v2249 = vld [vmem:[%s8 + $0x10] sm:$0xff]
      %v2250 = vld [vmem:[%s8 + $0x18] sm:$0xff]
      %v2251 = vld [vmem:[%s8 + $0x20] sm:$0xff]
      %v2252 = vld [vmem:[%s8 + $0x28] sm:$0xff]
      %v2253 = vld [vmem:[%s8 + $0x30] sm:$0xff]
      %v2254 = vld [vmem:[%s8 + $0x38] sm:$0xff]
      %v2255 = vld [vmem:[%s8 + $0x40] sm:$0xff]
      %v2256 = vld [vmem:[%s8 + $0x48] sm:$0xff]
      %v2257 = vld [vmem:[%s8 + $0x50] sm:$0xff]
      %v2258 = vld [vmem:[%s8 + $0x58] sm:$0xff]
      %v2259 = vld [vmem:[%s8 + $0x60] sm:$0xff]
      %v2260 = vld [vmem:[%s8 + $0x68] sm:$0xff]
      %v2261 = vld [vmem:[%s8 + $0x70] sm:$0xff]
      %v2262 = vld [vmem:[%s8 + $0x78] sm:$0xff]
      %v2263 = vld [vmem:[%s8 + $0x80] sm:$0xff]
      %v2264 = vld [vmem:[%s8 + $0x88] sm:$0xff]
      %v2265 = vld [vmem:[%s8 + $0x90] sm:$0xff]
      %v2266 = vld [vmem:[%s8 + $0x98] sm:$0xff]
      %v2267 = vld [vmem:[%s8 + $0xa0] sm:$0xff]
      %v2268 = vld [vmem:[%s8 + $0xa8] sm:$0xff]
      %v2269 = vld [vmem:[%s8 + $0xb0] sm:$0xff]
      %v2270 = vld [vmem:[%s8 + $0xb8] sm:$0xff]
      %v2271 = vld [vmem:[%s8 + $0xc0] sm:$0xff]
      %v2272 = vld [vmem:[%s8 + $0xc8] sm:$0xff]
      %v2273 = vld [vmem:[%s8 + $0xd0] sm:$0xff]
      %v2274 = vld [vmem:[%s8 + $0xd8] sm:$0xff]
      %v2275 = vld [vmem:[%s8 + $0xe0] sm:$0xff]
      %v2276 = vld [vmem:[%s8 + $0xe8] sm:$0xff]
      %v2277 = vld [vmem:[%s8 + $0xf0] sm:$0xff]
      %v2278 = vld [vmem:[%s8 + $0xf8] sm:$0xff]
      %v2279 = vld [vmem:[%s8 + $0x100] sm:$0xff]
      %v2280 = vld [vmem:[%s8 + $0x108] sm:$0xff]
      %v2281 = vld [vmem:[%s8 + $0x110] sm:$0xff]
      %v2282 = vld [vmem:[%s8 + $0x118] sm:$0xff]
      %v2283 = vld [vmem:[%s9] sm:$0x1]
      %v2285 = vlaneseq
      %v2286 = vshrl.u32 %v2285, 7
      %v2287 = vsub.s32 0, %v2286
      %v2288 = vrot.slane %v2283, %v2287
      %v2291 = vsel %vm506, %v2225, 0
      %v2294 = vsel %vm506, %v2228, 0
      %v2297 = vsel %vm506, %v2231, 0
      %v2300 = vsel %vm506, %v2234, 0
      %v2303 = vsel %vm506, %v2237, 0
      %v2306 = vsel %vm506, %v2240, 0
      %v2309 = vsel %vm506, %v2243, 0
      %v2312 = vsel %vm506, %v2246, 0
      %2314 = vmatprep.subr.mxu0 0.0
      %2315 = vmatpush1.msra.mxu0 %v2247
      %2316 = vmatprep.subr.mxu0 0.0
      %2317 = vmatpush1.msra.mxu0 %v2248
      %2318 = vmatprep.subr.mxu0 0.0
      %2319 = vmatpush1.msra.mxu0 %v2249
      %2320 = vmatprep.subr.mxu0 0.0
      %2321 = vmatpush1.msra.mxu0 %v2250
      %2322 = vmatprep.subr.mxu0 0.0
      %2323 = vmatpush1.msra.mxu0 %v2251
      %2324 = vmatprep.subr.mxu0 0.0
      %2325 = vmatpush1.msra.mxu0 %v2252
      %2326 = vmatprep.subr.mxu0 0.0
      %2327 = vmatpush1.msra.mxu0 %v2253
      %2328 = vmatprep.subr.mxu0 0.0
      %2329 = vmatpush1.msra.mxu0 %v2254
      %2330 = vmatprep.subr.mxu0 0.0
      %2331 = vmatpush1.msra.mxu0 %v2255
      %2332 = vmatprep.subr.mxu0 0.0
      %2333 = vmatpush1.msra.mxu0 %v2256
      %2334 = vmatprep.subr.mxu0 0.0
      %2335 = vmatpush1.msra.mxu0 %v2257
      %2336 = vmatprep.subr.mxu0 0.0
      %2337 = vmatpush1.msra.mxu0 %v2258
      %2338 = vmatprep.subr.mxu0 0.0
      %2339 = vmatpush1.msra.mxu0 %v2259
      %2340 = vmatprep.subr.mxu0 0.0
      %2341 = vmatpush1.msra.mxu0 %v2260
      %2342 = vmatprep.subr.mxu0 0.0
      %2343 = vmatpush1.msra.mxu0 %v2261
      %2344 = vmatprep.subr.mxu0 0.0
      %2345 = vmatpush1.msra.mxu0 %v2262
      %2346 = vmatprep.subr.mxu0 0.0
      %2347 = vmatpush1.msra.mxu0 %v2263
      %2348 = vmatprep.subr.mxu0 0.0
      %2349 = vmatpush1.msra.mxu0 %v2264
      %2350 = vmatprep.subr.mxu0 0.0
      %2351 = vmatpush1.msra.mxu0 %v2265
      %2352 = vmatprep.subr.mxu0 0.0
      %2353 = vmatpush1.msra.mxu0 %v2266
      %2354 = vmatprep.subr.mxu0 0.0
      %2355 = vmatpush1.msra.mxu0 %v2267
      %2356 = vmatprep.subr.mxu0 0.0
      %2357 = vmatpush1.msra.mxu0 %v2268
      %2358 = vmatprep.subr.mxu0 0.0
      %2359 = vmatpush1.msra.mxu0 %v2269
      %2360 = vmatprep.subr.mxu0 0.0
      %2361 = vmatpush1.msra.mxu0 %v2270
      %2362 = vmatprep.subr.mxu0 0.0
      %2363 = vmatpush1.msra.mxu0 %v2271
      %2364 = vmatprep.subr.mxu0 0.0
      %2365 = vmatpush1.msra.mxu0 %v2272
      %2366 = vmatprep.subr.mxu0 0.0
      %2367 = vmatpush1.msra.mxu0 %v2273
      %2368 = vmatprep.subr.mxu0 0.0
      %2369 = vmatpush1.msra.mxu0 %v2274
      %2370 = vmatprep.subr.mxu0 0.0
      %2371 = vmatpush1.msra.mxu0 %v2275
      %2372 = vmatprep.subr.mxu0 0.0
      %2373 = vmatpush1.msra.mxu0 %v2276
      %2374 = vmatprep.subr.mxu0 0.0
      %2375 = vmatpush1.msra.mxu0 %v2277
      %2376 = vmatprep.subr.mxu0 0.0
      %2377 = vmatpush1.msra.mxu0 %v2278
      %2378 = vmatprep.mubr.f32.mxu0 %v2224
      %2379 = vmatmul.mubr.f32.gmra.mrb[0].mxu0 %v2223
      %v2380 = vpop.f32.mrb[0].mxu0
      %v2381 = vadd.f32 %v2288, %v2380
      %v2382 = vpop.f32.mrb[0].mxu0
      %2383 = vmatprep.mubr.f32.mxu0 %v2227
      %2384 = vmatmul.mubr.f32.gmra.mrb[0].mxu0 %v2226
      %v2385 = vpop.f32.mrb[0].mxu0
      %v2386 = vadd.f32 %v2288, %v2385
      %v2387 = vpop.f32.mrb[0].mxu0
      %2388 = vmatprep.mubr.f32.mxu0 %v2230
      %2389 = vmatmul.mubr.f32.gmra.mrb[0].mxu0 %v2229
      %v2390 = vpop.f32.mrb[0].mxu0
      %v2391 = vadd.f32 %v2288, %v2390
      %v2392 = vpop.f32.mrb[0].mxu0
      %2393 = vmatprep.mubr.f32.mxu0 %v2233
      %2394 = vmatmul.mubr.f32.gmra.mrb[0].mxu0 %v2232
      %v2395 = vpop.f32.mrb[0].mxu0
      %v2396 = vadd.f32 %v2288, %v2395
      %v2397 = vpop.f32.mrb[0].mxu0
      %2398 = vmatprep.mubr.f32.mxu0 %v2236
      %2399 = vmatmul.mubr.f32.gmra.mrb[0].mxu0 %v2235
      %v2400 = vpop.f32.mrb[0].mxu0
      %v2401 = vadd.f32 %v2288, %v2400
      %v2402 = vpop.f32.mrb[0].mxu0
      %2403 = vmatprep.mubr.f32.mxu0 %v2239
      %2404 = vmatmul.mubr.f32.gmra.mrb[0].mxu0 %v2238
      %v2405 = vpop.f32.mrb[0].mxu0
      %v2406 = vadd.f32 %v2288, %v2405
      %v2407 = vpop.f32.mrb[0].mxu0
      %2408 = vmatprep.mubr.f32.mxu0 %v2242
      %2409 = vmatmul.mubr.f32.gmra.mrb[0].mxu0 %v2241
      %v2410 = vpop.f32.mrb[0].mxu0
      %v2411 = vadd.f32 %v2288, %v2410
      %v2412 = vpop.f32.mrb[0].mxu0
      %2413 = vmatprep.mubr.f32.mxu0 %v2245
      %2414 = vmatmul.mubr.f32.gmra.mrb[0].mxu0 %v2244
      %v2415 = vpop.f32.mrb[0].mxu0
      %v2416 = vadd.f32 %v2288, %v2415
      %v2417 = vpop.f32.mrb[0].mxu0
      %2418 = vdwg.mxu0
      %2419 = vmatprep.subr.mxu0 0.0
      %2420 = vmatpush1.msra.mxu0 %v2279
      %2421 = vmatprep.subr.mxu0 0.0
      %2422 = vmatpush1.msra.mxu0 %v2280
      %2423 = vmatprep.subr.mxu0 0.0
      %2424 = vmatpush1.msra.mxu0 %v2281
      %2425 = vmatprep.subr.mxu0 0.0
      %2426 = vmatpush1.msra.mxu0 %v2282
      %2427 = vmatprep.subr.mxu0 0.0
      %2428 = vmatpush1.msra.mxu0 0.0
      %2429 = vmatprep.subr.mxu0 0.0
      %2430 = vmatpush1.msra.mxu0 0.0
      %2431 = vmatprep.subr.mxu0 0.0
      %2432 = vmatpush1.msra.mxu0 0.0
      %2433 = vmatprep.subr.mxu0 0.0
      %2434 = vmatpush1.msra.mxu0 0.0
      %2435 = vmatprep.subr.mxu0 0.0
      %2436 = vmatpush1.msra.mxu0 0.0
      %2437 = vmatprep.subr.mxu0 0.0
      %2438 = vmatpush1.msra.mxu0 0.0
      %2439 = vmatprep.subr.mxu0 0.0
      %2440 = vmatpush1.msra.mxu0 0.0
      %2441 = vmatprep.subr.mxu0 0.0
      %2442 = vmatpush1.msra.mxu0 0.0
      %2443 = vmatprep.subr.mxu0 0.0
      %2444 = vmatpush1.msra.mxu0 0.0
      %2445 = vmatprep.subr.mxu0 0.0
      %2446 = vmatpush1.msra.mxu0 0.0
      %2447 = vmatprep.subr.mxu0 0.0
      %2448 = vmatpush1.msra.mxu0 0.0
      %2449 = vmatprep.subr.mxu0 0.0
      %2450 = vmatpush1.msra.mxu0 0.0
      %2451 = vmatprep.subr.mxu0 0.0
      %2452 = vmatpush1.msra.mxu0 0.0
      %2453 = vmatprep.subr.mxu0 0.0
      %2454 = vmatpush1.msra.mxu0 0.0
      %2455 = vmatprep.subr.mxu0 0.0
      %2456 = vmatpush1.msra.mxu0 0.0
      %2457 = vmatprep.subr.mxu0 0.0
      %2458 = vmatpush1.msra.mxu0 0.0
      %2459 = vmatprep.subr.mxu0 0.0
      %2460 = vmatpush1.msra.mxu0 0.0
      %2461 = vmatprep.subr.mxu0 0.0
      %2462 = vmatpush1.msra.mxu0 0.0
      %2463 = vmatprep.subr.mxu0 0.0
      %2464 = vmatpush1.msra.mxu0 0.0
      %2465 = vmatprep.subr.mxu0 0.0
      %2466 = vmatpush1.msra.mxu0 0.0
      %2467 = vmatprep.subr.mxu0 0.0
      %2468 = vmatpush1.msra.mxu0 0.0
      %2469 = vmatprep.subr.mxu0 0.0
      %2470 = vmatpush1.msra.mxu0 0.0
      %2471 = vmatprep.subr.mxu0 0.0
      %2472 = vmatpush1.msra.mxu0 0.0
      %2473 = vmatprep.subr.mxu0 0.0
      %2474 = vmatpush1.msra.mxu0 0.0
      %2475 = vmatprep.subr.mxu0 0.0
      %2476 = vmatpush1.msra.mxu0 0.0
      %2477 = vmatprep.subr.mxu0 0.0
      %2478 = vmatpush1.msra.mxu0 0.0
      %2479 = vmatprep.subr.mxu0 0.0
      %2480 = vmatpush1.msra.mxu0 0.0
      %2481 = vmatprep.subr.mxu0 0.0
      %2482 = vmatpush1.msra.mxu0 0.0
      %2483 = vmatprep.mubr.f32.mxu0 0.0
      %2484 = vmatmul.mubr.f32.gmra.mrb[0].mxu0 %v2291
      %v2485 = vpop.f32.mrb[0].mxu0
      %v2486 = vadd.f32 %v2381, %v2485
      %v2487 = vpop.f32.mrb[0].mxu0
      %2488 = vmatprep.mubr.f32.mxu0 0.0
      %2489 = vmatmul.mubr.f32.gmra.mrb[0].mxu0 %v2294
      %v2490 = vpop.f32.mrb[0].mxu0
      %v2491 = vadd.f32 %v2386, %v2490
      %v2492 = vpop.f32.mrb[0].mxu0
      %2493 = vmatprep.mubr.f32.mxu0 0.0
      %2494 = vmatmul.mubr.f32.gmra.mrb[0].mxu0 %v2297
      %v2495 = vpop.f32.mrb[0].mxu0
      %v2496 = vadd.f32 %v2391, %v2495
      %v2497 = vpop.f32.mrb[0].mxu0
      %2498 = vmatprep.mubr.f32.mxu0 0.0
      %2499 = vmatmul.mubr.f32.gmra.mrb[0].mxu0 %v2300
      %v2500 = vpop.f32.mrb[0].mxu0
      %v2501 = vadd.f32 %v2396, %v2500
      %v2502 = vpop.f32.mrb[0].mxu0
      %2503 = vmatprep.mubr.f32.mxu0 0.0
      %2504 = vmatmul.mubr.f32.gmra.mrb[0].mxu0 %v2303
      %v2505 = vpop.f32.mrb[0].mxu0
      %v2506 = vadd.f32 %v2401, %v2505
      %v2507 = vpop.f32.mrb[0].mxu0
      %2508 = vmatprep.mubr.f32.mxu0 0.0
      %2509 = vmatmul.mubr.f32.gmra.mrb[0].mxu0 %v2306
      %v2510 = vpop.f32.mrb[0].mxu0
      %v2511 = vadd.f32 %v2406, %v2510
      %v2512 = vpop.f32.mrb[0].mxu0
      %2513 = vmatprep.mubr.f32.mxu0 0.0
      %2514 = vmatmul.mubr.f32.gmra.mrb[0].mxu0 %v2309
      %v2515 = vpop.f32.mrb[0].mxu0
      %v2516 = vadd.f32 %v2411, %v2515
      %v2517 = vpop.f32.mrb[0].mxu0
      %2518 = vmatprep.mubr.f32.mxu0 0.0
      %2519 = vmatmul.mubr.f32.gmra.mrb[0].mxu0 %v2312
      %v2520 = vpop.f32.mrb[0].mxu0
      %v2521 = vadd.f32 %v2416, %v2520
      %v2522 = vpop.f32.mrb[0].mxu0
      %2523 = vdwg.mxu0
      %v2524 = vxor.u32 %v2486, 2147483648
      %v2525 = vxor.u32 %v2491, 2147483648
      %v2526 = vxor.u32 %v2496, 2147483648
      %v2527 = vxor.u32 %v2501, 2147483648
      %v2528 = vxor.u32 %v2506, 2147483648
      %v2529 = vxor.u32 %v2511, 2147483648
      %v2530 = vxor.u32 %v2516, 2147483648
      %v2531 = vxor.u32 %v2521, 2147483648
      %v2532 = vmul.f32 %v2524, 1.442695
      %v2533 = vpow.pop %v2532
      %v2534 = vmul.f32 %v2525, 1.442695
      %v2535 = vpow.pop %v2534
      %v2536 = vmul.f32 %v2526, 1.442695
      %v2537 = vpow.pop %v2536
      %v2538 = vmul.f32 %v2527, 1.442695
      %v2539 = vpow.pop %v2538
      %v2540 = vmul.f32 %v2528, 1.442695
      %v2541 = vpow.pop %v2540
      %v2542 = vmul.f32 %v2529, 1.442695
      %v2543 = vpow.pop %v2542
      %v2544 = vmul.f32 %v2530, 1.442695
      %v2545 = vpow.pop %v2544
      %v2546 = vmul.f32 %v2531, 1.442695
      %v2547 = vpow.pop %v2546
      %v2548 = vadd.f32 %v2533, 1.0
      %v2549 = vadd.f32 %v2535, 1.0
      %v2550 = vadd.f32 %v2537, 1.0
      %v2551 = vadd.f32 %v2539, 1.0
      %v2552 = vadd.f32 %v2541, 1.0
      %v2553 = vadd.f32 %v2543, 1.0
      %v2554 = vadd.f32 %v2545, 1.0
      %v2555 = vadd.f32 %v2547, 1.0
      %v2556 = vrcp.pop %v2548
      %v2557 = vmul.f32 1.0, %v2556
      %v2558 = vrcp.pop %v2549
      %v2559 = vmul.f32 1.0, %v2558
      %v2560 = vrcp.pop %v2550
      %v2561 = vmul.f32 1.0, %v2560
      %v2562 = vrcp.pop %v2551
      %v2563 = vmul.f32 1.0, %v2562
      %v2564 = vrcp.pop %v2552
      %v2565 = vmul.f32 1.0, %v2564
      %v2566 = vrcp.pop %v2553
      %v2567 = vmul.f32 1.0, %v2566
      %v2568 = vrcp.pop %v2554
      %v2569 = vmul.f32 1.0, %v2568
      %v2570 = vrcp.pop %v2555
      %v2571 = vmul.f32 1.0, %v2570
      %v2572 = vmul.f32 %v2486, %v2557
      %v2573 = vmul.f32 %v2491, %v2559
      %v2574 = vmul.f32 %v2496, %v2561
      %v2575 = vmul.f32 %v2501, %v2563
      %v2576 = vmul.f32 %v2506, %v2565
      %v2577 = vmul.f32 %v2511, %v2567
      %v2578 = vmul.f32 %v2516, %v2569
      %v2579 = vmul.f32 %v2521, %v2571
      %2580 = vst.msk [vmem:[#allocation4] sm:$0xff] %vm506, %v2572
      %2581 = vst.msk [vmem:[#allocation4 + $0x8] sm:$0xff] %vm506, %v2573
      %2582 = vst.msk [vmem:[#allocation4 + $0x10] sm:$0xff] %vm506, %v2574
      %2583 = vst.msk [vmem:[#allocation4 + $0x18] sm:$0xff] %vm506, %v2575
      %2584 = vst.msk [vmem:[#allocation4 + $0x20] sm:$0xff] %vm506, %v2576
      %2585 = vst.msk [vmem:[#allocation4 + $0x28] sm:$0xff] %vm506, %v2577
      %2586 = vst.msk [vmem:[#allocation4 + $0x30] sm:$0xff] %vm506, %v2578
      %2587 = vst.msk [vmem:[#allocation4 + $0x38] sm:$0xff] %vm506, %v2579
      %2588 = vrot.lane.b32.xlu0 %v1514, 32
      %v2589 = vpop.permute.xlu0 %2588
      %2591 = vst.msk [vmem:[#allocation4] sm:$0xff] %vm680, %v1567
      %2592 = vst.msk [vmem:[#allocation4 + $0x8] sm:$0xff] %vm680, %v1569
      %2593 = vst.msk [vmem:[#allocation4 + $0x10] sm:$0xff] %vm680, %v1571
      %2594 = vst.msk [vmem:[#allocation4 + $0x18] sm:$0xff] %vm680, %v1573
      %2595 = vst.msk [vmem:[#allocation4 + $0x20] sm:$0xff] %vm680, %v1575
      %2596 = vst.msk [vmem:[#allocation4 + $0x28] sm:$0xff] %vm680, %v1577
      %2597 = vst.msk [vmem:[#allocation4 + $0x30] sm:$0xff] %vm680, %v1579
      %2598 = vst.msk [vmem:[#allocation4 + $0x38] sm:$0xff] %vm680, %v2589
      %v2599 = vld [vmem:[#allocation4] sm:$0xff]
      %v2600 = vld [vmem:[#allocation4 + $0x8] sm:$0xff]
      %v2601 = vld [vmem:[#allocation4 + $0x10] sm:$0xff]
      %v2602 = vld [vmem:[#allocation4 + $0x18] sm:$0xff]
      %v2603 = vld [vmem:[#allocation4 + $0x20] sm:$0xff]
      %v2604 = vld [vmem:[#allocation4 + $0x28] sm:$0xff]
      %v2605 = vld [vmem:[#allocation4 + $0x30] sm:$0xff]
      %v2606 = vld [vmem:[#allocation4 + $0x38] sm:$0xff]
      %v2607 = vld [vmem:[%s10] sm:$0xff]
      %v2608 = vld [vmem:[%s10 + $0x8] sm:$0xff]
      %v2609 = vld [vmem:[%s10 + $0x10] sm:$0xff]
      %v2610 = vld [vmem:[%s10 + $0x18] sm:$0xff]
      %v2611 = vld [vmem:[%s10 + $0x20] sm:$0xff]
      %v2612 = vld [vmem:[%s10 + $0x28] sm:$0xff]
      %v2613 = vld [vmem:[%s10 + $0x30] sm:$0xff]
      %v2614 = vld [vmem:[%s10 + $0x38] sm:$0xff]
      %v2615 = vld [vmem:[%s11] sm:$0x1]
      %v2617 = vlaneseq
      %v2618 = vshrl.u32 %v2617, 7
      %v2619 = vsub.s32 0, %v2618
      %v2620 = vrot.slane %v2615, %v2619
      %vm2622 = vcmask 523264
      %v2624 = vsel %vm2622, %v2599, 0
      %v2627 = vsel %vm2622, %v2600, 0
      %v2630 = vsel %vm2622, %v2601, 0
      %v2633 = vsel %vm2622, %v2602, 0
      %v2636 = vsel %vm2622, %v2603, 0
      %v2639 = vsel %vm2622, %v2604, 0
      %v2642 = vsel %vm2622, %v2605, 0
      %v2645 = vsel %vm2622, %v2606, 0
      %2647 = vmatprep.subr.mxu0 0.0
      %2648 = vmatpush1.msra.mxu0 %v2607
      %2649 = vmatprep.subr.mxu0 0.0
      %2650 = vmatpush1.msra.mxu0 %v2608
      %2651 = vmatprep.subr.mxu0 0.0
      %2652 = vmatpush1.msra.mxu0 %v2609
      %2653 = vmatprep.subr.mxu0 0.0
      %2654 = vmatpush1.msra.mxu0 %v2610
      %2655 = vmatprep.subr.mxu0 0.0
      %2656 = vmatpush1.msra.mxu0 %v2611
      %2657 = vmatprep.subr.mxu0 0.0
      %2658 = vmatpush1.msra.mxu0 %v2612
      %2659 = vmatprep.subr.mxu0 0.0
      %2660 = vmatpush1.msra.mxu0 %v2613
      %2661 = vmatprep.subr.mxu0 0.0
      %2662 = vmatpush1.msra.mxu0 %v2614
      %2663 = vmatprep.subr.mxu0 0.0
      %2664 = vmatpush1.msra.mxu0 0.0
      %2665 = vmatprep.subr.mxu0 0.0
      %2666 = vmatpush1.msra.mxu0 0.0
      %2667 = vmatprep.subr.mxu0 0.0
      %2668 = vmatpush1.msra.mxu0 0.0
      %2669 = vmatprep.subr.mxu0 0.0
      %2670 = vmatpush1.msra.mxu0 0.0
      %2671 = vmatprep.subr.mxu0 0.0
      %2672 = vmatpush1.msra.mxu0 0.0
      %2673 = vmatprep.subr.mxu0 0.0
      %2674 = vmatpush1.msra.mxu0 0.0
      %2675 = vmatprep.subr.mxu0 0.0
      %2676 = vmatpush1.msra.mxu0 0.0
      %2677 = vmatprep.subr.mxu0 0.0
      %2678 = vmatpush1.msra.mxu0 0.0
      %2679 = vmatprep.subr.mxu0 0.0
      %2680 = vmatpush1.msra.mxu0 0.0
      %2681 = vmatprep.subr.mxu0 0.0
      %2682 = vmatpush1.msra.mxu0 0.0
      %2683 = vmatprep.subr.mxu0 0.0
      %2684 = vmatpush1.msra.mxu0 0.0
      %2685 = vmatprep.subr.mxu0 0.0
      %2686 = vmatpush1.msra.mxu0 0.0
      %2687 = vmatprep.subr.mxu0 0.0
      %2688 = vmatpush1.msra.mxu0 0.0
      %2689 = vmatprep.subr.mxu0 0.0
      %2690 = vmatpush1.msra.mxu0 0.0
      %2691 = vmatprep.subr.mxu0 0.0
      %2692 = vmatpush1.msra.mxu0 0.0
      %2693 = vmatprep.subr.mxu0 0.0
      %2694 = vmatpush1.msra.mxu0 0.0
      %2695 = vmatprep.subr.mxu0 0.0
      %2696 = vmatpush1.msra.mxu0 0.0
      %2697 = vmatprep.subr.mxu0 0.0
      %2698 = vmatpush1.msra.mxu0 0.0
      %2699 = vmatprep.subr.mxu0 0.0
      %2700 = vmatpush1.msra.mxu0 0.0
      %2701 = vmatprep.subr.mxu0 0.0
      %2702 = vmatpush1.msra.mxu0 0.0
      %2703 = vmatprep.subr.mxu0 0.0
      %2704 = vmatpush1.msra.mxu0 0.0
      %2705 = vmatprep.subr.mxu0 0.0
      %2706 = vmatpush1.msra.mxu0 0.0
      %2707 = vmatprep.subr.mxu0 0.0
      %2708 = vmatpush1.msra.mxu0 0.0
      %2709 = vmatprep.subr.mxu0 0.0
      %2710 = vmatpush1.msra.mxu0 0.0
      %2711 = vmatprep.mubr.f32.mxu0 0.0
      %2712 = vmatmul.mubr.f32.gmra.mrb[0].mxu0 %v2624
      %v2713 = vpop.f32.mrb[0].mxu0
      %v2714 = vadd.f32 %v2620, %v2713
      %v2715 = vpop.f32.mrb[0].mxu0
      %2716 = vmatprep.mubr.f32.mxu0 0.0
      %2717 = vmatmul.mubr.f32.gmra.mrb[0].mxu0 %v2627
      %v2718 = vpop.f32.mrb[0].mxu0
      %v2719 = vadd.f32 %v2620, %v2718
      %v2720 = vpop.f32.mrb[0].mxu0
      %2721 = vmatprep.mubr.f32.mxu0 0.0
      %2722 = vmatmul.mubr.f32.gmra.mrb[0].mxu0 %v2630
      %v2723 = vpop.f32.mrb[0].mxu0
      %v2724 = vadd.f32 %v2620, %v2723
      %v2725 = vpop.f32.mrb[0].mxu0
      %2726 = vmatprep.mubr.f32.mxu0 0.0
      %2727 = vmatmul.mubr.f32.gmra.mrb[0].mxu0 %v2633
      %v2728 = vpop.f32.mrb[0].mxu0
      %v2729 = vadd.f32 %v2620, %v2728
      %v2730 = vpop.f32.mrb[0].mxu0
      %2731 = vmatprep.mubr.f32.mxu0 0.0
      %2732 = vmatmul.mubr.f32.gmra.mrb[0].mxu0 %v2636
      %v2733 = vpop.f32.mrb[0].mxu0
      %v2734 = vadd.f32 %v2620, %v2733
      %v2735 = vpop.f32.mrb[0].mxu0
      %2736 = vmatprep.mubr.f32.mxu0 0.0
      %2737 = vmatmul.mubr.f32.gmra.mrb[0].mxu0 %v2639
      %v2738 = vpop.f32.mrb[0].mxu0
      %v2739 = vadd.f32 %v2620, %v2738
      %v2740 = vpop.f32.mrb[0].mxu0
      %2741 = vmatprep.mubr.f32.mxu0 0.0
      %2742 = vmatmul.mubr.f32.gmra.mrb[0].mxu0 %v2642
      %v2743 = vpop.f32.mrb[0].mxu0
      %v2744 = vadd.f32 %v2620, %v2743
      %v2745 = vpop.f32.mrb[0].mxu0
      %2746 = vmatprep.mubr.f32.mxu0 0.0
      %2747 = vmatmul.mubr.f32.gmra.mrb[0].mxu0 %v2645
      %v2748 = vpop.f32.mrb[0].mxu0
      %v2749 = vadd.f32 %v2620, %v2748
      %v2750 = vpop.f32.mrb[0].mxu0
      %2751 = vdwg.mxu0
      %2752 = vst.msk [vmem:[%s473] sm:$0xff] %vm506, %v2714
      %2753 = vst.msk [vmem:[%s473 + $0x8] sm:$0xff] %vm506, %v2719
      %2754 = vst.msk [vmem:[%s473 + $0x10] sm:$0xff] %vm506, %v2724
      %2755 = vst.msk [vmem:[%s473 + $0x18] sm:$0xff] %vm506, %v2729
      %2756 = vst.msk [vmem:[%s473 + $0x20] sm:$0xff] %vm506, %v2734
      %2757 = vst.msk [vmem:[%s473 + $0x28] sm:$0xff] %vm506, %v2739
      %2758 = vst.msk [vmem:[%s473 + $0x30] sm:$0xff] %vm506, %v2744
      %2759 = vst.msk [vmem:[%s473 + $0x38] sm:$0xff] %vm506, %v2749
      %p2760 = scmp.lt.s32.totalorder %s23, 1
      %s2761 = scalar_select %p2760, %s23, 1
      %s2762 = smul.addr %s2761, 8
      %s2763 = smul.addr %s2762, 8
      %s2764 = scalar_lea.vmem %s12, %s2763
      // Predicated region
      $region69: #{tpu_custom_call.1} parent=67 // pred_check
        %p2765 = pneg %p313
      $region70: #{tpu_custom_call.1} parent=67 // pred_check_branch
        %2767 = sbr.rel (%p2765) target = $region72
      $region71: #{tpu_custom_call.1} parent=67 // pred_region
        _
      $region72: #{tpu_custom_call.1} parent=67 // pred_fallthru
        _
    $region68: #{tpu_custom_call.1} parent=5 // pred_fallthru
      _
    %p2768 = scmp.le.s32.totalorder 2, %s18
    // Predicated region
    $region73: #{tpu_custom_call.1} parent=5 // pred_check
      %p2769 = pneg %p2768
    $region74: #{tpu_custom_call.1} parent=5 // pred_check_branch
      %2771 = sbr.rel (%p2769) target = $region76
    $region75: #{tpu_custom_call.1} parent=5 // pred_region
      %s2772 = ssub.s32 %s18, 2
      // Predicated region
      $region77: #{tpu_custom_call.1} parent=75 // pred_check
        %p2773 = pneg %p319
      $region78: #{tpu_custom_call.1} parent=75 // pred_check_branch
        %2775 = sbr.rel (%p2773) target = $region80
      $region79: #{tpu_custom_call.1} parent=75 // pred_region
        %p2776 = scmp.lt.s32.totalorder %s24, 1
        %s2777 = scalar_select %p2776, %s24, 1
        %s2778 = smul.addr %s2777, 8
        %s2779 = smul.addr %s2778, 8
        %s2780 = scalar_lea.vmem %s12, %s2779
      $region80: #{tpu_custom_call.1} parent=75 // pred_fallthru
        _
    $region76: #{tpu_custom_call.1} parent=5 // pred_fallthru
      _
  $region6: #{tpu_custom_call.1} parent=0 // loop_footer
    %s22 = sadd.s32 1, %s18
  $region7: #{tpu_custom_call.1} parent=0 // loop_footer_branch
    %17 = sbr.rel target = $region3
  $region8: #{tpu_custom_call.1} parent=0 // loop_exit
    _

</llo_original>
